<compile_context>
chip_gen: v7x
topology: tpu7x:2x2x1
jax: 0.10.0
libtpu: 0.0.40
codegen_flags: <defaults>
</compile_context>

<pallas_src>
import jax
import jax.numpy as jnp
from jax.experimental import pallas as pl
from jax.experimental.pallas import tpu as pltpu

_PAD = 8  # zero-border rows per slab (>= max conv half-width, sublane aligned)


# ----------------------------------------------------------------------------
# Fused kernel: conv1+bn1+relu+pool -> conv2+bn2+relu+pool -> conv3+bn3+relu+pool
#               -> fc1 + relu + (dropout = identity in eval) -> fc2
# ----------------------------------------------------------------------------
def make_fused_kernel(B, L):
    Lf = L // 8          # spatial length per sample after three MaxPool1d(2)
    PAD = _PAD

    def conv_bn_relu_pool(slab, w_ref, s_ref, t_ref, rows, per_len):
        # slab : VMEM ref (PAD + rows + PAD, Cin); real data at rows [PAD, PAD+rows).
        # rows : B * per_len flattened (batch-major) rows.
        K = w_ref.shape[0]
        Cout = w_ref.shape[2]
        p = (K - 1) // 2
        # position of each flattened row inside its sample (per_len is a power of two)
        j = jax.lax.broadcasted_iota(jnp.int32, (rows, 1), 0) & (per_len - 1)
        acc = jnp.zeros((rows, Cout), jnp.float32)
        for k in range(K):                        # static unroll over conv taps
            d = k - p
            win = slab[pl.ds(PAD + d, rows), :]   # shifted window; in-bounds via the border
            if d != 0:                            # zero rows whose source crosses a sample edge
                valid = jnp.logical_and(j + d >= 0, j + d < per_len)
                win = jnp.where(valid, win, 0.0)
            acc = acc + jnp.dot(win.astype(jnp.bfloat16), w_ref[k],
                                preferred_element_type=jnp.float32)
        y = jnp.maximum(acc * s_ref[...] + t_ref[...], 0.0)       # folded bias+BN, then ReLU
        return jnp.max(y.reshape(rows // 2, 2, Cout), axis=1)     # MaxPool1d(2); pairs stay in-sample

    def kernel(x_ref, w1c_ref, s1_ref, t1_ref, w2c_ref, s2_ref, t2_ref,
               w3c_ref, s3_ref, t3_ref, w1f_ref, b1_ref, w2f_ref, b2f_ref,
               o_ref, slab1, slab2, slab3, p3_buf, fc_in):
        # ---- conv block 1 ----  (zero only the PAD borders; interior fully overwritten next)
        rows1 = B * L
        slab1[pl.ds(0, PAD), :] = jnp.zeros((PAD, slab1.shape[1]), jnp.float32)
        slab1[pl.ds(PAD + rows1, PAD), :] = jnp.zeros((PAD, slab1.shape[1]), jnp.float32)
        slab1[pl.ds(PAD, rows1), :] = x_ref[...]
        p1 = conv_bn_relu_pool(slab1, w1c_ref, s1_ref, t1_ref, rows1, L)          # (B*L/2, 32)

        # ---- conv block 2 ----
        rows2 = B * L // 2
        slab2[pl.ds(0, PAD), :] = jnp.zeros((PAD, slab2.shape[1]), jnp.float32)
        slab2[pl.ds(PAD + rows2, PAD), :] = jnp.zeros((PAD, slab2.shape[1]), jnp.float32)
        slab2[pl.ds(PAD, rows2), :] = p1
        p2 = conv_bn_relu_pool(slab2, w2c_ref, s2_ref, t2_ref, rows2, L // 2)     # (B*L/4, 64)

        # ---- conv block 3 ----
        rows3 = B * L // 4
        slab3[pl.ds(0, PAD), :] = jnp.zeros((PAD, slab3.shape[1]), jnp.float32)
        slab3[pl.ds(PAD + rows3, PAD), :] = jnp.zeros((PAD, slab3.shape[1]), jnp.float32)
        slab3[pl.ds(PAD, rows3), :] = p2
        p3 = conv_bn_relu_pool(slab3, w3c_ref, s3_ref, t3_ref, rows3, L // 4)     # (B*Lf, 128)

        # ---- FC head (fc1 + ReLU + fc2), entirely in VMEM ----
        # Relayout (B*Lf, C4) -> (B, Lf*C4) with static, 128-lane-aligned row copies so fc1 is
        # ONE deep dot.  w1f_ref rows were permuted host-side to match this (b,l)-major order,
        # folding torch's channel-major flatten(1) -> no in-kernel transpose.
        C4 = p3_buf.shape[1]
        p3_buf[...] = p3
        for b in range(B):
            for l in range(Lf):
                fc_in[pl.ds(b, 1), pl.ds(l * C4, C4)] = p3_buf[pl.ds(b * Lf + l, 1), :]
        h = jnp.dot(fc_in[...].astype(jnp.bfloat16), w1f_ref[...],
                    preferred_element_type=jnp.float32) + b1_ref[...]             # (B, H)
        h = jnp.maximum(h, 0.0)
        # TODO(synk): nn.Dropout(0.5) is identity in eval mode; training-mode RNG dropout not implemented.
        o_ref[...] = jnp.dot(h.astype(jnp.bfloat16), w2f_ref[...],
                             preferred_element_type=jnp.float32) + b2f_ref[...]   # (B, 1)

    return kernel


def signal_cnn_forward(x_ncl, params):
    # x_ncl: (B, C, L) exactly like the PyTorch module (after unsqueeze if 2-D).
    if x_ncl.ndim == 2:
        x_ncl = x_ncl[:, None, :]
    B, C, L = x_ncl.shape
    assert L % 8 == 0 and (L & (L - 1)) == 0, "L must be a power of two (>= 8)"
    assert (B * L // 4) % 8 == 0, "B*L/4 must be a multiple of 8"

    (w1c, s1, t1), (w2c, s2, t2), (w3c, s3, t3) = params["convs"]
    C2, C3, C4 = w1c.shape[2], w2c.shape[2], w3c.shape[2]
    Lf = L // 8
    H = params["w1"].shape[1]

    # Host-side fold of torch's channel-major flatten: fc1 row index c*Lf + l -> reorder to
    # l*C4 + c so it matches the kernel's (b,l)-major FC input layout.
    w1rf = params["w1"].reshape(C4, Lf, H).transpose(1, 0, 2).reshape(Lf * C4, H)

    # Ship all matmul weights in bf16 (halves the dominant DMA; bf16-native MXU passes).
    bf = jnp.bfloat16
    w1c_b, w2c_b, w3c_b = w1c.astype(bf), w2c.astype(bf), w3c.astype(bf)
    w1rf_b, w2_b = w1rf.astype(bf), params["w2"].astype(bf)

    # One-time tiny glue: NCL -> flattened (B*L, C) rows (channels on the lane axis).
    x2d = jnp.transpose(x_ncl, (0, 2, 1)).reshape(B * L, C)

    kernel = make_fused_kernel(B, L)
    return pl.pallas_call(
        kernel,
        out_shape=jax.ShapeDtypeStruct((B, 1), jnp.float32),
        scratch_shapes=[
            pltpu.VMEM((B * L + 2 * _PAD, C), jnp.float32),        # padded slab: conv1 input
            pltpu.VMEM((B * L // 2 + 2 * _PAD, C2), jnp.float32),  # padded slab: conv2 input
            pltpu.VMEM((B * L // 4 + 2 * _PAD, C3), jnp.float32),  # padded slab: conv3 input
            pltpu.VMEM((B * Lf, C4), jnp.float32),                 # conv3 pooled output
            pltpu.VMEM((B, Lf * C4), jnp.float32),                 # relaid-out fc1 input
        ],
    )(x2d, w1c_b, s1, t1, w2c_b, s2, t2, w3c_b, s3, t3, w1rf_b,
      params["b1"], w2_b, params["b2"])


# ----------------------------------------------------------------------------
# Parameter init (deterministic, synthetic) matching the PyTorch module structure
# ----------------------------------------------------------------------------
def init_params(key, n_channels=12, input_len=64):
    keys = iter(jax.random.split(key, 24))
    eps = 1e-5

    def conv_params(K, Cin, Cout):
        w = jax.random.normal(next(keys), (K, Cin, Cout), jnp.float32) / jnp.sqrt(K * Cin)
        b = 0.05 * jax.random.normal(next(keys), (Cout,), jnp.float32)
        gamma = 1.0 + 0.1 * jax.random.normal(next(keys), (Cout,), jnp.float32)
        beta = 0.05 * jax.random.normal(next(keys), (Cout,), jnp.float32)
        mean = 0.05 * jax.random.normal(next(keys), (Cout,), jnp.float32)
        var = 1.0 + 0.1 * jnp.abs(jax.random.normal(next(keys), (Cout,), jnp.float32))
        scale = gamma / jnp.sqrt(var + eps)                       # BN folded into the conv epilogue
        shift = beta + scale * (b - mean)
        return (w, scale.reshape(1, Cout), shift.reshape(1, Cout))

    convs = [
        conv_params(5, n_channels, 32),   # conv1, padding=2
        conv_params(3, 32, 64),           # conv2, padding=1
        conv_params(3, 64, 128),          # conv3, padding=1
    ]
    flat_features = 128 * (input_len // 8)       # after three MaxPool1d(2)
    w1 = jax.random.normal(next(keys), (flat_features, 128), jnp.float32) / jnp.sqrt(flat_features)
    b1 = (0.05 * jax.random.normal(next(keys), (128,), jnp.float32)).reshape(1, 128)
    w2 = jax.random.normal(next(keys), (128, 1), jnp.float32) / jnp.sqrt(128.0)
    b2 = (0.05 * jax.random.normal(next(keys), (1,), jnp.float32)).reshape(1, 1)
    return {"convs": convs, "w1": w1, "b1": b1, "w2": w2, "b2": b2}


# Pure-JAX reference with the SAME bf16-rounded weights / bf16 matmul operands (f32 accumulate),
# so the comparison isolates kernel bugs rather than bf16 quantization.
def ref_forward(x_ncl, params):
    bf = jnp.bfloat16
    x = jnp.transpose(x_ncl, (0, 2, 1))                           # (B, L, C)
    for (w, scale, shift) in params["convs"]:
        Bb, Ll, _ = x.shape
        K = w.shape[0]
        pad = (K - 1) // 2
        xp = jnp.pad(x, ((0, 0), (pad, pad), (0, 0)))
        acc = sum(jnp.einsum("blc,co->blo", xp[:, k:k + Ll, :].astype(bf), w[k].astype(bf),
                             preferred_element_type=jnp.float32) for k in range(K))
        y = jnp.maximum(acc * scale + shift, 0.0)
        x = jnp.max(y.reshape(Bb, Ll // 2, 2, -1), axis=2)
    x = jnp.transpose(x, (0, 2, 1)).reshape(x.shape[0], -1)       # torch's channel-major flatten(1)
    h = jnp.maximum(jnp.dot(x.astype(bf), params["w1"].astype(bf),
                            preferred_element_type=jnp.float32) + params["b1"], 0.0)
    return jnp.dot(h.astype(bf), params["w2"].astype(bf),
                   preferred_element_type=jnp.float32) + params["b2"]


if __name__ == "__main__":
    B, C, L = 2, 12, 64                          # small shapes; L a power of two
    key = jax.random.PRNGKey(0)
    k_x, k_p = jax.random.split(key)
    x = jax.random.normal(k_x, (B, C, L), jnp.float32)
    params = init_params(k_p, n_channels=C, input_len=L)

    out = jax.block_until_ready(signal_cnn_forward(x, params))
    ref = jax.block_until_ready(ref_forward(x, params))

    assert out.shape == (B, 1), out.shape
    assert bool(jnp.all(jnp.isfinite(out)))
    # bf16 matmul operands: tolerance loosened vs pure-f32 (per review), still tight enough
    # to catch any structural / layout bug.
    assert bool(jnp.allclose(out, ref, rtol=1e-2, atol=1e-2)), (out, ref)
    print("KERNEL_OK")
</pallas_src>

<mosaic_0001>
module attributes {stable_mosaic.version = 11 : i64} {
  func.func @kernel(%arg0: memref<128x12xf32, #tpu.memory_space<vmem>>, %arg1: memref<5x12x32xbf16, #tpu.memory_space<vmem>>, %arg2: memref<1x32xf32, #tpu.memory_space<vmem>>, %arg3: memref<1x32xf32, #tpu.memory_space<vmem>>, %arg4: memref<3x32x64xbf16, #tpu.memory_space<vmem>>, %arg5: memref<1x64xf32, #tpu.memory_space<vmem>>, %arg6: memref<1x64xf32, #tpu.memory_space<vmem>>, %arg7: memref<3x64x128xbf16, #tpu.memory_space<vmem>>, %arg8: memref<1x128xf32, #tpu.memory_space<vmem>>, %arg9: memref<1x128xf32, #tpu.memory_space<vmem>>, %arg10: memref<1024x128xbf16, #tpu.memory_space<vmem>>, %arg11: memref<1x128xf32, #tpu.memory_space<vmem>>, %arg12: memref<128x1xbf16, #tpu.memory_space<vmem>>, %arg13: memref<1x1xf32, #tpu.memory_space<vmem>>, %arg14: memref<2x1xf32, #tpu.memory_space<vmem>>, %arg15: memref<144x12xf32, #tpu.memory_space<vmem>>, %arg16: memref<80x32xf32, #tpu.memory_space<vmem>>, %arg17: memref<48x64xf32, #tpu.memory_space<vmem>>, %arg18: memref<16x128xf32, #tpu.memory_space<vmem>>, %arg19: memref<2x1024xf32, #tpu.memory_space<vmem>>) attributes {dimension_semantics = [], scalar_prefetch = 0 : i64, scratch_operands = 5 : i64, tpu.core_type = #tpu.core_type<tc>} {
    %cst = arith.constant 0.000000e+00 : f32
    %0 = vector.broadcast %cst : f32 to vector<8x12xf32>
    %c0 = arith.constant 0 : index
    %c0_0 = arith.constant 0 : index
    %1 = vector.load %arg15[%c0, %c0_0] : memref<144x12xf32, #tpu.memory_space<vmem>>, vector<8x12xf32>
    tpu.vector_store %arg15[%c0, %c0_0], %0 {strides = array<i32>} : memref<144x12xf32, #tpu.memory_space<vmem>>, vector<8x12xf32>,
    %cst_1 = arith.constant 0.000000e+00 : f32
    %2 = vector.broadcast %cst_1 : f32 to vector<8x12xf32>
    %c136 = arith.constant 136 : index
    %c0_2 = arith.constant 0 : index
    %3 = vector.load %arg15[%c136, %c0_2] : memref<144x12xf32, #tpu.memory_space<vmem>>, vector<8x12xf32>
    tpu.vector_store %arg15[%c136, %c0_2], %2 {strides = array<i32>} : memref<144x12xf32, #tpu.memory_space<vmem>>, vector<8x12xf32>,
    %c0_3 = arith.constant 0 : index
    %c0_4 = arith.constant 0 : index
    %4 = vector.load %arg0[%c0_3, %c0_4] : memref<128x12xf32, #tpu.memory_space<vmem>>, vector<128x12xf32>
    %c8 = arith.constant 8 : index
    %c0_5 = arith.constant 0 : index
    %5 = vector.load %arg15[%c8, %c0_5] : memref<144x12xf32, #tpu.memory_space<vmem>>, vector<128x12xf32>
    tpu.vector_store %arg15[%c8, %c0_5], %4 {strides = array<i32>} : memref<144x12xf32, #tpu.memory_space<vmem>>, vector<128x12xf32>,
    %6 = tpu.iota {dimensions = array<i32: 0>} : vector<128x1xi32>
    %c63_i32 = arith.constant 63 : i32
    %7 = vector.broadcast %c63_i32 : i32 to vector<128x1xi32>
    %8 = arith.andi %6, %7 : vector<128x1xi32>
    %cst_6 = arith.constant 0.000000e+00 : f32
    %9 = vector.broadcast %cst_6 : f32 to vector<128x32xf32>
    %c6 = arith.constant 6 : index
    %c0_7 = arith.constant 0 : index
    %10 = vector.load %arg15[%c6, %c0_7] : memref<144x12xf32, #tpu.memory_space<vmem>>, vector<128x12xf32>
    %c-2_i32 = arith.constant -2 : i32
    %11 = vector.broadcast %c-2_i32 : i32 to vector<128x1xi32>
    %12 = arith.addi %8, %11 : vector<128x1xi32>
    %c0_i32 = arith.constant 0 : i32
    %13 = vector.broadcast %c0_i32 : i32 to vector<128x1xi32>
    %14 = arith.cmpi sge, %12, %13 : vector<128x1xi32>
    %c-2_i32_8 = arith.constant -2 : i32
    %15 = vector.broadcast %c-2_i32_8 : i32 to vector<128x1xi32>
    %16 = arith.addi %8, %15 : vector<128x1xi32>
    %c64_i32 = arith.constant 64 : i32
    %17 = vector.broadcast %c64_i32 : i32 to vector<128x1xi32>
    %18 = arith.cmpi slt, %16, %17 : vector<128x1xi32>
    %19 = arith.andi %14, %18 : vector<128x1xi1>
    %cst_9 = arith.constant 0.000000e+00 : f32
    %20 = vector.shape_cast %19 : vector<128x1xi1> to vector<128x1xi1>
    %21 = vector.broadcast %20 : vector<128x1xi1> to vector<128x12xi1>
    %22 = vector.broadcast %cst_9 : f32 to vector<128x12xf32>
    %23 = arith.select %21, %10, %22 : vector<128x12xi1>, vector<128x12xf32>
    %24 = arith.truncf %23 : vector<128x12xf32> to vector<128x12xbf16>
    %c0_10 = arith.constant 0 : index
    %c0_11 = arith.constant 0 : index
    %c0_12 = arith.constant 0 : index
    %25 = vector.load %arg1[%c0_10, %c0_11, %c0_12] : memref<5x12x32xbf16, #tpu.memory_space<vmem>>, vector<1x12x32xbf16>
    %26 = vector.shape_cast %25 : vector<1x12x32xbf16> to vector<12x32xbf16>
    %cst_13 = arith.constant dense<0.000000e+00> : vector<128x32xf32>
    %27 = tpu.matmul %24, %26, %cst_13 {dimension_numbers = #tpu.dot_dimension_numbers<[1], [0], [0], [1], [0, 0, 1, 1], [], []>} : vector<128x12xbf16>, vector<12x32xbf16>, vector<128x32xf32> -> vector<128x32xf32>
    %28 = arith.addf %9, %27 : vector<128x32xf32>
    %c7 = arith.constant 7 : index
    %c0_14 = arith.constant 0 : index
    %29 = vector.load %arg15[%c7, %c0_14] : memref<144x12xf32, #tpu.memory_space<vmem>>, vector<128x12xf32>
    %c-1_i32 = arith.constant -1 : i32
    %30 = vector.broadcast %c-1_i32 : i32 to vector<128x1xi32>
    %31 = arith.addi %8, %30 : vector<128x1xi32>
    %c0_i32_15 = arith.constant 0 : i32
    %32 = vector.broadcast %c0_i32_15 : i32 to vector<128x1xi32>
    %33 = arith.cmpi sge, %31, %32 : vector<128x1xi32>
    %c-1_i32_16 = arith.constant -1 : i32
    %34 = vector.broadcast %c-1_i32_16 : i32 to vector<128x1xi32>
    %35 = arith.addi %8, %34 : vector<128x1xi32>
    %c64_i32_17 = arith.constant 64 : i32
    %36 = vector.broadcast %c64_i32_17 : i32 to vector<128x1xi32>
    %37 = arith.cmpi slt, %35, %36 : vector<128x1xi32>
    %38 = arith.andi %33, %37 : vector<128x1xi1>
    %cst_18 = arith.constant 0.000000e+00 : f32
    %39 = vector.shape_cast %38 : vector<128x1xi1> to vector<128x1xi1>
    %40 = vector.broadcast %39 : vector<128x1xi1> to vector<128x12xi1>
    %41 = vector.broadcast %cst_18 : f32 to vector<128x12xf32>
    %42 = arith.select %40, %29, %41 : vector<128x12xi1>, vector<128x12xf32>
    %43 = arith.truncf %42 : vector<128x12xf32> to vector<128x12xbf16>
    %c1 = arith.constant 1 : index
    %c0_19 = arith.constant 0 : index
    %c0_20 = arith.constant 0 : index
    %44 = vector.load %arg1[%c1, %c0_19, %c0_20] : memref<5x12x32xbf16, #tpu.memory_space<vmem>>, vector<1x12x32xbf16>
    %45 = vector.shape_cast %44 : vector<1x12x32xbf16> to vector<12x32xbf16>
    %cst_21 = arith.constant dense<0.000000e+00> : vector<128x32xf32>
    %46 = tpu.matmul %43, %45, %cst_21 {dimension_numbers = #tpu.dot_dimension_numbers<[1], [0], [0], [1], [0, 0, 1, 1], [], []>} : vector<128x12xbf16>, vector<12x32xbf16>, vector<128x32xf32> -> vector<128x32xf32>
    %47 = arith.addf %28, %46 : vector<128x32xf32>
    %c8_22 = arith.constant 8 : index
    %c0_23 = arith.constant 0 : index
    %48 = vector.load %arg15[%c8_22, %c0_23] : memref<144x12xf32, #tpu.memory_space<vmem>>, vector<128x12xf32>
    %49 = arith.truncf %48 : vector<128x12xf32> to vector<128x12xbf16>
    %c2 = arith.constant 2 : index
    %c0_24 = arith.constant 0 : index
    %c0_25 = arith.constant 0 : index
    %50 = vector.load %arg1[%c2, %c0_24, %c0_25] : memref<5x12x32xbf16, #tpu.memory_space<vmem>>, vector<1x12x32xbf16>
    %51 = vector.shape_cast %50 : vector<1x12x32xbf16> to vector<12x32xbf16>
    %cst_26 = arith.constant dense<0.000000e+00> : vector<128x32xf32>
    %52 = tpu.matmul %49, %51, %cst_26 {dimension_numbers = #tpu.dot_dimension_numbers<[1], [0], [0], [1], [0, 0, 1, 1], [], []>} : vector<128x12xbf16>, vector<12x32xbf16>, vector<128x32xf32> -> vector<128x32xf32>
    %53 = arith.addf %47, %52 : vector<128x32xf32>
    %c9 = arith.constant 9 : index
    %c0_27 = arith.constant 0 : index
    %54 = vector.load %arg15[%c9, %c0_27] : memref<144x12xf32, #tpu.memory_space<vmem>>, vector<128x12xf32>
    %c1_i32 = arith.constant 1 : i32
    %55 = vector.broadcast %c1_i32 : i32 to vector<128x1xi32>
    %56 = arith.addi %8, %55 : vector<128x1xi32>
    %c0_i32_28 = arith.constant 0 : i32
    %57 = vector.broadcast %c0_i32_28 : i32 to vector<128x1xi32>
    %58 = arith.cmpi sge, %56, %57 : vector<128x1xi32>
    %c1_i32_29 = arith.constant 1 : i32
    %59 = vector.broadcast %c1_i32_29 : i32 to vector<128x1xi32>
    %60 = arith.addi %8, %59 : vector<128x1xi32>
    %c64_i32_30 = arith.constant 64 : i32
    %61 = vector.broadcast %c64_i32_30 : i32 to vector<128x1xi32>
    %62 = arith.cmpi slt, %60, %61 : vector<128x1xi32>
    %63 = arith.andi %58, %62 : vector<128x1xi1>
    %cst_31 = arith.constant 0.000000e+00 : f32
    %64 = vector.shape_cast %63 : vector<128x1xi1> to vector<128x1xi1>
    %65 = vector.broadcast %64 : vector<128x1xi1> to vector<128x12xi1>
    %66 = vector.broadcast %cst_31 : f32 to vector<128x12xf32>
    %67 = arith.select %65, %54, %66 : vector<128x12xi1>, vector<128x12xf32>
    %68 = arith.truncf %67 : vector<128x12xf32> to vector<128x12xbf16>
    %c3 = arith.constant 3 : index
    %c0_32 = arith.constant 0 : index
    %c0_33 = arith.constant 0 : index
    %69 = vector.load %arg1[%c3, %c0_32, %c0_33] : memref<5x12x32xbf16, #tpu.memory_space<vmem>>, vector<1x12x32xbf16>
    %70 = vector.shape_cast %69 : vector<1x12x32xbf16> to vector<12x32xbf16>
    %cst_34 = arith.constant dense<0.000000e+00> : vector<128x32xf32>
    %71 = tpu.matmul %68, %70, %cst_34 {dimension_numbers = #tpu.dot_dimension_numbers<[1], [0], [0], [1], [0, 0, 1, 1], [], []>} : vector<128x12xbf16>, vector<12x32xbf16>, vector<128x32xf32> -> vector<128x32xf32>
    %72 = arith.addf %53, %71 : vector<128x32xf32>
    %c10 = arith.constant 10 : index
    %c0_35 = arith.constant 0 : index
    %73 = vector.load %arg15[%c10, %c0_35] : memref<144x12xf32, #tpu.memory_space<vmem>>, vector<128x12xf32>
    %c2_i32 = arith.constant 2 : i32
    %74 = vector.broadcast %c2_i32 : i32 to vector<128x1xi32>
    %75 = arith.addi %8, %74 : vector<128x1xi32>
    %c0_i32_36 = arith.constant 0 : i32
    %76 = vector.broadcast %c0_i32_36 : i32 to vector<128x1xi32>
    %77 = arith.cmpi sge, %75, %76 : vector<128x1xi32>
    %c2_i32_37 = arith.constant 2 : i32
    %78 = vector.broadcast %c2_i32_37 : i32 to vector<128x1xi32>
    %79 = arith.addi %8, %78 : vector<128x1xi32>
    %c64_i32_38 = arith.constant 64 : i32
    %80 = vector.broadcast %c64_i32_38 : i32 to vector<128x1xi32>
    %81 = arith.cmpi slt, %79, %80 : vector<128x1xi32>
    %82 = arith.andi %77, %81 : vector<128x1xi1>
    %cst_39 = arith.constant 0.000000e+00 : f32
    %83 = vector.shape_cast %82 : vector<128x1xi1> to vector<128x1xi1>
    %84 = vector.broadcast %83 : vector<128x1xi1> to vector<128x12xi1>
    %85 = vector.broadcast %cst_39 : f32 to vector<128x12xf32>
    %86 = arith.select %84, %73, %85 : vector<128x12xi1>, vector<128x12xf32>
    %87 = arith.truncf %86 : vector<128x12xf32> to vector<128x12xbf16>
    %c4 = arith.constant 4 : index
    %c0_40 = arith.constant 0 : index
    %c0_41 = arith.constant 0 : index
    %88 = vector.load %arg1[%c4, %c0_40, %c0_41] : memref<5x12x32xbf16, #tpu.memory_space<vmem>>, vector<1x12x32xbf16>
    %89 = vector.shape_cast %88 : vector<1x12x32xbf16> to vector<12x32xbf16>
    %cst_42 = arith.constant dense<0.000000e+00> : vector<128x32xf32>
    %90 = tpu.matmul %87, %89, %cst_42 {dimension_numbers = #tpu.dot_dimension_numbers<[1], [0], [0], [1], [0, 0, 1, 1], [], []>} : vector<128x12xbf16>, vector<12x32xbf16>, vector<128x32xf32> -> vector<128x32xf32>
    %91 = arith.addf %72, %90 : vector<128x32xf32>
    %c0_43 = arith.constant 0 : index
    %c0_44 = arith.constant 0 : index
    %92 = vector.load %arg2[%c0_43, %c0_44] : memref<1x32xf32, #tpu.memory_space<vmem>>, vector<1x32xf32>
    %93 = vector.broadcast %92 : vector<1x32xf32> to vector<128x32xf32>
    %94 = arith.mulf %91, %93 : vector<128x32xf32>
    %c0_45 = arith.constant 0 : index
    %c0_46 = arith.constant 0 : index
    %95 = vector.load %arg3[%c0_45, %c0_46] : memref<1x32xf32, #tpu.memory_space<vmem>>, vector<1x32xf32>
    %96 = vector.broadcast %95 : vector<1x32xf32> to vector<128x32xf32>
    %97 = arith.addf %94, %96 : vector<128x32xf32>
    %cst_47 = arith.constant 0.000000e+00 : f32
    %98 = vector.broadcast %cst_47 : f32 to vector<128x32xf32>
    %99 = arith.maximumf %97, %98 : vector<128x32xf32>
    %100 = vector.shape_cast %99 : vector<128x32xf32> to vector<64x2x32xf32>
    %cst_48 = arith.constant dense<0xFF800000> : vector<64x32xf32>
    %101 = vector.multi_reduction <maximumf>, %100, %cst_48 [1] : vector<64x2x32xf32> to vector<64x32xf32>
    %cst_49 = arith.constant 0.000000e+00 : f32
    %102 = vector.broadcast %cst_49 : f32 to vector<8x32xf32>
    %c0_50 = arith.constant 0 : index
    %c0_51 = arith.constant 0 : index
    %103 = vector.load %arg16[%c0_50, %c0_51] : memref<80x32xf32, #tpu.memory_space<vmem>>, vector<8x32xf32>
    tpu.vector_store %arg16[%c0_50, %c0_51], %102 {strides = array<i32>} : memref<80x32xf32, #tpu.memory_space<vmem>>, vector<8x32xf32>,
    %cst_52 = arith.constant 0.000000e+00 : f32
    %104 = vector.broadcast %cst_52 : f32 to vector<8x32xf32>
    %c72 = arith.constant 72 : index
    %c0_53 = arith.constant 0 : index
    %105 = vector.load %arg16[%c72, %c0_53] : memref<80x32xf32, #tpu.memory_space<vmem>>, vector<8x32xf32>
    tpu.vector_store %arg16[%c72, %c0_53], %104 {strides = array<i32>} : memref<80x32xf32, #tpu.memory_space<vmem>>, vector<8x32xf32>,
    %c8_54 = arith.constant 8 : index
    %c0_55 = arith.constant 0 : index
    %106 = vector.load %arg16[%c8_54, %c0_55] : memref<80x32xf32, #tpu.memory_space<vmem>>, vector<64x32xf32>
    tpu.vector_store %arg16[%c8_54, %c0_55], %101 {strides = array<i32>} : memref<80x32xf32, #tpu.memory_space<vmem>>, vector<64x32xf32>,
    %107 = tpu.iota {dimensions = array<i32: 0>} : vector<64x1xi32>
    %c31_i32 = arith.constant 31 : i32
    %108 = vector.broadcast %c31_i32 : i32 to vector<64x1xi32>
    %109 = arith.andi %107, %108 : vector<64x1xi32>
    %cst_56 = arith.constant 0.000000e+00 : f32
    %110 = vector.broadcast %cst_56 : f32 to vector<64x64xf32>
    %c7_57 = arith.constant 7 : index
    %c0_58 = arith.constant 0 : index
    %111 = vector.load %arg16[%c7_57, %c0_58] : memref<80x32xf32, #tpu.memory_space<vmem>>, vector<64x32xf32>
    %c-1_i32_59 = arith.constant -1 : i32
    %112 = vector.broadcast %c-1_i32_59 : i32 to vector<64x1xi32>
    %113 = arith.addi %109, %112 : vector<64x1xi32>
    %c0_i32_60 = arith.constant 0 : i32
    %114 = vector.broadcast %c0_i32_60 : i32 to vector<64x1xi32>
    %115 = arith.cmpi sge, %113, %114 : vector<64x1xi32>
    %c-1_i32_61 = arith.constant -1 : i32
    %116 = vector.broadcast %c-1_i32_61 : i32 to vector<64x1xi32>
    %117 = arith.addi %109, %116 : vector<64x1xi32>
    %c32_i32 = arith.constant 32 : i32
    %118 = vector.broadcast %c32_i32 : i32 to vector<64x1xi32>
    %119 = arith.cmpi slt, %117, %118 : vector<64x1xi32>
    %120 = arith.andi %115, %119 : vector<64x1xi1>
    %cst_62 = arith.constant 0.000000e+00 : f32
    %121 = vector.shape_cast %120 : vector<64x1xi1> to vector<64x1xi1>
    %122 = vector.broadcast %121 : vector<64x1xi1> to vector<64x32xi1>
    %123 = vector.broadcast %cst_62 : f32 to vector<64x32xf32>
    %124 = arith.select %122, %111, %123 : vector<64x32xi1>, vector<64x32xf32>
    %125 = arith.truncf %124 : vector<64x32xf32> to vector<64x32xbf16>
    %c0_63 = arith.constant 0 : index
    %c0_64 = arith.constant 0 : index
    %c0_65 = arith.constant 0 : index
    %126 = vector.load %arg4[%c0_63, %c0_64, %c0_65] : memref<3x32x64xbf16, #tpu.memory_space<vmem>>, vector<1x32x64xbf16>
    %127 = vector.shape_cast %126 : vector<1x32x64xbf16> to vector<32x64xbf16>
    %cst_66 = arith.constant dense<0.000000e+00> : vector<64x64xf32>
    %128 = tpu.matmul %125, %127, %cst_66 {dimension_numbers = #tpu.dot_dimension_numbers<[1], [0], [0], [1], [0, 0, 1, 1], [], []>} : vector<64x32xbf16>, vector<32x64xbf16>, vector<64x64xf32> -> vector<64x64xf32>
    %129 = arith.addf %110, %128 : vector<64x64xf32>
    %c8_67 = arith.constant 8 : index
    %c0_68 = arith.constant 0 : index
    %130 = vector.load %arg16[%c8_67, %c0_68] : memref<80x32xf32, #tpu.memory_space<vmem>>, vector<64x32xf32>
    %131 = arith.truncf %130 : vector<64x32xf32> to vector<64x32xbf16>
    %c1_69 = arith.constant 1 : index
    %c0_70 = arith.constant 0 : index
    %c0_71 = arith.constant 0 : index
    %132 = vector.load %arg4[%c1_69, %c0_70, %c0_71] : memref<3x32x64xbf16, #tpu.memory_space<vmem>>, vector<1x32x64xbf16>
    %133 = vector.shape_cast %132 : vector<1x32x64xbf16> to vector<32x64xbf16>
    %cst_72 = arith.constant dense<0.000000e+00> : vector<64x64xf32>
    %134 = tpu.matmul %131, %133, %cst_72 {dimension_numbers = #tpu.dot_dimension_numbers<[1], [0], [0], [1], [0, 0, 1, 1], [], []>} : vector<64x32xbf16>, vector<32x64xbf16>, vector<64x64xf32> -> vector<64x64xf32>
    %135 = arith.addf %129, %134 : vector<64x64xf32>
    %c9_73 = arith.constant 9 : index
    %c0_74 = arith.constant 0 : index
    %136 = vector.load %arg16[%c9_73, %c0_74] : memref<80x32xf32, #tpu.memory_space<vmem>>, vector<64x32xf32>
    %c1_i32_75 = arith.constant 1 : i32
    %137 = vector.broadcast %c1_i32_75 : i32 to vector<64x1xi32>
    %138 = arith.addi %109, %137 : vector<64x1xi32>
    %c0_i32_76 = arith.constant 0 : i32
    %139 = vector.broadcast %c0_i32_76 : i32 to vector<64x1xi32>
    %140 = arith.cmpi sge, %138, %139 : vector<64x1xi32>
    %c1_i32_77 = arith.constant 1 : i32
    %141 = vector.broadcast %c1_i32_77 : i32 to vector<64x1xi32>
    %142 = arith.addi %109, %141 : vector<64x1xi32>
    %c32_i32_78 = arith.constant 32 : i32
    %143 = vector.broadcast %c32_i32_78 : i32 to vector<64x1xi32>
    %144 = arith.cmpi slt, %142, %143 : vector<64x1xi32>
    %145 = arith.andi %140, %144 : vector<64x1xi1>
    %cst_79 = arith.constant 0.000000e+00 : f32
    %146 = vector.shape_cast %145 : vector<64x1xi1> to vector<64x1xi1>
    %147 = vector.broadcast %146 : vector<64x1xi1> to vector<64x32xi1>
    %148 = vector.broadcast %cst_79 : f32 to vector<64x32xf32>
    %149 = arith.select %147, %136, %148 : vector<64x32xi1>, vector<64x32xf32>
    %150 = arith.truncf %149 : vector<64x32xf32> to vector<64x32xbf16>
    %c2_80 = arith.constant 2 : index
    %c0_81 = arith.constant 0 : index
    %c0_82 = arith.constant 0 : index
    %151 = vector.load %arg4[%c2_80, %c0_81, %c0_82] : memref<3x32x64xbf16, #tpu.memory_space<vmem>>, vector<1x32x64xbf16>
    %152 = vector.shape_cast %151 : vector<1x32x64xbf16> to vector<32x64xbf16>
    %cst_83 = arith.constant dense<0.000000e+00> : vector<64x64xf32>
    %153 = tpu.matmul %150, %152, %cst_83 {dimension_numbers = #tpu.dot_dimension_numbers<[1], [0], [0], [1], [0, 0, 1, 1], [], []>} : vector<64x32xbf16>, vector<32x64xbf16>, vector<64x64xf32> -> vector<64x64xf32>
    %154 = arith.addf %135, %153 : vector<64x64xf32>
    %c0_84 = arith.constant 0 : index
    %c0_85 = arith.constant 0 : index
    %155 = vector.load %arg5[%c0_84, %c0_85] : memref<1x64xf32, #tpu.memory_space<vmem>>, vector<1x64xf32>
    %156 = vector.broadcast %155 : vector<1x64xf32> to vector<64x64xf32>
    %157 = arith.mulf %154, %156 : vector<64x64xf32>
    %c0_86 = arith.constant 0 : index
    %c0_87 = arith.constant 0 : index
    %158 = vector.load %arg6[%c0_86, %c0_87] : memref<1x64xf32, #tpu.memory_space<vmem>>, vector<1x64xf32>
    %159 = vector.broadcast %158 : vector<1x64xf32> to vector<64x64xf32>
    %160 = arith.addf %157, %159 : vector<64x64xf32>
    %cst_88 = arith.constant 0.000000e+00 : f32
    %161 = vector.broadcast %cst_88 : f32 to vector<64x64xf32>
    %162 = arith.maximumf %160, %161 : vector<64x64xf32>
    %163 = vector.shape_cast %162 : vector<64x64xf32> to vector<32x2x64xf32>
    %cst_89 = arith.constant dense<0xFF800000> : vector<32x64xf32>
    %164 = vector.multi_reduction <maximumf>, %163, %cst_89 [1] : vector<32x2x64xf32> to vector<32x64xf32>
    %cst_90 = arith.constant 0.000000e+00 : f32
    %165 = vector.broadcast %cst_90 : f32 to vector<8x64xf32>
    %c0_91 = arith.constant 0 : index
    %c0_92 = arith.constant 0 : index
    %166 = vector.load %arg17[%c0_91, %c0_92] : memref<48x64xf32, #tpu.memory_space<vmem>>, vector<8x64xf32>
    tpu.vector_store %arg17[%c0_91, %c0_92], %165 {strides = array<i32>} : memref<48x64xf32, #tpu.memory_space<vmem>>, vector<8x64xf32>,
    %cst_93 = arith.constant 0.000000e+00 : f32
    %167 = vector.broadcast %cst_93 : f32 to vector<8x64xf32>
    %c40 = arith.constant 40 : index
    %c0_94 = arith.constant 0 : index
    %168 = vector.load %arg17[%c40, %c0_94] : memref<48x64xf32, #tpu.memory_space<vmem>>, vector<8x64xf32>
    tpu.vector_store %arg17[%c40, %c0_94], %167 {strides = array<i32>} : memref<48x64xf32, #tpu.memory_space<vmem>>, vector<8x64xf32>,
    %c8_95 = arith.constant 8 : index
    %c0_96 = arith.constant 0 : index
    %169 = vector.load %arg17[%c8_95, %c0_96] : memref<48x64xf32, #tpu.memory_space<vmem>>, vector<32x64xf32>
    tpu.vector_store %arg17[%c8_95, %c0_96], %164 {strides = array<i32>} : memref<48x64xf32, #tpu.memory_space<vmem>>, vector<32x64xf32>,
    %170 = tpu.iota {dimensions = array<i32: 0>} : vector<32x1xi32>
    %c15_i32 = arith.constant 15 : i32
    %171 = vector.broadcast %c15_i32 : i32 to vector<32x1xi32>
    %172 = arith.andi %170, %171 : vector<32x1xi32>
    %cst_97 = arith.constant 0.000000e+00 : f32
    %173 = vector.broadcast %cst_97 : f32 to vector<32x128xf32>
    %c7_98 = arith.constant 7 : index
    %c0_99 = arith.constant 0 : index
    %174 = vector.load %arg17[%c7_98, %c0_99] : memref<48x64xf32, #tpu.memory_space<vmem>>, vector<32x64xf32>
    %c-1_i32_100 = arith.constant -1 : i32
    %175 = vector.broadcast %c-1_i32_100 : i32 to vector<32x1xi32>
    %176 = arith.addi %172, %175 : vector<32x1xi32>
    %c0_i32_101 = arith.constant 0 : i32
    %177 = vector.broadcast %c0_i32_101 : i32 to vector<32x1xi32>
    %178 = arith.cmpi sge, %176, %177 : vector<32x1xi32>
    %c-1_i32_102 = arith.constant -1 : i32
    %179 = vector.broadcast %c-1_i32_102 : i32 to vector<32x1xi32>
    %180 = arith.addi %172, %179 : vector<32x1xi32>
    %c16_i32 = arith.constant 16 : i32
    %181 = vector.broadcast %c16_i32 : i32 to vector<32x1xi32>
    %182 = arith.cmpi slt, %180, %181 : vector<32x1xi32>
    %183 = arith.andi %178, %182 : vector<32x1xi1>
    %cst_103 = arith.constant 0.000000e+00 : f32
    %184 = vector.shape_cast %183 : vector<32x1xi1> to vector<32x1xi1>
    %185 = vector.broadcast %184 : vector<32x1xi1> to vector<32x64xi1>
    %186 = vector.broadcast %cst_103 : f32 to vector<32x64xf32>
    %187 = arith.select %185, %174, %186 : vector<32x64xi1>, vector<32x64xf32>
    %188 = arith.truncf %187 : vector<32x64xf32> to vector<32x64xbf16>
    %c0_104 = arith.constant 0 : index
    %c0_105 = arith.constant 0 : index
    %c0_106 = arith.constant 0 : index
    %189 = vector.load %arg7[%c0_104, %c0_105, %c0_106] : memref<3x64x128xbf16, #tpu.memory_space<vmem>>, vector<1x64x128xbf16>
    %190 = vector.shape_cast %189 : vector<1x64x128xbf16> to vector<64x128xbf16>
    %cst_107 = arith.constant dense<0.000000e+00> : vector<32x128xf32>
    %191 = tpu.matmul %188, %190, %cst_107 {dimension_numbers = #tpu.dot_dimension_numbers<[1], [0], [0], [1], [0, 0, 1, 1], [], []>} : vector<32x64xbf16>, vector<64x128xbf16>, vector<32x128xf32> -> vector<32x128xf32>
    %192 = arith.addf %173, %191 : vector<32x128xf32>
    %c8_108 = arith.constant 8 : index
    %c0_109 = arith.constant 0 : index
    %193 = vector.load %arg17[%c8_108, %c0_109] : memref<48x64xf32, #tpu.memory_space<vmem>>, vector<32x64xf32>
    %194 = arith.truncf %193 : vector<32x64xf32> to vector<32x64xbf16>
    %c1_110 = arith.constant 1 : index
    %c0_111 = arith.constant 0 : index
    %c0_112 = arith.constant 0 : index
    %195 = vector.load %arg7[%c1_110, %c0_111, %c0_112] : memref<3x64x128xbf16, #tpu.memory_space<vmem>>, vector<1x64x128xbf16>
    %196 = vector.shape_cast %195 : vector<1x64x128xbf16> to vector<64x128xbf16>
    %cst_113 = arith.constant dense<0.000000e+00> : vector<32x128xf32>
    %197 = tpu.matmul %194, %196, %cst_113 {dimension_numbers = #tpu.dot_dimension_numbers<[1], [0], [0], [1], [0, 0, 1, 1], [], []>} : vector<32x64xbf16>, vector<64x128xbf16>, vector<32x128xf32> -> vector<32x128xf32>
    %198 = arith.addf %192, %197 : vector<32x128xf32>
    %c9_114 = arith.constant 9 : index
    %c0_115 = arith.constant 0 : index
    %199 = vector.load %arg17[%c9_114, %c0_115] : memref<48x64xf32, #tpu.memory_space<vmem>>, vector<32x64xf32>
    %c1_i32_116 = arith.constant 1 : i32
    %200 = vector.broadcast %c1_i32_116 : i32 to vector<32x1xi32>
    %201 = arith.addi %172, %200 : vector<32x1xi32>
    %c0_i32_117 = arith.constant 0 : i32
    %202 = vector.broadcast %c0_i32_117 : i32 to vector<32x1xi32>
    %203 = arith.cmpi sge, %201, %202 : vector<32x1xi32>
    %c1_i32_118 = arith.constant 1 : i32
    %204 = vector.broadcast %c1_i32_118 : i32 to vector<32x1xi32>
    %205 = arith.addi %172, %204 : vector<32x1xi32>
    %c16_i32_119 = arith.constant 16 : i32
    %206 = vector.broadcast %c16_i32_119 : i32 to vector<32x1xi32>
    %207 = arith.cmpi slt, %205, %206 : vector<32x1xi32>
    %208 = arith.andi %203, %207 : vector<32x1xi1>
    %cst_120 = arith.constant 0.000000e+00 : f32
    %209 = vector.shape_cast %208 : vector<32x1xi1> to vector<32x1xi1>
    %210 = vector.broadcast %209 : vector<32x1xi1> to vector<32x64xi1>
    %211 = vector.broadcast %cst_120 : f32 to vector<32x64xf32>
    %212 = arith.select %210, %199, %211 : vector<32x64xi1>, vector<32x64xf32>
    %213 = arith.truncf %212 : vector<32x64xf32> to vector<32x64xbf16>
    %c2_121 = arith.constant 2 : index
    %c0_122 = arith.constant 0 : index
    %c0_123 = arith.constant 0 : index
    %214 = vector.load %arg7[%c2_121, %c0_122, %c0_123] : memref<3x64x128xbf16, #tpu.memory_space<vmem>>, vector<1x64x128xbf16>
    %215 = vector.shape_cast %214 : vector<1x64x128xbf16> to vector<64x128xbf16>
    %cst_124 = arith.constant dense<0.000000e+00> : vector<32x128xf32>
    %216 = tpu.matmul %213, %215, %cst_124 {dimension_numbers = #tpu.dot_dimension_numbers<[1], [0], [0], [1], [0, 0, 1, 1], [], []>} : vector<32x64xbf16>, vector<64x128xbf16>, vector<32x128xf32> -> vector<32x128xf32>
    %217 = arith.addf %198, %216 : vector<32x128xf32>
    %c0_125 = arith.constant 0 : index
    %c0_126 = arith.constant 0 : index
    %218 = vector.load %arg8[%c0_125, %c0_126] : memref<1x128xf32, #tpu.memory_space<vmem>>, vector<1x128xf32>
    %219 = vector.broadcast %218 : vector<1x128xf32> to vector<32x128xf32>
    %220 = arith.mulf %217, %219 : vector<32x128xf32>
    %c0_127 = arith.constant 0 : index
    %c0_128 = arith.constant 0 : index
    %221 = vector.load %arg9[%c0_127, %c0_128] : memref<1x128xf32, #tpu.memory_space<vmem>>, vector<1x128xf32>
    %222 = vector.broadcast %221 : vector<1x128xf32> to vector<32x128xf32>
    %223 = arith.addf %220, %222 : vector<32x128xf32>
    %cst_129 = arith.constant 0.000000e+00 : f32
    %224 = vector.broadcast %cst_129 : f32 to vector<32x128xf32>
    %225 = arith.maximumf %223, %224 : vector<32x128xf32>
    %226 = vector.shape_cast %225 : vector<32x128xf32> to vector<16x2x128xf32>
    %cst_130 = arith.constant dense<0xFF800000> : vector<16x128xf32>
    %227 = vector.multi_reduction <maximumf>, %226, %cst_130 [1] : vector<16x2x128xf32> to vector<16x128xf32>
    %c0_131 = arith.constant 0 : index
    %c0_132 = arith.constant 0 : index
    %228 = vector.load %arg18[%c0_131, %c0_132] : memref<16x128xf32, #tpu.memory_space<vmem>>, vector<16x128xf32>
    tpu.vector_store %arg18[%c0_131, %c0_132], %227 {strides = array<i32>} : memref<16x128xf32, #tpu.memory_space<vmem>>, vector<16x128xf32>,
    %c0_133 = arith.constant 0 : index
    %c0_134 = arith.constant 0 : index
    %229 = vector.load %arg18[%c0_133, %c0_134] : memref<16x128xf32, #tpu.memory_space<vmem>>, vector<1x128xf32>
    %c0_135 = arith.constant 0 : index
    %c0_136 = arith.constant 0 : index
    %230 = vector.load %arg19[%c0_135, %c0_136] : memref<2x1024xf32, #tpu.memory_space<vmem>>, vector<1x128xf32>
    tpu.vector_store %arg19[%c0_135, %c0_136], %229 {strides = array<i32>} : memref<2x1024xf32, #tpu.memory_space<vmem>>, vector<1x128xf32>,
    %c1_137 = arith.constant 1 : index
    %c0_138 = arith.constant 0 : index
    %231 = vector.load %arg18[%c1_137, %c0_138] : memref<16x128xf32, #tpu.memory_space<vmem>>, vector<1x128xf32>
    %c0_139 = arith.constant 0 : index
    %c128 = arith.constant 128 : index
    %232 = vector.load %arg19[%c0_139, %c128] : memref<2x1024xf32, #tpu.memory_space<vmem>>, vector<1x128xf32>
    tpu.vector_store %arg19[%c0_139, %c128], %231 {strides = array<i32>} : memref<2x1024xf32, #tpu.memory_space<vmem>>, vector<1x128xf32>,
    %c2_140 = arith.constant 2 : index
    %c0_141 = arith.constant 0 : index
    %233 = vector.load %arg18[%c2_140, %c0_141] : memref<16x128xf32, #tpu.memory_space<vmem>>, vector<1x128xf32>
    %c0_142 = arith.constant 0 : index
    %c256 = arith.constant 256 : index
    %234 = vector.load %arg19[%c0_142, %c256] : memref<2x1024xf32, #tpu.memory_space<vmem>>, vector<1x128xf32>
    tpu.vector_store %arg19[%c0_142, %c256], %233 {strides = array<i32>} : memref<2x1024xf32, #tpu.memory_space<vmem>>, vector<1x128xf32>,
    %c3_143 = arith.constant 3 : index
    %c0_144 = arith.constant 0 : index
    %235 = vector.load %arg18[%c3_143, %c0_144] : memref<16x128xf32, #tpu.memory_space<vmem>>, vector<1x128xf32>
    %c0_145 = arith.constant 0 : index
    %c384 = arith.constant 384 : index
    %236 = vector.load %arg19[%c0_145, %c384] : memref<2x1024xf32, #tpu.memory_space<vmem>>, vector<1x128xf32>
    tpu.vector_store %arg19[%c0_145, %c384], %235 {strides = array<i32>} : memref<2x1024xf32, #tpu.memory_space<vmem>>, vector<1x128xf32>,
    %c4_146 = arith.constant 4 : index
    %c0_147 = arith.constant 0 : index
    %237 = vector.load %arg18[%c4_146, %c0_147] : memref<16x128xf32, #tpu.memory_space<vmem>>, vector<1x128xf32>
    %c0_148 = arith.constant 0 : index
    %c512 = arith.constant 512 : index
    %238 = vector.load %arg19[%c0_148, %c512] : memref<2x1024xf32, #tpu.memory_space<vmem>>, vector<1x128xf32>
    tpu.vector_store %arg19[%c0_148, %c512], %237 {strides = array<i32>} : memref<2x1024xf32, #tpu.memory_space<vmem>>, vector<1x128xf32>,
    %c5 = arith.constant 5 : index
    %c0_149 = arith.constant 0 : index
    %239 = vector.load %arg18[%c5, %c0_149] : memref<16x128xf32, #tpu.memory_space<vmem>>, vector<1x128xf32>
    %c0_150 = arith.constant 0 : index
    %c640 = arith.constant 640 : index
    %240 = vector.load %arg19[%c0_150, %c640] : memref<2x1024xf32, #tpu.memory_space<vmem>>, vector<1x128xf32>
    tpu.vector_store %arg19[%c0_150, %c640], %239 {strides = array<i32>} : memref<2x1024xf32, #tpu.memory_space<vmem>>, vector<1x128xf32>,
    %c6_151 = arith.constant 6 : index
    %c0_152 = arith.constant 0 : index
    %241 = vector.load %arg18[%c6_151, %c0_152] : memref<16x128xf32, #tpu.memory_space<vmem>>, vector<1x128xf32>
    %c0_153 = arith.constant 0 : index
    %c768 = arith.constant 768 : index
    %242 = vector.load %arg19[%c0_153, %c768] : memref<2x1024xf32, #tpu.memory_space<vmem>>, vector<1x128xf32>
    tpu.vector_store %arg19[%c0_153, %c768], %241 {strides = array<i32>} : memref<2x1024xf32, #tpu.memory_space<vmem>>, vector<1x128xf32>,
    %c7_154 = arith.constant 7 : index
    %c0_155 = arith.constant 0 : index
    %243 = vector.load %arg18[%c7_154, %c0_155] : memref<16x128xf32, #tpu.memory_space<vmem>>, vector<1x128xf32>
    %c0_156 = arith.constant 0 : index
    %c896 = arith.constant 896 : index
    %244 = vector.load %arg19[%c0_156, %c896] : memref<2x1024xf32, #tpu.memory_space<vmem>>, vector<1x128xf32>
    tpu.vector_store %arg19[%c0_156, %c896], %243 {strides = array<i32>} : memref<2x1024xf32, #tpu.memory_space<vmem>>, vector<1x128xf32>,
    %c8_157 = arith.constant 8 : index
    %c0_158 = arith.constant 0 : index
    %245 = vector.load %arg18[%c8_157, %c0_158] : memref<16x128xf32, #tpu.memory_space<vmem>>, vector<1x128xf32>
    %c1_159 = arith.constant 1 : index
    %c0_160 = arith.constant 0 : index
    %246 = vector.load %arg19[%c1_159, %c0_160] : memref<2x1024xf32, #tpu.memory_space<vmem>>, vector<1x128xf32>
    tpu.vector_store %arg19[%c1_159, %c0_160], %245 {strides = array<i32>} : memref<2x1024xf32, #tpu.memory_space<vmem>>, vector<1x128xf32>,
    %c9_161 = arith.constant 9 : index
    %c0_162 = arith.constant 0 : index
    %247 = vector.load %arg18[%c9_161, %c0_162] : memref<16x128xf32, #tpu.memory_space<vmem>>, vector<1x128xf32>
    %c1_163 = arith.constant 1 : index
    %c128_164 = arith.constant 128 : index
    %248 = vector.load %arg19[%c1_163, %c128_164] : memref<2x1024xf32, #tpu.memory_space<vmem>>, vector<1x128xf32>
    tpu.vector_store %arg19[%c1_163, %c128_164], %247 {strides = array<i32>} : memref<2x1024xf32, #tpu.memory_space<vmem>>, vector<1x128xf32>,
    %c10_165 = arith.constant 10 : index
    %c0_166 = arith.constant 0 : index
    %249 = vector.load %arg18[%c10_165, %c0_166] : memref<16x128xf32, #tpu.memory_space<vmem>>, vector<1x128xf32>
    %c1_167 = arith.constant 1 : index
    %c256_168 = arith.constant 256 : index
    %250 = vector.load %arg19[%c1_167, %c256_168] : memref<2x1024xf32, #tpu.memory_space<vmem>>, vector<1x128xf32>
    tpu.vector_store %arg19[%c1_167, %c256_168], %249 {strides = array<i32>} : memref<2x1024xf32, #tpu.memory_space<vmem>>, vector<1x128xf32>,
    %c11 = arith.constant 11 : index
    %c0_169 = arith.constant 0 : index
    %251 = vector.load %arg18[%c11, %c0_169] : memref<16x128xf32, #tpu.memory_space<vmem>>, vector<1x128xf32>
    %c1_170 = arith.constant 1 : index
    %c384_171 = arith.constant 384 : index
    %252 = vector.load %arg19[%c1_170, %c384_171] : memref<2x1024xf32, #tpu.memory_space<vmem>>, vector<1x128xf32>
    tpu.vector_store %arg19[%c1_170, %c384_171], %251 {strides = array<i32>} : memref<2x1024xf32, #tpu.memory_space<vmem>>, vector<1x128xf32>,
    %c12 = arith.constant 12 : index
    %c0_172 = arith.constant 0 : index
    %253 = vector.load %arg18[%c12, %c0_172] : memref<16x128xf32, #tpu.memory_space<vmem>>, vector<1x128xf32>
    %c1_173 = arith.constant 1 : index
    %c512_174 = arith.constant 512 : index
    %254 = vector.load %arg19[%c1_173, %c512_174] : memref<2x1024xf32, #tpu.memory_space<vmem>>, vector<1x128xf32>
    tpu.vector_store %arg19[%c1_173, %c512_174], %253 {strides = array<i32>} : memref<2x1024xf32, #tpu.memory_space<vmem>>, vector<1x128xf32>,
    %c13 = arith.constant 13 : index
    %c0_175 = arith.constant 0 : index
    %255 = vector.load %arg18[%c13, %c0_175] : memref<16x128xf32, #tpu.memory_space<vmem>>, vector<1x128xf32>
    %c1_176 = arith.constant 1 : index
    %c640_177 = arith.constant 640 : index
    %256 = vector.load %arg19[%c1_176, %c640_177] : memref<2x1024xf32, #tpu.memory_space<vmem>>, vector<1x128xf32>
    tpu.vector_store %arg19[%c1_176, %c640_177], %255 {strides = array<i32>} : memref<2x1024xf32, #tpu.memory_space<vmem>>, vector<1x128xf32>,
    %c14 = arith.constant 14 : index
    %c0_178 = arith.constant 0 : index
    %257 = vector.load %arg18[%c14, %c0_178] : memref<16x128xf32, #tpu.memory_space<vmem>>, vector<1x128xf32>
    %c1_179 = arith.constant 1 : index
    %c768_180 = arith.constant 768 : index
    %258 = vector.load %arg19[%c1_179, %c768_180] : memref<2x1024xf32, #tpu.memory_space<vmem>>, vector<1x128xf32>
    tpu.vector_store %arg19[%c1_179, %c768_180], %257 {strides = array<i32>} : memref<2x1024xf32, #tpu.memory_space<vmem>>, vector<1x128xf32>,
    %c15 = arith.constant 15 : index
    %c0_181 = arith.constant 0 : index
    %259 = vector.load %arg18[%c15, %c0_181] : memref<16x128xf32, #tpu.memory_space<vmem>>, vector<1x128xf32>
    %c1_182 = arith.constant 1 : index
    %c896_183 = arith.constant 896 : index
    %260 = vector.load %arg19[%c1_182, %c896_183] : memref<2x1024xf32, #tpu.memory_space<vmem>>, vector<1x128xf32>
    tpu.vector_store %arg19[%c1_182, %c896_183], %259 {strides = array<i32>} : memref<2x1024xf32, #tpu.memory_space<vmem>>, vector<1x128xf32>,
    %c0_184 = arith.constant 0 : index
    %c0_185 = arith.constant 0 : index
    %261 = vector.load %arg19[%c0_184, %c0_185] : memref<2x1024xf32, #tpu.memory_space<vmem>>, vector<2x1024xf32>
    %262 = arith.truncf %261 : vector<2x1024xf32> to vector<2x1024xbf16>
    %c0_186 = arith.constant 0 : index
    %c0_187 = arith.constant 0 : index
    %263 = vector.load %arg10[%c0_186, %c0_187] : memref<1024x128xbf16, #tpu.memory_space<vmem>>, vector<1024x128xbf16>
    %cst_188 = arith.constant dense<0.000000e+00> : vector<2x128xf32>
    %264 = tpu.matmul %262, %263, %cst_188 {dimension_numbers = #tpu.dot_dimension_numbers<[1], [0], [0], [1], [0, 0, 1, 1], [], []>} : vector<2x1024xbf16>, vector<1024x128xbf16>, vector<2x128xf32> -> vector<2x128xf32>
    %c0_189 = arith.constant 0 : index
    %c0_190 = arith.constant 0 : index
    %265 = vector.load %arg11[%c0_189, %c0_190] : memref<1x128xf32, #tpu.memory_space<vmem>>, vector<1x128xf32>
    %266 = vector.broadcast %265 : vector<1x128xf32> to vector<2x128xf32>
    %267 = arith.addf %264, %266 : vector<2x128xf32>
    %cst_191 = arith.constant 0.000000e+00 : f32
    %268 = vector.broadcast %cst_191 : f32 to vector<2x128xf32>
    %269 = arith.maximumf %267, %268 : vector<2x128xf32>
    %270 = arith.truncf %269 : vector<2x128xf32> to vector<2x128xbf16>
    %c0_192 = arith.constant 0 : index
    %c0_193 = arith.constant 0 : index
    %271 = vector.load %arg12[%c0_192, %c0_193] : memref<128x1xbf16, #tpu.memory_space<vmem>>, vector<128x1xbf16>
    %cst_194 = arith.constant dense<0.000000e+00> : vector<2x1xf32>
    %272 = tpu.matmul %270, %271, %cst_194 {dimension_numbers = #tpu.dot_dimension_numbers<[1], [0], [0], [1], [0, 0, 1, 1], [], []>} : vector<2x128xbf16>, vector<128x1xbf16>, vector<2x1xf32> -> vector<2x1xf32>
    %c0_195 = arith.constant 0 : index
    %c0_196 = arith.constant 0 : index
    %273 = vector.load %arg13[%c0_195, %c0_196] : memref<1x1xf32, #tpu.memory_space<vmem>>, vector<1x1xf32>
    %274 = vector.broadcast %273 : vector<1x1xf32> to vector<2x1xf32>
    %275 = arith.addf %272, %274 : vector<2x1xf32>
    %c0_197 = arith.constant 0 : index
    %c0_198 = arith.constant 0 : index
    %276 = vector.load %arg14[%c0_197, %c0_198] : memref<2x1xf32, #tpu.memory_space<vmem>>, vector<2x1xf32>
    tpu.vector_store %arg14[%c0_197, %c0_198], %275 {strides = array<i32>} : memref<2x1xf32, #tpu.memory_space<vmem>>, vector<2x1xf32>,
    return
  }
}

</mosaic_0001>

<llo_original>
// kernel: tpu_custom_call.1
$region0: #{tpu_custom_call.1}
  #allocation0 [shape = 'u32[]', space=smem, size = 0x4, offset = 0x4, fixed_abs, tag = 'smem constant byte address 0x4 - core index']
  #allocation1 [shape = 'u32[144,128]{1,0:T(1,128)}', space=vmem, size = 0x12000, scoped, tag = 'internal scratch']
  #allocation2 [shape = 'f32[144,12]{1,0:T(8,128)}', space=vmem, size = 0x12000, scoped, tag = 'scratch operand']
  #allocation3 [shape = 'f32[80,32]{1,0:T(8,128)}', space=vmem, size = 0xa000, scoped, tag = 'scratch operand']
  #allocation4 [shape = 'f32[48,64]{1,0:T(8,128)}', space=vmem, size = 0x6000, scoped, tag = 'scratch operand']
  #allocation5 [shape = 'f32[16,128]{1,0:T(8,128)}', space=vmem, size = 0x2000, scoped, tag = 'scratch operand']
  #allocation6 [shape = 'f32[2,1024]{1,0:T(2,128)}', space=vmem, size = 0x2000, scoped, tag = 'scratch operand']
  #allocation7 [shape = 'f32[1,1]{1,0:T(1,128)S(1)}', space=vmem, size = 0x200, scoped, tag = 'scoped memory for tpu_custom_call.1']
  %s0 = inlined_call_operand.vmem [shape: f32[128,12], index: 0, kind: input, shape index: {}]
  %s1 = inlined_call_operand.vmem [shape: bf16[5,12,32], index: 1, kind: input, shape index: {}]
  %s2 = inlined_call_operand.vmem [shape: f32[1,32], index: 2, kind: input, shape index: {}]
  %s3 = inlined_call_operand.vmem [shape: f32[1,32], index: 3, kind: input, shape index: {}]
  %s4 = inlined_call_operand.vmem [shape: bf16[3,32,64], index: 4, kind: input, shape index: {}]
  %s5 = inlined_call_operand.vmem [shape: f32[1,64], index: 5, kind: input, shape index: {}]
  %s6 = inlined_call_operand.vmem [shape: f32[1,64], index: 6, kind: input, shape index: {}]
  %s7 = inlined_call_operand.vmem [shape: bf16[3,64,128], index: 7, kind: input, shape index: {}]
  %s8 = inlined_call_operand.vmem [shape: f32[1,128], index: 8, kind: input, shape index: {}]
  %s9 = inlined_call_operand.vmem [shape: f32[1,128], index: 9, kind: input, shape index: {}]
  %s10 = inlined_call_operand.hbm [shape: bf16[1024,128], index: 10, kind: input, shape index: {}]
  %s11 = inlined_call_operand.vmem [shape: f32[1,128], index: 11, kind: input, shape index: {}]
  %s12 = inlined_call_operand.vmem [shape: bf16[128,1], index: 12, kind: input, shape index: {}]
  %s13 = inlined_call_operand.<no memory space> [shape: f32[1,1], index: 13, kind: input, shape index: {}]
  %s14 = inlined_call_operand.vmem [shape: f32[2,1], index: 14, kind: output, shape index: {}]
  %s15 = sld [smem:[#allocation0]]
  $region70: #{tpu_custom_call.1} parent=0
    _
  %s17 = ssub.s32 1, %s15
  %s18 = scalar_select 0, %s17, %s15
  %v19 = vstv %s13
  %20 = vst [vmem:[#allocation7] sm:$0x1] %v19
  $region1: #{tpu_custom_call.1} parent=0
    #allocation8 [shape = 'u8[262144]{0}', space=vmem, size = 0x40000, scoped, tag = 'input window, operand 10, single buffered']
    #allocation9 [shape = 's32[1]{0}', space=sflag, size = 0x4, scoped, tag = 'scoped memory for tpu_custom_call.1']
    %21 = vsyncpa [#allocation9], 0
    // Predicated region
    $region2: #{tpu_custom_call.1} parent=1 // pred_check
      _
    $region3: #{tpu_custom_call.1} parent=1 // pred_check_branch
      %23 = sbr.rel (0) target = $region5
    $region4: #{tpu_custom_call.1} parent=1 // pred_region
      _
    $region5: #{tpu_custom_call.1} parent=1 // pred_fallthru
      _
    // Predicated region
    $region6: #{tpu_custom_call.1} parent=1 // pred_check
      _
    $region7: #{tpu_custom_call.1} parent=1 // pred_check_branch
      %25 = sbr.rel (0) target = $region9
    $region8: #{tpu_custom_call.1} parent=1 // pred_region
      _
    $region9: #{tpu_custom_call.1} parent=1 // pred_fallthru
      _
    // Predicated region
    $region10: #{tpu_custom_call.1} parent=1 // pred_check
      _
    $region11: #{tpu_custom_call.1} parent=1 // pred_check_branch
      %27 = sbr.rel (0) target = $region13
    $region12: #{tpu_custom_call.1} parent=1 // pred_region
      _
    $region13: #{tpu_custom_call.1} parent=1 // pred_fallthru
      _
    // Predicated region
    $region14: #{tpu_custom_call.1} parent=1 // pred_check
      _
    $region15: #{tpu_custom_call.1} parent=1 // pred_check_branch
      %29 = sbr.rel (0) target = $region17
    $region16: #{tpu_custom_call.1} parent=1 // pred_region
      _
    $region17: #{tpu_custom_call.1} parent=1 // pred_fallthru
      _
    // Predicated region
    $region18: #{tpu_custom_call.1} parent=1 // pred_check
      _
    $region19: #{tpu_custom_call.1} parent=1 // pred_check_branch
      %31 = sbr.rel (0) target = $region21
    $region20: #{tpu_custom_call.1} parent=1 // pred_region
      _
    $region21: #{tpu_custom_call.1} parent=1 // pred_fallthru
      _
    // Predicated region
    $region22: #{tpu_custom_call.1} parent=1 // pred_check
      _
    $region23: #{tpu_custom_call.1} parent=1 // pred_check_branch
      %33 = sbr.rel (0) target = $region25
    $region24: #{tpu_custom_call.1} parent=1 // pred_region
      _
    $region25: #{tpu_custom_call.1} parent=1 // pred_fallthru
      _
    // Predicated region
    $region26: #{tpu_custom_call.1} parent=1 // pred_check
      _
    $region27: #{tpu_custom_call.1} parent=1 // pred_check_branch
      %35 = sbr.rel (0) target = $region29
    $region28: #{tpu_custom_call.1} parent=1 // pred_region
      _
    $region29: #{tpu_custom_call.1} parent=1 // pred_fallthru
      _
    // Predicated region
    $region30: #{tpu_custom_call.1} parent=1 // pred_check
      _
    $region31: #{tpu_custom_call.1} parent=1 // pred_check_branch
      %37 = sbr.rel (0) target = $region33
    $region32: #{tpu_custom_call.1} parent=1 // pred_region
      _
    $region33: #{tpu_custom_call.1} parent=1 // pred_fallthru
      _
    // Predicated region
    $region34: #{tpu_custom_call.1} parent=1 // pred_check
      _
    $region35: #{tpu_custom_call.1} parent=1 // pred_check_branch
      %39 = sbr.rel (0) target = $region37
    $region36: #{tpu_custom_call.1} parent=1 // pred_region
      _
    $region37: #{tpu_custom_call.1} parent=1 // pred_fallthru
      _
    // Predicated region
    $region38: #{tpu_custom_call.1} parent=1 // pred_check
      _
    $region39: #{tpu_custom_call.1} parent=1 // pred_check_branch
      %41 = sbr.rel (0) target = $region41
    $region40: #{tpu_custom_call.1} parent=1 // pred_region
      _
    $region41: #{tpu_custom_call.1} parent=1 // pred_fallthru
      _
    // Predicated region
    $region42: #{tpu_custom_call.1} parent=1 // pred_check
      _
    $region43: #{tpu_custom_call.1} parent=1 // pred_check_branch
      %43 = sbr.rel (0) target = $region45
    $region44: #{tpu_custom_call.1} parent=1 // pred_region
      %s45 = ssub.s32 8192, 8192
      %46 = vsyncadd [#allocation9], %s45
      %s47 = sshll.u32 [#allocation8], 4
      %s48 = int_to_ptr.vmem [resolvable:$true] %s47
      %53 = dma.hbm_to_vmem [thread:$0]  %s10, 8192, %s48, [#allocation9], 64, 64, 4
    $region45: #{tpu_custom_call.1} parent=1 // pred_fallthru
      _
    // Predicated region
    $region46: #{tpu_custom_call.1} parent=1 // pred_check
      _
    $region47: #{tpu_custom_call.1} parent=1 // pred_check_branch
      %55 = sbr.rel (0) target = $region49
    $region48: #{tpu_custom_call.1} parent=1 // pred_region
      _
    $region49: #{tpu_custom_call.1} parent=1 // pred_fallthru
      _
    // Predicated region
    $region50: #{tpu_custom_call.1} parent=1 // pred_check
      _
    $region51: #{tpu_custom_call.1} parent=1 // pred_check_branch
      %57 = sbr.rel (0) target = $region53
    $region52: #{tpu_custom_call.1} parent=1 // pred_region
      _
    $region53: #{tpu_custom_call.1} parent=1 // pred_fallthru
      _
    // Predicated region
    $region54: #{tpu_custom_call.1} parent=1 // pred_check
      _
    $region55: #{tpu_custom_call.1} parent=1 // pred_check_branch
      %59 = sbr.rel (0) target = $region57
    $region56: #{tpu_custom_call.1} parent=1 // pred_region
      _
    $region57: #{tpu_custom_call.1} parent=1 // pred_fallthru
      _
    // Predicated region
    $region58: #{tpu_custom_call.1} parent=1 // pred_check
      _
    $region59: #{tpu_custom_call.1} parent=1 // pred_check_branch
      %61 = sbr.rel (0) target = $region61
    $region60: #{tpu_custom_call.1} parent=1 // pred_region
      %62 = dma.done [#allocation9], 8192
    $region61: #{tpu_custom_call.1} parent=1 // pred_fallthru
      _
    %vm64 = vcmask 97280
    %65 = vst.msk [vmem:[#allocation2] sm:$0xff] %vm64, 0.0
    %66 = vst.msk [vmem:[#allocation2 + $0x88] sm:$0xff] %vm64, 0.0
    %v67 = vld [vmem:[%s0] sm:$0xff]
    %v68 = vld [vmem:[%s0 + $0x8] sm:$0xff]
    %v69 = vld [vmem:[%s0 + $0x10] sm:$0xff]
    %v70 = vld [vmem:[%s0 + $0x18] sm:$0xff]
    %v71 = vld [vmem:[%s0 + $0x20] sm:$0xff]
    %v72 = vld [vmem:[%s0 + $0x28] sm:$0xff]
    %v73 = vld [vmem:[%s0 + $0x30] sm:$0xff]
    %v74 = vld [vmem:[%s0 + $0x38] sm:$0xff]
    %v75 = vld [vmem:[%s0 + $0x40] sm:$0xff]
    %v76 = vld [vmem:[%s0 + $0x48] sm:$0xff]
    %v77 = vld [vmem:[%s0 + $0x50] sm:$0xff]
    %v78 = vld [vmem:[%s0 + $0x58] sm:$0xff]
    %v79 = vld [vmem:[%s0 + $0x60] sm:$0xff]
    %v80 = vld [vmem:[%s0 + $0x68] sm:$0xff]
    %v81 = vld [vmem:[%s0 + $0x70] sm:$0xff]
    %v82 = vld [vmem:[%s0 + $0x78] sm:$0xff]
    %83 = vst.msk [vmem:[#allocation2 + $0x8] sm:$0xff] %vm64, %v67
    %84 = vst.msk [vmem:[#allocation2 + $0x10] sm:$0xff] %vm64, %v68
    %85 = vst.msk [vmem:[#allocation2 + $0x18] sm:$0xff] %vm64, %v69
    %86 = vst.msk [vmem:[#allocation2 + $0x20] sm:$0xff] %vm64, %v70
    %87 = vst.msk [vmem:[#allocation2 + $0x28] sm:$0xff] %vm64, %v71
    %88 = vst.msk [vmem:[#allocation2 + $0x30] sm:$0xff] %vm64, %v72
    %89 = vst.msk [vmem:[#allocation2 + $0x38] sm:$0xff] %vm64, %v73
    %90 = vst.msk [vmem:[#allocation2 + $0x40] sm:$0xff] %vm64, %v74
    %91 = vst.msk [vmem:[#allocation2 + $0x48] sm:$0xff] %vm64, %v75
    %92 = vst.msk [vmem:[#allocation2 + $0x50] sm:$0xff] %vm64, %v76
    %93 = vst.msk [vmem:[#allocation2 + $0x58] sm:$0xff] %vm64, %v77
    %94 = vst.msk [vmem:[#allocation2 + $0x60] sm:$0xff] %vm64, %v78
    %95 = vst.msk [vmem:[#allocation2 + $0x68] sm:$0xff] %vm64, %v79
    %96 = vst.msk [vmem:[#allocation2 + $0x70] sm:$0xff] %vm64, %v80
    %97 = vst.msk [vmem:[#allocation2 + $0x78] sm:$0xff] %vm64, %v81
    %98 = vst.msk [vmem:[#allocation2 + $0x80] sm:$0xff] %vm64, %v82
    %v99 = vlaneseq
    %v100 = vshrl.u32 %v99, 7
    %v101 = vadd.s32 %v100, 8
    %v102 = vadd.s32 %v100, 16
    %v103 = vadd.s32 %v100, 24
    %v104 = vadd.s32 %v100, 32
    %v105 = vadd.s32 %v100, 40
    %v106 = vadd.s32 %v100, 48
    %v107 = vadd.s32 %v100, 56
    %v108 = vadd.s32 %v100, 64
    %v109 = vadd.s32 %v100, 72
    %v110 = vadd.s32 %v100, 80
    %v111 = vadd.s32 %v100, 88
    %v112 = vadd.s32 %v100, 96
    %v113 = vadd.s32 %v100, 104
    %v114 = vadd.s32 %v100, 112
    %v115 = vadd.s32 %v100, 120
    %v116 = vand.u32 %v100, 63
    %v117 = vand.u32 %v101, 63
    %v118 = vand.u32 %v102, 63
    %v119 = vand.u32 %v103, 63
    %v120 = vand.u32 %v104, 63
    %v121 = vand.u32 %v105, 63
    %v122 = vand.u32 %v106, 63
    %v123 = vand.u32 %v107, 63
    %v124 = vand.u32 %v108, 63
    %v125 = vand.u32 %v109, 63
    %v126 = vand.u32 %v110, 63
    %v127 = vand.u32 %v111, 63
    %v128 = vand.u32 %v112, 63
    %v129 = vand.u32 %v113, 63
    %v130 = vand.u32 %v114, 63
    %v131 = vand.u32 %v115, 63
    %v132 = vld [vmem:[#allocation2 + $0x6] sm:$0xff]
    %v133 = vld [vmem:[#allocation2 + $0xe] sm:$0xff]
    %v134 = vld [vmem:[#allocation2 + $0x16] sm:$0xff]
    %v135 = vld [vmem:[#allocation2 + $0x1e] sm:$0xff]
    %v136 = vld [vmem:[#allocation2 + $0x26] sm:$0xff]
    %v137 = vld [vmem:[#allocation2 + $0x2e] sm:$0xff]
    %v138 = vld [vmem:[#allocation2 + $0x36] sm:$0xff]
    %v139 = vld [vmem:[#allocation2 + $0x3e] sm:$0xff]
    %v140 = vld [vmem:[#allocation2 + $0x46] sm:$0xff]
    %v141 = vld [vmem:[#allocation2 + $0x4e] sm:$0xff]
    %v142 = vld [vmem:[#allocation2 + $0x56] sm:$0xff]
    %v143 = vld [vmem:[#allocation2 + $0x5e] sm:$0xff]
    %v144 = vld [vmem:[#allocation2 + $0x66] sm:$0xff]
    %v145 = vld [vmem:[#allocation2 + $0x6e] sm:$0xff]
    %v146 = vld [vmem:[#allocation2 + $0x76] sm:$0xff]
    %v147 = vld [vmem:[#allocation2 + $0x7e] sm:$0xff]
    %v148 = vadd.s32 %v116, 4294967294
    %v149 = vadd.s32 %v117, 4294967294
    %v150 = vadd.s32 %v118, 4294967294
    %v151 = vadd.s32 %v119, 4294967294
    %v152 = vadd.s32 %v120, 4294967294
    %v153 = vadd.s32 %v121, 4294967294
    %v154 = vadd.s32 %v122, 4294967294
    %v155 = vadd.s32 %v123, 4294967294
    %v156 = vadd.s32 %v124, 4294967294
    %v157 = vadd.s32 %v125, 4294967294
    %v158 = vadd.s32 %v126, 4294967294
    %v159 = vadd.s32 %v127, 4294967294
    %v160 = vadd.s32 %v128, 4294967294
    %v161 = vadd.s32 %v129, 4294967294
    %v162 = vadd.s32 %v130, 4294967294
    %v163 = vadd.s32 %v131, 4294967294
    %vm164 = vcmp.ge.s32.totalorder %v148, 0
    %vm165 = vcmp.ge.s32.totalorder %v149, 0
    %vm166 = vcmp.ge.s32.totalorder %v150, 0
    %vm167 = vcmp.ge.s32.totalorder %v151, 0
    %vm168 = vcmp.ge.s32.totalorder %v152, 0
    %vm169 = vcmp.ge.s32.totalorder %v153, 0
    %vm170 = vcmp.ge.s32.totalorder %v154, 0
    %vm171 = vcmp.ge.s32.totalorder %v155, 0
    %vm172 = vcmp.ge.s32.totalorder %v156, 0
    %vm173 = vcmp.ge.s32.totalorder %v157, 0
    %vm174 = vcmp.ge.s32.totalorder %v158, 0
    %vm175 = vcmp.ge.s32.totalorder %v159, 0
    %vm176 = vcmp.ge.s32.totalorder %v160, 0
    %vm177 = vcmp.ge.s32.totalorder %v161, 0
    %vm178 = vcmp.ge.s32.totalorder %v162, 0
    %vm179 = vcmp.ge.s32.totalorder %v163, 0
    %vm180 = vcmp.lt.s32.totalorder %v148, 64
    %vm181 = vcmp.lt.s32.totalorder %v149, 64
    %vm182 = vcmp.lt.s32.totalorder %v150, 64
    %vm183 = vcmp.lt.s32.totalorder %v151, 64
    %vm184 = vcmp.lt.s32.totalorder %v152, 64
    %vm185 = vcmp.lt.s32.totalorder %v153, 64
    %vm186 = vcmp.lt.s32.totalorder %v154, 64
    %vm187 = vcmp.lt.s32.totalorder %v155, 64
    %vm188 = vcmp.lt.s32.totalorder %v156, 64
    %vm189 = vcmp.lt.s32.totalorder %v157, 64
    %vm190 = vcmp.lt.s32.totalorder %v158, 64
    %vm191 = vcmp.lt.s32.totalorder %v159, 64
    %vm192 = vcmp.lt.s32.totalorder %v160, 64
    %vm193 = vcmp.lt.s32.totalorder %v161, 64
    %vm194 = vcmp.lt.s32.totalorder %v162, 64
    %vm195 = vcmp.lt.s32.totalorder %v163, 64
    %vm196 = vmand %vm164, %vm180
    %vm197 = vmand %vm165, %vm181
    %vm198 = vmand %vm166, %vm182
    %vm199 = vmand %vm167, %vm183
    %vm200 = vmand %vm168, %vm184
    %vm201 = vmand %vm169, %vm185
    %vm202 = vmand %vm170, %vm186
    %vm203 = vmand %vm171, %vm187
    %vm204 = vmand %vm172, %vm188
    %vm205 = vmand %vm173, %vm189
    %vm206 = vmand %vm174, %vm190
    %vm207 = vmand %vm175, %vm191
    %vm208 = vmand %vm176, %vm192
    %vm209 = vmand %vm177, %vm193
    %vm210 = vmand %vm178, %vm194
    %vm211 = vmand %vm179, %vm195
    %v212 = vsel %vm196, 1, 0
    %v213 = vsel %vm197, 1, 0
    %v214 = vsel %vm198, 1, 0
    %v215 = vsel %vm199, 1, 0
    %v216 = vsel %vm200, 1, 0
    %v217 = vsel %vm201, 1, 0
    %v218 = vsel %vm202, 1, 0
    %v219 = vsel %vm203, 1, 0
    %v220 = vsel %vm204, 1, 0
    %v221 = vsel %vm205, 1, 0
    %v222 = vsel %vm206, 1, 0
    %v223 = vsel %vm207, 1, 0
    %v224 = vsel %vm208, 1, 0
    %v225 = vsel %vm209, 1, 0
    %v226 = vsel %vm210, 1, 0
    %v227 = vsel %vm211, 1, 0
    %vm228 = vcmp.eq.s32.totalorder %v212, 1
    %vm229 = vcmp.eq.s32.totalorder %v213, 1
    %vm230 = vcmp.eq.s32.totalorder %v214, 1
    %vm231 = vcmp.eq.s32.totalorder %v215, 1
    %vm232 = vcmp.eq.s32.totalorder %v216, 1
    %vm233 = vcmp.eq.s32.totalorder %v217, 1
    %vm234 = vcmp.eq.s32.totalorder %v218, 1
    %vm235 = vcmp.eq.s32.totalorder %v219, 1
    %vm236 = vcmp.eq.s32.totalorder %v220, 1
    %vm237 = vcmp.eq.s32.totalorder %v221, 1
    %vm238 = vcmp.eq.s32.totalorder %v222, 1
    %vm239 = vcmp.eq.s32.totalorder %v223, 1
    %vm240 = vcmp.eq.s32.totalorder %v224, 1
    %vm241 = vcmp.eq.s32.totalorder %v225, 1
    %vm242 = vcmp.eq.s32.totalorder %v226, 1
    %vm243 = vcmp.eq.s32.totalorder %v227, 1
    %v244 = vsel %vm228, %v132, 0.0
    %v245 = vsel %vm229, %v133, 0.0
    %v246 = vsel %vm230, %v134, 0.0
    %v247 = vsel %vm231, %v135, 0.0
    %v248 = vsel %vm232, %v136, 0.0
    %v249 = vsel %vm233, %v137, 0.0
    %v250 = vsel %vm234, %v138, 0.0
    %v251 = vsel %vm235, %v139, 0.0
    %v252 = vsel %vm236, %v140, 0.0
    %v253 = vsel %vm237, %v141, 0.0
    %v254 = vsel %vm238, %v142, 0.0
    %v255 = vsel %vm239, %v143, 0.0
    %v256 = vsel %vm240, %v144, 0.0
    %v257 = vsel %vm241, %v145, 0.0
    %v258 = vsel %vm242, %v146, 0.0
    %v259 = vsel %vm243, %v147, 0.0
    %v260 = vpack.c.bf16 %v245, %v244
    %v261 = vpack.c.bf16 %v247, %v246
    %v262 = vpack.c.bf16 %v249, %v248
    %v263 = vpack.c.bf16 %v251, %v250
    %v264 = vpack.c.bf16 %v253, %v252
    %v265 = vpack.c.bf16 %v255, %v254
    %v266 = vpack.c.bf16 %v257, %v256
    %v267 = vpack.c.bf16 %v259, %v258
    %v268 = vld [vmem:[%s1] sm:$0xf]
    %v269 = vld [vmem:[%s1 + $0x4] sm:$0x3]
    %v270 = vld [vmem:[#allocation2 + $0x7] sm:$0xff]
    %v271 = vld [vmem:[#allocation2 + $0xf] sm:$0xff]
    %v272 = vld [vmem:[#allocation2 + $0x17] sm:$0xff]
    %v273 = vld [vmem:[#allocation2 + $0x1f] sm:$0xff]
    %v274 = vld [vmem:[#allocation2 + $0x27] sm:$0xff]
    %v275 = vld [vmem:[#allocation2 + $0x2f] sm:$0xff]
    %v276 = vld [vmem:[#allocation2 + $0x37] sm:$0xff]
    %v277 = vld [vmem:[#allocation2 + $0x3f] sm:$0xff]
    %v278 = vld [vmem:[#allocation2 + $0x47] sm:$0xff]
    %v279 = vld [vmem:[#allocation2 + $0x4f] sm:$0xff]
    %v280 = vld [vmem:[#allocation2 + $0x57] sm:$0xff]
    %v281 = vld [vmem:[#allocation2 + $0x5f] sm:$0xff]
    %v282 = vld [vmem:[#allocation2 + $0x67] sm:$0xff]
    %v283 = vld [vmem:[#allocation2 + $0x6f] sm:$0xff]
    %v284 = vld [vmem:[#allocation2 + $0x77] sm:$0xff]
    %v285 = vld [vmem:[#allocation2 + $0x7f] sm:$0xff]
    %v286 = vadd.s32 %v116, 4294967295
    %v287 = vadd.s32 %v117, 4294967295
    %v288 = vadd.s32 %v118, 4294967295
    %v289 = vadd.s32 %v119, 4294967295
    %v290 = vadd.s32 %v120, 4294967295
    %v291 = vadd.s32 %v121, 4294967295
    %v292 = vadd.s32 %v122, 4294967295
    %v293 = vadd.s32 %v123, 4294967295
    %v294 = vadd.s32 %v124, 4294967295
    %v295 = vadd.s32 %v125, 4294967295
    %v296 = vadd.s32 %v126, 4294967295
    %v297 = vadd.s32 %v127, 4294967295
    %v298 = vadd.s32 %v128, 4294967295
    %v299 = vadd.s32 %v129, 4294967295
    %v300 = vadd.s32 %v130, 4294967295
    %v301 = vadd.s32 %v131, 4294967295
    %vm302 = vcmp.ge.s32.totalorder %v286, 0
    %vm303 = vcmp.ge.s32.totalorder %v287, 0
    %vm304 = vcmp.ge.s32.totalorder %v288, 0
    %vm305 = vcmp.ge.s32.totalorder %v289, 0
    %vm306 = vcmp.ge.s32.totalorder %v290, 0
    %vm307 = vcmp.ge.s32.totalorder %v291, 0
    %vm308 = vcmp.ge.s32.totalorder %v292, 0
    %vm309 = vcmp.ge.s32.totalorder %v293, 0
    %vm310 = vcmp.ge.s32.totalorder %v294, 0
    %vm311 = vcmp.ge.s32.totalorder %v295, 0
    %vm312 = vcmp.ge.s32.totalorder %v296, 0
    %vm313 = vcmp.ge.s32.totalorder %v297, 0
    %vm314 = vcmp.ge.s32.totalorder %v298, 0
    %vm315 = vcmp.ge.s32.totalorder %v299, 0
    %vm316 = vcmp.ge.s32.totalorder %v300, 0
    %vm317 = vcmp.ge.s32.totalorder %v301, 0
    %vm318 = vcmp.lt.s32.totalorder %v286, 64
    %vm319 = vcmp.lt.s32.totalorder %v287, 64
    %vm320 = vcmp.lt.s32.totalorder %v288, 64
    %vm321 = vcmp.lt.s32.totalorder %v289, 64
    %vm322 = vcmp.lt.s32.totalorder %v290, 64
    %vm323 = vcmp.lt.s32.totalorder %v291, 64
    %vm324 = vcmp.lt.s32.totalorder %v292, 64
    %vm325 = vcmp.lt.s32.totalorder %v293, 64
    %vm326 = vcmp.lt.s32.totalorder %v294, 64
    %vm327 = vcmp.lt.s32.totalorder %v295, 64
    %vm328 = vcmp.lt.s32.totalorder %v296, 64
    %vm329 = vcmp.lt.s32.totalorder %v297, 64
    %vm330 = vcmp.lt.s32.totalorder %v298, 64
    %vm331 = vcmp.lt.s32.totalorder %v299, 64
    %vm332 = vcmp.lt.s32.totalorder %v300, 64
    %vm333 = vcmp.lt.s32.totalorder %v301, 64
    %vm334 = vmand %vm302, %vm318
    %vm335 = vmand %vm303, %vm319
    %vm336 = vmand %vm304, %vm320
    %vm337 = vmand %vm305, %vm321
    %vm338 = vmand %vm306, %vm322
    %vm339 = vmand %vm307, %vm323
    %vm340 = vmand %vm308, %vm324
    %vm341 = vmand %vm309, %vm325
    %vm342 = vmand %vm310, %vm326
    %vm343 = vmand %vm311, %vm327
    %vm344 = vmand %vm312, %vm328
    %vm345 = vmand %vm313, %vm329
    %vm346 = vmand %vm314, %vm330
    %vm347 = vmand %vm315, %vm331
    %vm348 = vmand %vm316, %vm332
    %vm349 = vmand %vm317, %vm333
    %v350 = vsel %vm334, 1, 0
    %v351 = vsel %vm335, 1, 0
    %v352 = vsel %vm336, 1, 0
    %v353 = vsel %vm337, 1, 0
    %v354 = vsel %vm338, 1, 0
    %v355 = vsel %vm339, 1, 0
    %v356 = vsel %vm340, 1, 0
    %v357 = vsel %vm341, 1, 0
    %v358 = vsel %vm342, 1, 0
    %v359 = vsel %vm343, 1, 0
    %v360 = vsel %vm344, 1, 0
    %v361 = vsel %vm345, 1, 0
    %v362 = vsel %vm346, 1, 0
    %v363 = vsel %vm347, 1, 0
    %v364 = vsel %vm348, 1, 0
    %v365 = vsel %vm349, 1, 0
    %vm366 = vcmp.eq.s32.totalorder %v350, 1
    %vm367 = vcmp.eq.s32.totalorder %v351, 1
    %vm368 = vcmp.eq.s32.totalorder %v352, 1
    %vm369 = vcmp.eq.s32.totalorder %v353, 1
    %vm370 = vcmp.eq.s32.totalorder %v354, 1
    %vm371 = vcmp.eq.s32.totalorder %v355, 1
    %vm372 = vcmp.eq.s32.totalorder %v356, 1
    %vm373 = vcmp.eq.s32.totalorder %v357, 1
    %vm374 = vcmp.eq.s32.totalorder %v358, 1
    %vm375 = vcmp.eq.s32.totalorder %v359, 1
    %vm376 = vcmp.eq.s32.totalorder %v360, 1
    %vm377 = vcmp.eq.s32.totalorder %v361, 1
    %vm378 = vcmp.eq.s32.totalorder %v362, 1
    %vm379 = vcmp.eq.s32.totalorder %v363, 1
    %vm380 = vcmp.eq.s32.totalorder %v364, 1
    %vm381 = vcmp.eq.s32.totalorder %v365, 1
    %v382 = vsel %vm366, %v270, 0.0
    %v383 = vsel %vm367, %v271, 0.0
    %v384 = vsel %vm368, %v272, 0.0
    %v385 = vsel %vm369, %v273, 0.0
    %v386 = vsel %vm370, %v274, 0.0
    %v387 = vsel %vm371, %v275, 0.0
    %v388 = vsel %vm372, %v276, 0.0
    %v389 = vsel %vm373, %v277, 0.0
    %v390 = vsel %vm374, %v278, 0.0
    %v391 = vsel %vm375, %v279, 0.0
    %v392 = vsel %vm376, %v280, 0.0
    %v393 = vsel %vm377, %v281, 0.0
    %v394 = vsel %vm378, %v282, 0.0
    %v395 = vsel %vm379, %v283, 0.0
    %v396 = vsel %vm380, %v284, 0.0
    %v397 = vsel %vm381, %v285, 0.0
    %v398 = vpack.c.bf16 %v383, %v382
    %v399 = vpack.c.bf16 %v385, %v384
    %v400 = vpack.c.bf16 %v387, %v386
    %v401 = vpack.c.bf16 %v389, %v388
    %v402 = vpack.c.bf16 %v391, %v390
    %v403 = vpack.c.bf16 %v393, %v392
    %v404 = vpack.c.bf16 %v395, %v394
    %v405 = vpack.c.bf16 %v397, %v396
    %s406 = scalar_lea.vmem %s1, 8
    %v407 = vld [vmem:[%s406] sm:$0xf]
    %v408 = vld [vmem:[%s406 + $0x4] sm:$0x3]
    %v411 = vunpack.c.l.b16 %v407
    %v412 = vunpack.c.l.b16 %v408
    %v413 = vpack.c.b16 %v412, %v411
    %v415 = vsel %vm64, %v398, 0
    %v418 = vsel %vm64, %v399, 0
    %v421 = vsel %vm64, %v400, 0
    %v424 = vsel %vm64, %v401, 0
    %v427 = vsel %vm64, %v402, 0
    %v430 = vsel %vm64, %v403, 0
    %v433 = vsel %vm64, %v404, 0
    %v436 = vsel %vm64, %v405, 0
    %vm438 = vcmask 1045504
    %v440 = vsel %vm438, %v413, 0
    %442 = vmatprep.subr.bf16.mxu0 0
    %443 = vmatpush1.bf16.msra.mxu0 %v440
    %444 = vmatprep.subr.bf16.mxu0 0
    %445 = vmatpush1.bf16.msra.mxu0 0
    %446 = vmatprep.subr.bf16.mxu0 0
    %447 = vmatpush1.bf16.msra.mxu0 0
    %448 = vmatprep.subr.bf16.mxu0 0
    %449 = vmatpush1.bf16.msra.mxu0 0
    %450 = vmatprep.subr.bf16.mxu0 0
    %451 = vmatpush1.bf16.msra.mxu0 0
    %452 = vmatprep.subr.bf16.mxu0 0
    %453 = vmatpush1.bf16.msra.mxu0 0
    %454 = vmatprep.subr.bf16.mxu0 0
    %455 = vmatpush1.bf16.msra.mxu0 0
    %456 = vmatprep.subr.bf16.mxu0 0
    %457 = vmatpush1.bf16.msra.mxu0 0
    %458 = vmatprep.subr.bf16.mxu0 0
    %459 = vmatpush1.bf16.msra.mxu0 0
    %460 = vmatprep.subr.bf16.mxu0 0
    %461 = vmatpush1.bf16.msra.mxu0 0
    %462 = vmatprep.subr.bf16.mxu0 0
    %463 = vmatpush1.bf16.msra.mxu0 0
    %464 = vmatprep.subr.bf16.mxu0 0
    %465 = vmatpush1.bf16.msra.mxu0 0
    %466 = vmatprep.subr.bf16.mxu0 0
    %467 = vmatpush1.bf16.msra.mxu0 0
    %468 = vmatprep.subr.bf16.mxu0 0
    %469 = vmatpush1.bf16.msra.mxu0 0
    %470 = vmatprep.subr.bf16.mxu0 0
    %471 = vmatpush1.bf16.msra.mxu0 0
    %472 = vmatprep.subr.bf16.mxu0 0
    %473 = vmatpush1.bf16.msra.mxu0 0
    %474 = vmatprep.mubr.bf16.mxu0 0
    %475 = vmatmul.mubr.bf16.gmra.mrb[0].mxu0 %v415
    %v476 = vpop.f32.mrb[0].mxu0
    %v477 = vadd.f32 0.0, %v476
    %v478 = vpop.f32.mrb[0].mxu0
    %v479 = vpop.f32.mrb[0].mxu0
    %v480 = vadd.f32 0.0, %v479
    %v481 = vpop.f32.mrb[0].mxu0
    %482 = vmatprep.mubr.bf16.mxu0 0
    %483 = vmatmul.mubr.bf16.gmra.mrb[0].mxu0 %v418
    %v484 = vpop.f32.mrb[0].mxu0
    %v485 = vadd.f32 0.0, %v484
    %v486 = vpop.f32.mrb[0].mxu0
    %v487 = vpop.f32.mrb[0].mxu0
    %v488 = vadd.f32 0.0, %v487
    %v489 = vpop.f32.mrb[0].mxu0
    %490 = vmatprep.mubr.bf16.mxu0 0
    %491 = vmatmul.mubr.bf16.gmra.mrb[0].mxu0 %v421
    %v492 = vpop.f32.mrb[0].mxu0
    %v493 = vadd.f32 0.0, %v492
    %v494 = vpop.f32.mrb[0].mxu0
    %v495 = vpop.f32.mrb[0].mxu0
    %v496 = vadd.f32 0.0, %v495
    %v497 = vpop.f32.mrb[0].mxu0
    %498 = vmatprep.mubr.bf16.mxu0 0
    %499 = vmatmul.mubr.bf16.gmra.mrb[0].mxu0 %v424
    %v500 = vpop.f32.mrb[0].mxu0
    %v501 = vadd.f32 0.0, %v500
    %v502 = vpop.f32.mrb[0].mxu0
    %v503 = vpop.f32.mrb[0].mxu0
    %v504 = vadd.f32 0.0, %v503
    %v505 = vpop.f32.mrb[0].mxu0
    %506 = vmatprep.mubr.bf16.mxu0 0
    %507 = vmatmul.mubr.bf16.gmra.mrb[0].mxu0 %v427
    %v508 = vpop.f32.mrb[0].mxu0
    %v509 = vadd.f32 0.0, %v508
    %v510 = vpop.f32.mrb[0].mxu0
    %v511 = vpop.f32.mrb[0].mxu0
    %v512 = vadd.f32 0.0, %v511
    %v513 = vpop.f32.mrb[0].mxu0
    %514 = vmatprep.mubr.bf16.mxu0 0
    %515 = vmatmul.mubr.bf16.gmra.mrb[0].mxu0 %v430
    %v516 = vpop.f32.mrb[0].mxu0
    %v517 = vadd.f32 0.0, %v516
    %v518 = vpop.f32.mrb[0].mxu0
    %v519 = vpop.f32.mrb[0].mxu0
    %v520 = vadd.f32 0.0, %v519
    %v521 = vpop.f32.mrb[0].mxu0
    %522 = vmatprep.mubr.bf16.mxu0 0
    %523 = vmatmul.mubr.bf16.gmra.mrb[0].mxu0 %v433
    %v524 = vpop.f32.mrb[0].mxu0
    %v525 = vadd.f32 0.0, %v524
    %v526 = vpop.f32.mrb[0].mxu0
    %v527 = vpop.f32.mrb[0].mxu0
    %v528 = vadd.f32 0.0, %v527
    %v529 = vpop.f32.mrb[0].mxu0
    %530 = vmatprep.mubr.bf16.mxu0 0
    %531 = vmatmul.mubr.bf16.gmra.mrb[0].mxu0 %v436
    %v532 = vpop.f32.mrb[0].mxu0
    %v533 = vadd.f32 0.0, %v532
    %v534 = vpop.f32.mrb[0].mxu0
    %v535 = vpop.f32.mrb[0].mxu0
    %v536 = vadd.f32 0.0, %v535
    %v537 = vpop.f32.mrb[0].mxu0
    %538 = vdwg.mxu0
    %v541 = vunpack.c.l.b16 %v268
    %v542 = vunpack.c.l.b16 %v269
    %v543 = vpack.c.b16 %v542, %v541
    %v545 = vsel %vm64, %v260, 0
    %v548 = vsel %vm64, %v261, 0
    %v551 = vsel %vm64, %v262, 0
    %v554 = vsel %vm64, %v263, 0
    %v557 = vsel %vm64, %v264, 0
    %v560 = vsel %vm64, %v265, 0
    %v563 = vsel %vm64, %v266, 0
    %v566 = vsel %vm64, %v267, 0
    %v569 = vsel %vm438, %v543, 0
    %571 = vmatprep.subr.bf16.mxu0 0
    %572 = vmatpush1.bf16.msra.mxu0 %v569
    %573 = vmatprep.subr.bf16.mxu0 0
    %574 = vmatpush1.bf16.msra.mxu0 0
    %575 = vmatprep.subr.bf16.mxu0 0
    %576 = vmatpush1.bf16.msra.mxu0 0
    %577 = vmatprep.subr.bf16.mxu0 0
    %578 = vmatpush1.bf16.msra.mxu0 0
    %579 = vmatprep.subr.bf16.mxu0 0
    %580 = vmatpush1.bf16.msra.mxu0 0
    %581 = vmatprep.subr.bf16.mxu0 0
    %582 = vmatpush1.bf16.msra.mxu0 0
    %583 = vmatprep.subr.bf16.mxu0 0
    %584 = vmatpush1.bf16.msra.mxu0 0
    %585 = vmatprep.subr.bf16.mxu0 0
    %586 = vmatpush1.bf16.msra.mxu0 0
    %587 = vmatprep.subr.bf16.mxu0 0
    %588 = vmatpush1.bf16.msra.mxu0 0
    %589 = vmatprep.subr.bf16.mxu0 0
    %590 = vmatpush1.bf16.msra.mxu0 0
    %591 = vmatprep.subr.bf16.mxu0 0
    %592 = vmatpush1.bf16.msra.mxu0 0
    %593 = vmatprep.subr.bf16.mxu0 0
    %594 = vmatpush1.bf16.msra.mxu0 0
    %595 = vmatprep.subr.bf16.mxu0 0
    %596 = vmatpush1.bf16.msra.mxu0 0
    %597 = vmatprep.subr.bf16.mxu0 0
    %598 = vmatpush1.bf16.msra.mxu0 0
    %599 = vmatprep.subr.bf16.mxu0 0
    %600 = vmatpush1.bf16.msra.mxu0 0
    %601 = vmatprep.subr.bf16.mxu0 0
    %602 = vmatpush1.bf16.msra.mxu0 0
    %603 = vmatprep.mubr.bf16.mxu0 0
    %604 = vmatmul.mubr.bf16.gmra.mrb[0].mxu0 %v545
    %v605 = vpop.f32.mrb[0].mxu0
    %v606 = vadd.f32 %v477, %v605
    %v607 = vpop.f32.mrb[0].mxu0
    %v608 = vpop.f32.mrb[0].mxu0
    %v609 = vadd.f32 %v480, %v608
    %v610 = vpop.f32.mrb[0].mxu0
    %611 = vmatprep.mubr.bf16.mxu0 0
    %612 = vmatmul.mubr.bf16.gmra.mrb[0].mxu0 %v548
    %v613 = vpop.f32.mrb[0].mxu0
    %v614 = vadd.f32 %v485, %v613
    %v615 = vpop.f32.mrb[0].mxu0
    %v616 = vpop.f32.mrb[0].mxu0
    %v617 = vadd.f32 %v488, %v616
    %v618 = vpop.f32.mrb[0].mxu0
    %619 = vmatprep.mubr.bf16.mxu0 0
    %620 = vmatmul.mubr.bf16.gmra.mrb[0].mxu0 %v551
    %v621 = vpop.f32.mrb[0].mxu0
    %v622 = vadd.f32 %v493, %v621
    %v623 = vpop.f32.mrb[0].mxu0
    %v624 = vpop.f32.mrb[0].mxu0
    %v625 = vadd.f32 %v496, %v624
    %v626 = vpop.f32.mrb[0].mxu0
    %627 = vmatprep.mubr.bf16.mxu0 0
    %628 = vmatmul.mubr.bf16.gmra.mrb[0].mxu0 %v554
    %v629 = vpop.f32.mrb[0].mxu0
    %v630 = vadd.f32 %v501, %v629
    %v631 = vpop.f32.mrb[0].mxu0
    %v632 = vpop.f32.mrb[0].mxu0
    %v633 = vadd.f32 %v504, %v632
    %v634 = vpop.f32.mrb[0].mxu0
    %635 = vmatprep.mubr.bf16.mxu0 0
    %636 = vmatmul.mubr.bf16.gmra.mrb[0].mxu0 %v557
    %v637 = vpop.f32.mrb[0].mxu0
    %v638 = vadd.f32 %v509, %v637
    %v639 = vpop.f32.mrb[0].mxu0
    %v640 = vpop.f32.mrb[0].mxu0
    %v641 = vadd.f32 %v512, %v640
    %v642 = vpop.f32.mrb[0].mxu0
    %643 = vmatprep.mubr.bf16.mxu0 0
    %644 = vmatmul.mubr.bf16.gmra.mrb[0].mxu0 %v560
    %v645 = vpop.f32.mrb[0].mxu0
    %v646 = vadd.f32 %v517, %v645
    %v647 = vpop.f32.mrb[0].mxu0
    %v648 = vpop.f32.mrb[0].mxu0
    %v649 = vadd.f32 %v520, %v648
    %v650 = vpop.f32.mrb[0].mxu0
    %651 = vmatprep.mubr.bf16.mxu0 0
    %652 = vmatmul.mubr.bf16.gmra.mrb[0].mxu0 %v563
    %v653 = vpop.f32.mrb[0].mxu0
    %v654 = vadd.f32 %v525, %v653
    %v655 = vpop.f32.mrb[0].mxu0
    %v656 = vpop.f32.mrb[0].mxu0
    %v657 = vadd.f32 %v528, %v656
    %v658 = vpop.f32.mrb[0].mxu0
    %659 = vmatprep.mubr.bf16.mxu0 0
    %660 = vmatmul.mubr.bf16.gmra.mrb[0].mxu0 %v566
    %v661 = vpop.f32.mrb[0].mxu0
    %v662 = vadd.f32 %v533, %v661
    %v663 = vpop.f32.mrb[0].mxu0
    %v664 = vpop.f32.mrb[0].mxu0
    %v665 = vadd.f32 %v536, %v664
    %v666 = vpop.f32.mrb[0].mxu0
    %667 = vdwg.mxu0
    %v668 = vld [vmem:[#allocation2 + $0x8] sm:$0xff]
    %v669 = vld [vmem:[#allocation2 + $0x10] sm:$0xff]
    %v670 = vld [vmem:[#allocation2 + $0x18] sm:$0xff]
    %v671 = vld [vmem:[#allocation2 + $0x20] sm:$0xff]
    %v672 = vld [vmem:[#allocation2 + $0x28] sm:$0xff]
    %v673 = vld [vmem:[#allocation2 + $0x30] sm:$0xff]
    %v674 = vld [vmem:[#allocation2 + $0x38] sm:$0xff]
    %v675 = vld [vmem:[#allocation2 + $0x40] sm:$0xff]
    %v676 = vld [vmem:[#allocation2 + $0x48] sm:$0xff]
    %v677 = vld [vmem:[#allocation2 + $0x50] sm:$0xff]
    %v678 = vld [vmem:[#allocation2 + $0x58] sm:$0xff]
    %v679 = vld [vmem:[#allocation2 + $0x60] sm:$0xff]
    %v680 = vld [vmem:[#allocation2 + $0x68] sm:$0xff]
    %v681 = vld [vmem:[#allocation2 + $0x70] sm:$0xff]
    %v682 = vld [vmem:[#allocation2 + $0x78] sm:$0xff]
    %v683 = vld [vmem:[#allocation2 + $0x80] sm:$0xff]
    %v684 = vpack.c.bf16 %v669, %v668
    %v685 = vpack.c.bf16 %v671, %v670
    %v686 = vpack.c.bf16 %v673, %v672
    %v687 = vpack.c.bf16 %v675, %v674
    %v688 = vpack.c.bf16 %v677, %v676
    %v689 = vpack.c.bf16 %v679, %v678
    %v690 = vpack.c.bf16 %v681, %v680
    %v691 = vpack.c.bf16 %v683, %v682
    %s692 = scalar_lea.vmem %s1, 16
    %v693 = vld [vmem:[%s692] sm:$0xf]
    %v694 = vld [vmem:[%s692 + $0x4] sm:$0x3]
    %v697 = vunpack.c.l.b16 %v693
    %v698 = vunpack.c.l.b16 %v694
    %v699 = vpack.c.b16 %v698, %v697
    %v701 = vsel %vm64, %v684, 0
    %v704 = vsel %vm64, %v685, 0
    %v707 = vsel %vm64, %v686, 0
    %v710 = vsel %vm64, %v687, 0
    %v713 = vsel %vm64, %v688, 0
    %v716 = vsel %vm64, %v689, 0
    %v719 = vsel %vm64, %v690, 0
    %v722 = vsel %vm64, %v691, 0
    %v725 = vsel %vm438, %v699, 0
    %727 = vmatprep.subr.bf16.mxu0 0
    %728 = vmatpush1.bf16.msra.mxu0 %v725
    %729 = vmatprep.subr.bf16.mxu0 0
    %730 = vmatpush1.bf16.msra.mxu0 0
    %731 = vmatprep.subr.bf16.mxu0 0
    %732 = vmatpush1.bf16.msra.mxu0 0
    %733 = vmatprep.subr.bf16.mxu0 0
    %734 = vmatpush1.bf16.msra.mxu0 0
    %735 = vmatprep.subr.bf16.mxu0 0
    %736 = vmatpush1.bf16.msra.mxu0 0
    %737 = vmatprep.subr.bf16.mxu0 0
    %738 = vmatpush1.bf16.msra.mxu0 0
    %739 = vmatprep.subr.bf16.mxu0 0
    %740 = vmatpush1.bf16.msra.mxu0 0
    %741 = vmatprep.subr.bf16.mxu0 0
    %742 = vmatpush1.bf16.msra.mxu0 0
    %743 = vmatprep.subr.bf16.mxu0 0
    %744 = vmatpush1.bf16.msra.mxu0 0
    %745 = vmatprep.subr.bf16.mxu0 0
    %746 = vmatpush1.bf16.msra.mxu0 0
    %747 = vmatprep.subr.bf16.mxu0 0
    %748 = vmatpush1.bf16.msra.mxu0 0
    %749 = vmatprep.subr.bf16.mxu0 0
    %750 = vmatpush1.bf16.msra.mxu0 0
    %751 = vmatprep.subr.bf16.mxu0 0
    %752 = vmatpush1.bf16.msra.mxu0 0
    %753 = vmatprep.subr.bf16.mxu0 0
    %754 = vmatpush1.bf16.msra.mxu0 0
    %755 = vmatprep.subr.bf16.mxu0 0
    %756 = vmatpush1.bf16.msra.mxu0 0
    %757 = vmatprep.subr.bf16.mxu0 0
    %758 = vmatpush1.bf16.msra.mxu0 0
    %759 = vmatprep.mubr.bf16.mxu0 0
    %760 = vmatmul.mubr.bf16.gmra.mrb[0].mxu0 %v701
    %v761 = vpop.f32.mrb[0].mxu0
    %v762 = vadd.f32 0.0, %v761
    %v763 = vpop.f32.mrb[0].mxu0
    %v764 = vpop.f32.mrb[0].mxu0
    %v765 = vadd.f32 0.0, %v764
    %v766 = vpop.f32.mrb[0].mxu0
    %767 = vmatprep.mubr.bf16.mxu0 0
    %768 = vmatmul.mubr.bf16.gmra.mrb[0].mxu0 %v704
    %v769 = vpop.f32.mrb[0].mxu0
    %v770 = vadd.f32 0.0, %v769
    %v771 = vpop.f32.mrb[0].mxu0
    %v772 = vpop.f32.mrb[0].mxu0
    %v773 = vadd.f32 0.0, %v772
    %v774 = vpop.f32.mrb[0].mxu0
    %775 = vmatprep.mubr.bf16.mxu0 0
    %776 = vmatmul.mubr.bf16.gmra.mrb[0].mxu0 %v707
    %v777 = vpop.f32.mrb[0].mxu0
    %v778 = vadd.f32 0.0, %v777
    %v779 = vpop.f32.mrb[0].mxu0
    %v780 = vpop.f32.mrb[0].mxu0
    %v781 = vadd.f32 0.0, %v780
    %v782 = vpop.f32.mrb[0].mxu0
    %783 = vmatprep.mubr.bf16.mxu0 0
    %784 = vmatmul.mubr.bf16.gmra.mrb[0].mxu0 %v710
    %v785 = vpop.f32.mrb[0].mxu0
    %v786 = vadd.f32 0.0, %v785
    %v787 = vpop.f32.mrb[0].mxu0
    %v788 = vpop.f32.mrb[0].mxu0
    %v789 = vadd.f32 0.0, %v788
    %v790 = vpop.f32.mrb[0].mxu0
    %791 = vmatprep.mubr.bf16.mxu0 0
    %792 = vmatmul.mubr.bf16.gmra.mrb[0].mxu0 %v713
    %v793 = vpop.f32.mrb[0].mxu0
    %v794 = vadd.f32 0.0, %v793
    %v795 = vpop.f32.mrb[0].mxu0
    %v796 = vpop.f32.mrb[0].mxu0
    %v797 = vadd.f32 0.0, %v796
    %v798 = vpop.f32.mrb[0].mxu0
    %799 = vmatprep.mubr.bf16.mxu0 0
    %800 = vmatmul.mubr.bf16.gmra.mrb[0].mxu0 %v716
    %v801 = vpop.f32.mrb[0].mxu0
    %v802 = vadd.f32 0.0, %v801
    %v803 = vpop.f32.mrb[0].mxu0
    %v804 = vpop.f32.mrb[0].mxu0
    %v805 = vadd.f32 0.0, %v804
    %v806 = vpop.f32.mrb[0].mxu0
    %807 = vmatprep.mubr.bf16.mxu0 0
    %808 = vmatmul.mubr.bf16.gmra.mrb[0].mxu0 %v719
    %v809 = vpop.f32.mrb[0].mxu0
    %v810 = vadd.f32 0.0, %v809
    %v811 = vpop.f32.mrb[0].mxu0
    %v812 = vpop.f32.mrb[0].mxu0
    %v813 = vadd.f32 0.0, %v812
    %v814 = vpop.f32.mrb[0].mxu0
    %815 = vmatprep.mubr.bf16.mxu0 0
    %816 = vmatmul.mubr.bf16.gmra.mrb[0].mxu0 %v722
    %v817 = vpop.f32.mrb[0].mxu0
    %v818 = vadd.f32 0.0, %v817
    %v819 = vpop.f32.mrb[0].mxu0
    %v820 = vpop.f32.mrb[0].mxu0
    %v821 = vadd.f32 0.0, %v820
    %v822 = vpop.f32.mrb[0].mxu0
    %823 = vdwg.mxu0
    %v824 = vadd.f32 %v606, %v762
    %v825 = vadd.f32 %v609, %v765
    %v826 = vadd.f32 %v614, %v770
    %v827 = vadd.f32 %v617, %v773
    %v828 = vadd.f32 %v622, %v778
    %v829 = vadd.f32 %v625, %v781
    %v830 = vadd.f32 %v630, %v786
    %v831 = vadd.f32 %v633, %v789
    %v832 = vadd.f32 %v638, %v794
    %v833 = vadd.f32 %v641, %v797
    %v834 = vadd.f32 %v646, %v802
    %v835 = vadd.f32 %v649, %v805
    %v836 = vadd.f32 %v654, %v810
    %v837 = vadd.f32 %v657, %v813
    %v838 = vadd.f32 %v662, %v818
    %v839 = vadd.f32 %v665, %v821
    %v840 = vld [vmem:[#allocation2 + $0x9] sm:$0xff]
    %v841 = vld [vmem:[#allocation2 + $0x11] sm:$0xff]
    %v842 = vld [vmem:[#allocation2 + $0x19] sm:$0xff]
    %v843 = vld [vmem:[#allocation2 + $0x21] sm:$0xff]
    %v844 = vld [vmem:[#allocation2 + $0x29] sm:$0xff]
    %v845 = vld [vmem:[#allocation2 + $0x31] sm:$0xff]
    %v846 = vld [vmem:[#allocation2 + $0x39] sm:$0xff]
    %v847 = vld [vmem:[#allocation2 + $0x41] sm:$0xff]
    %v848 = vld [vmem:[#allocation2 + $0x49] sm:$0xff]
    %v849 = vld [vmem:[#allocation2 + $0x51] sm:$0xff]
    %v850 = vld [vmem:[#allocation2 + $0x59] sm:$0xff]
    %v851 = vld [vmem:[#allocation2 + $0x61] sm:$0xff]
    %v852 = vld [vmem:[#allocation2 + $0x69] sm:$0xff]
    %v853 = vld [vmem:[#allocation2 + $0x71] sm:$0xff]
    %v854 = vld [vmem:[#allocation2 + $0x79] sm:$0xff]
    %v855 = vld [vmem:[#allocation2 + $0x81] sm:$0xff]
    %v856 = vadd.s32 %v116, 1
    %v857 = vadd.s32 %v117, 1
    %v858 = vadd.s32 %v118, 1
    %v859 = vadd.s32 %v119, 1
    %v860 = vadd.s32 %v120, 1
    %v861 = vadd.s32 %v121, 1
    %v862 = vadd.s32 %v122, 1
    %v863 = vadd.s32 %v123, 1
    %v864 = vadd.s32 %v124, 1
    %v865 = vadd.s32 %v125, 1
    %v866 = vadd.s32 %v126, 1
    %v867 = vadd.s32 %v127, 1
    %v868 = vadd.s32 %v128, 1
    %v869 = vadd.s32 %v129, 1
    %v870 = vadd.s32 %v130, 1
    %v871 = vadd.s32 %v131, 1
    %vm872 = vcmp.ge.s32.totalorder %v856, 0
    %vm873 = vcmp.ge.s32.totalorder %v857, 0
    %vm874 = vcmp.ge.s32.totalorder %v858, 0
    %vm875 = vcmp.ge.s32.totalorder %v859, 0
    %vm876 = vcmp.ge.s32.totalorder %v860, 0
    %vm877 = vcmp.ge.s32.totalorder %v861, 0
    %vm878 = vcmp.ge.s32.totalorder %v862, 0
    %vm879 = vcmp.ge.s32.totalorder %v863, 0
    %vm880 = vcmp.ge.s32.totalorder %v864, 0
    %vm881 = vcmp.ge.s32.totalorder %v865, 0
    %vm882 = vcmp.ge.s32.totalorder %v866, 0
    %vm883 = vcmp.ge.s32.totalorder %v867, 0
    %vm884 = vcmp.ge.s32.totalorder %v868, 0
    %vm885 = vcmp.ge.s32.totalorder %v869, 0
    %vm886 = vcmp.ge.s32.totalorder %v870, 0
    %vm887 = vcmp.ge.s32.totalorder %v871, 0
    %vm888 = vcmp.lt.s32.totalorder %v856, 64
    %vm889 = vcmp.lt.s32.totalorder %v857, 64
    %vm890 = vcmp.lt.s32.totalorder %v858, 64
    %vm891 = vcmp.lt.s32.totalorder %v859, 64
    %vm892 = vcmp.lt.s32.totalorder %v860, 64
    %vm893 = vcmp.lt.s32.totalorder %v861, 64
    %vm894 = vcmp.lt.s32.totalorder %v862, 64
    %vm895 = vcmp.lt.s32.totalorder %v863, 64
    %vm896 = vcmp.lt.s32.totalorder %v864, 64
    %vm897 = vcmp.lt.s32.totalorder %v865, 64
    %vm898 = vcmp.lt.s32.totalorder %v866, 64
    %vm899 = vcmp.lt.s32.totalorder %v867, 64
    %vm900 = vcmp.lt.s32.totalorder %v868, 64
    %vm901 = vcmp.lt.s32.totalorder %v869, 64
    %vm902 = vcmp.lt.s32.totalorder %v870, 64
    %vm903 = vcmp.lt.s32.totalorder %v871, 64
    %vm904 = vmand %vm872, %vm888
    %vm905 = vmand %vm873, %vm889
    %vm906 = vmand %vm874, %vm890
    %vm907 = vmand %vm875, %vm891
    %vm908 = vmand %vm876, %vm892
    %vm909 = vmand %vm877, %vm893
    %vm910 = vmand %vm878, %vm894
    %vm911 = vmand %vm879, %vm895
    %vm912 = vmand %vm880, %vm896
    %vm913 = vmand %vm881, %vm897
    %vm914 = vmand %vm882, %vm898
    %vm915 = vmand %vm883, %vm899
    %vm916 = vmand %vm884, %vm900
    %vm917 = vmand %vm885, %vm901
    %vm918 = vmand %vm886, %vm902
    %vm919 = vmand %vm887, %vm903
    %v920 = vsel %vm904, 1, 0
    %v921 = vsel %vm905, 1, 0
    %v922 = vsel %vm906, 1, 0
    %v923 = vsel %vm907, 1, 0
    %v924 = vsel %vm908, 1, 0
    %v925 = vsel %vm909, 1, 0
    %v926 = vsel %vm910, 1, 0
    %v927 = vsel %vm911, 1, 0
    %v928 = vsel %vm912, 1, 0
    %v929 = vsel %vm913, 1, 0
    %v930 = vsel %vm914, 1, 0
    %v931 = vsel %vm915, 1, 0
    %v932 = vsel %vm916, 1, 0
    %v933 = vsel %vm917, 1, 0
    %v934 = vsel %vm918, 1, 0
    %v935 = vsel %vm919, 1, 0
    %vm936 = vcmp.eq.s32.totalorder %v920, 1
    %vm937 = vcmp.eq.s32.totalorder %v921, 1
    %vm938 = vcmp.eq.s32.totalorder %v922, 1
    %vm939 = vcmp.eq.s32.totalorder %v923, 1
    %vm940 = vcmp.eq.s32.totalorder %v924, 1
    %vm941 = vcmp.eq.s32.totalorder %v925, 1
    %vm942 = vcmp.eq.s32.totalorder %v926, 1
    %vm943 = vcmp.eq.s32.totalorder %v927, 1
    %vm944 = vcmp.eq.s32.totalorder %v928, 1
    %vm945 = vcmp.eq.s32.totalorder %v929, 1
    %vm946 = vcmp.eq.s32.totalorder %v930, 1
    %vm947 = vcmp.eq.s32.totalorder %v931, 1
    %vm948 = vcmp.eq.s32.totalorder %v932, 1
    %vm949 = vcmp.eq.s32.totalorder %v933, 1
    %vm950 = vcmp.eq.s32.totalorder %v934, 1
    %vm951 = vcmp.eq.s32.totalorder %v935, 1
    %v952 = vsel %vm936, %v840, 0.0
    %v953 = vsel %vm937, %v841, 0.0
    %v954 = vsel %vm938, %v842, 0.0
    %v955 = vsel %vm939, %v843, 0.0
    %v956 = vsel %vm940, %v844, 0.0
    %v957 = vsel %vm941, %v845, 0.0
    %v958 = vsel %vm942, %v846, 0.0
    %v959 = vsel %vm943, %v847, 0.0
    %v960 = vsel %vm944, %v848, 0.0
    %v961 = vsel %vm945, %v849, 0.0
    %v962 = vsel %vm946, %v850, 0.0
    %v963 = vsel %vm947, %v851, 0.0
    %v964 = vsel %vm948, %v852, 0.0
    %v965 = vsel %vm949, %v853, 0.0
    %v966 = vsel %vm950, %v854, 0.0
    %v967 = vsel %vm951, %v855, 0.0
    %v968 = vpack.c.bf16 %v953, %v952
    %v969 = vpack.c.bf16 %v955, %v954
    %v970 = vpack.c.bf16 %v957, %v956
    %v971 = vpack.c.bf16 %v959, %v958
    %v972 = vpack.c.bf16 %v961, %v960
    %v973 = vpack.c.bf16 %v963, %v962
    %v974 = vpack.c.bf16 %v965, %v964
    %v975 = vpack.c.bf16 %v967, %v966
    %s976 = scalar_lea.vmem %s1, 24
    %v977 = vld [vmem:[%s976] sm:$0xf]
    %v978 = vld [vmem:[%s976 + $0x4] sm:$0x3]
    %v981 = vunpack.c.l.b16 %v977
    %v982 = vunpack.c.l.b16 %v978
    %v983 = vpack.c.b16 %v982, %v981
    %v985 = vsel %vm64, %v968, 0
    %v988 = vsel %vm64, %v969, 0
    %v991 = vsel %vm64, %v970, 0
    %v994 = vsel %vm64, %v971, 0
    %v997 = vsel %vm64, %v972, 0
    %v1000 = vsel %vm64, %v973, 0
    %v1003 = vsel %vm64, %v974, 0
    %v1006 = vsel %vm64, %v975, 0
    %v1009 = vsel %vm438, %v983, 0
    %1011 = vmatprep.subr.bf16.mxu0 0
    %1012 = vmatpush1.bf16.msra.mxu0 %v1009
    %1013 = vmatprep.subr.bf16.mxu0 0
    %1014 = vmatpush1.bf16.msra.mxu0 0
    %1015 = vmatprep.subr.bf16.mxu0 0
    %1016 = vmatpush1.bf16.msra.mxu0 0
    %1017 = vmatprep.subr.bf16.mxu0 0
    %1018 = vmatpush1.bf16.msra.mxu0 0
    %1019 = vmatprep.subr.bf16.mxu0 0
    %1020 = vmatpush1.bf16.msra.mxu0 0
    %1021 = vmatprep.subr.bf16.mxu0 0
    %1022 = vmatpush1.bf16.msra.mxu0 0
    %1023 = vmatprep.subr.bf16.mxu0 0
    %1024 = vmatpush1.bf16.msra.mxu0 0
    %1025 = vmatprep.subr.bf16.mxu0 0
    %1026 = vmatpush1.bf16.msra.mxu0 0
    %1027 = vmatprep.subr.bf16.mxu0 0
    %1028 = vmatpush1.bf16.msra.mxu0 0
    %1029 = vmatprep.subr.bf16.mxu0 0
    %1030 = vmatpush1.bf16.msra.mxu0 0
    %1031 = vmatprep.subr.bf16.mxu0 0
    %1032 = vmatpush1.bf16.msra.mxu0 0
    %1033 = vmatprep.subr.bf16.mxu0 0
    %1034 = vmatpush1.bf16.msra.mxu0 0
    %1035 = vmatprep.subr.bf16.mxu0 0
    %1036 = vmatpush1.bf16.msra.mxu0 0
    %1037 = vmatprep.subr.bf16.mxu0 0
    %1038 = vmatpush1.bf16.msra.mxu0 0
    %1039 = vmatprep.subr.bf16.mxu0 0
    %1040 = vmatpush1.bf16.msra.mxu0 0
    %1041 = vmatprep.subr.bf16.mxu0 0
    %1042 = vmatpush1.bf16.msra.mxu0 0
    %1043 = vmatprep.mubr.bf16.mxu0 0
    %1044 = vmatmul.mubr.bf16.gmra.mrb[0].mxu0 %v985
    %v1045 = vpop.f32.mrb[0].mxu0
    %v1046 = vadd.f32 0.0, %v1045
    %v1047 = vpop.f32.mrb[0].mxu0
    %v1048 = vpop.f32.mrb[0].mxu0
    %v1049 = vadd.f32 0.0, %v1048
    %v1050 = vpop.f32.mrb[0].mxu0
    %1051 = vmatprep.mubr.bf16.mxu0 0
    %1052 = vmatmul.mubr.bf16.gmra.mrb[0].mxu0 %v988
    %v1053 = vpop.f32.mrb[0].mxu0
    %v1054 = vadd.f32 0.0, %v1053
    %v1055 = vpop.f32.mrb[0].mxu0
    %v1056 = vpop.f32.mrb[0].mxu0
    %v1057 = vadd.f32 0.0, %v1056
    %v1058 = vpop.f32.mrb[0].mxu0
    %1059 = vmatprep.mubr.bf16.mxu0 0
    %1060 = vmatmul.mubr.bf16.gmra.mrb[0].mxu0 %v991
    %v1061 = vpop.f32.mrb[0].mxu0
    %v1062 = vadd.f32 0.0, %v1061
    %v1063 = vpop.f32.mrb[0].mxu0
    %v1064 = vpop.f32.mrb[0].mxu0
    %v1065 = vadd.f32 0.0, %v1064
    %v1066 = vpop.f32.mrb[0].mxu0
    %1067 = vmatprep.mubr.bf16.mxu0 0
    %1068 = vmatmul.mubr.bf16.gmra.mrb[0].mxu0 %v994
    %v1069 = vpop.f32.mrb[0].mxu0
    %v1070 = vadd.f32 0.0, %v1069
    %v1071 = vpop.f32.mrb[0].mxu0
    %v1072 = vpop.f32.mrb[0].mxu0
    %v1073 = vadd.f32 0.0, %v1072
    %v1074 = vpop.f32.mrb[0].mxu0
    %1075 = vmatprep.mubr.bf16.mxu0 0
    %1076 = vmatmul.mubr.bf16.gmra.mrb[0].mxu0 %v997
    %v1077 = vpop.f32.mrb[0].mxu0
    %v1078 = vadd.f32 0.0, %v1077
    %v1079 = vpop.f32.mrb[0].mxu0
    %v1080 = vpop.f32.mrb[0].mxu0
    %v1081 = vadd.f32 0.0, %v1080
    %v1082 = vpop.f32.mrb[0].mxu0
    %1083 = vmatprep.mubr.bf16.mxu0 0
    %1084 = vmatmul.mubr.bf16.gmra.mrb[0].mxu0 %v1000
    %v1085 = vpop.f32.mrb[0].mxu0
    %v1086 = vadd.f32 0.0, %v1085
    %v1087 = vpop.f32.mrb[0].mxu0
    %v1088 = vpop.f32.mrb[0].mxu0
    %v1089 = vadd.f32 0.0, %v1088
    %v1090 = vpop.f32.mrb[0].mxu0
    %1091 = vmatprep.mubr.bf16.mxu0 0
    %1092 = vmatmul.mubr.bf16.gmra.mrb[0].mxu0 %v1003
    %v1093 = vpop.f32.mrb[0].mxu0
    %v1094 = vadd.f32 0.0, %v1093
    %v1095 = vpop.f32.mrb[0].mxu0
    %v1096 = vpop.f32.mrb[0].mxu0
    %v1097 = vadd.f32 0.0, %v1096
    %v1098 = vpop.f32.mrb[0].mxu0
    %1099 = vmatprep.mubr.bf16.mxu0 0
    %1100 = vmatmul.mubr.bf16.gmra.mrb[0].mxu0 %v1006
    %v1101 = vpop.f32.mrb[0].mxu0
    %v1102 = vadd.f32 0.0, %v1101
    %v1103 = vpop.f32.mrb[0].mxu0
    %v1104 = vpop.f32.mrb[0].mxu0
    %v1105 = vadd.f32 0.0, %v1104
    %v1106 = vpop.f32.mrb[0].mxu0
    %1107 = vdwg.mxu0
    %v1108 = vadd.f32 %v824, %v1046
    %v1109 = vadd.f32 %v825, %v1049
    %v1110 = vadd.f32 %v826, %v1054
    %v1111 = vadd.f32 %v827, %v1057
    %v1112 = vadd.f32 %v828, %v1062
    %v1113 = vadd.f32 %v829, %v1065
    %v1114 = vadd.f32 %v830, %v1070
    %v1115 = vadd.f32 %v831, %v1073
    %v1116 = vadd.f32 %v832, %v1078
    %v1117 = vadd.f32 %v833, %v1081
    %v1118 = vadd.f32 %v834, %v1086
    %v1119 = vadd.f32 %v835, %v1089
    %v1120 = vadd.f32 %v836, %v1094
    %v1121 = vadd.f32 %v837, %v1097
    %v1122 = vadd.f32 %v838, %v1102
    %v1123 = vadd.f32 %v839, %v1105
    %v1124 = vld [vmem:[#allocation2 + $0xa] sm:$0xff]
    %v1125 = vld [vmem:[#allocation2 + $0x12] sm:$0xff]
    %v1126 = vld [vmem:[#allocation2 + $0x1a] sm:$0xff]
    %v1127 = vld [vmem:[#allocation2 + $0x22] sm:$0xff]
    %v1128 = vld [vmem:[#allocation2 + $0x2a] sm:$0xff]
    %v1129 = vld [vmem:[#allocation2 + $0x32] sm:$0xff]
    %v1130 = vld [vmem:[#allocation2 + $0x3a] sm:$0xff]
    %v1131 = vld [vmem:[#allocation2 + $0x42] sm:$0xff]
    %v1132 = vld [vmem:[#allocation2 + $0x4a] sm:$0xff]
    %v1133 = vld [vmem:[#allocation2 + $0x52] sm:$0xff]
    %v1134 = vld [vmem:[#allocation2 + $0x5a] sm:$0xff]
    %v1135 = vld [vmem:[#allocation2 + $0x62] sm:$0xff]
    %v1136 = vld [vmem:[#allocation2 + $0x6a] sm:$0xff]
    %v1137 = vld [vmem:[#allocation2 + $0x72] sm:$0xff]
    %v1138 = vld [vmem:[#allocation2 + $0x7a] sm:$0xff]
    %v1139 = vld [vmem:[#allocation2 + $0x82] sm:$0xff]
    %v1140 = vadd.s32 %v116, 2
    %v1141 = vadd.s32 %v117, 2
    %v1142 = vadd.s32 %v118, 2
    %v1143 = vadd.s32 %v119, 2
    %v1144 = vadd.s32 %v120, 2
    %v1145 = vadd.s32 %v121, 2
    %v1146 = vadd.s32 %v122, 2
    %v1147 = vadd.s32 %v123, 2
    %v1148 = vadd.s32 %v124, 2
    %v1149 = vadd.s32 %v125, 2
    %v1150 = vadd.s32 %v126, 2
    %v1151 = vadd.s32 %v127, 2
    %v1152 = vadd.s32 %v128, 2
    %v1153 = vadd.s32 %v129, 2
    %v1154 = vadd.s32 %v130, 2
    %v1155 = vadd.s32 %v131, 2
    %vm1156 = vcmp.ge.s32.totalorder %v1140, 0
    %vm1157 = vcmp.ge.s32.totalorder %v1141, 0
    %vm1158 = vcmp.ge.s32.totalorder %v1142, 0
    %vm1159 = vcmp.ge.s32.totalorder %v1143, 0
    %vm1160 = vcmp.ge.s32.totalorder %v1144, 0
    %vm1161 = vcmp.ge.s32.totalorder %v1145, 0
    %vm1162 = vcmp.ge.s32.totalorder %v1146, 0
    %vm1163 = vcmp.ge.s32.totalorder %v1147, 0
    %vm1164 = vcmp.ge.s32.totalorder %v1148, 0
    %vm1165 = vcmp.ge.s32.totalorder %v1149, 0
    %vm1166 = vcmp.ge.s32.totalorder %v1150, 0
    %vm1167 = vcmp.ge.s32.totalorder %v1151, 0
    %vm1168 = vcmp.ge.s32.totalorder %v1152, 0
    %vm1169 = vcmp.ge.s32.totalorder %v1153, 0
    %vm1170 = vcmp.ge.s32.totalorder %v1154, 0
    %vm1171 = vcmp.ge.s32.totalorder %v1155, 0
    %vm1172 = vcmp.lt.s32.totalorder %v1140, 64
    %vm1173 = vcmp.lt.s32.totalorder %v1141, 64
    %vm1174 = vcmp.lt.s32.totalorder %v1142, 64
    %vm1175 = vcmp.lt.s32.totalorder %v1143, 64
    %vm1176 = vcmp.lt.s32.totalorder %v1144, 64
    %vm1177 = vcmp.lt.s32.totalorder %v1145, 64
    %vm1178 = vcmp.lt.s32.totalorder %v1146, 64
    %vm1179 = vcmp.lt.s32.totalorder %v1147, 64
    %vm1180 = vcmp.lt.s32.totalorder %v1148, 64
    %vm1181 = vcmp.lt.s32.totalorder %v1149, 64
    %vm1182 = vcmp.lt.s32.totalorder %v1150, 64
    %vm1183 = vcmp.lt.s32.totalorder %v1151, 64
    %vm1184 = vcmp.lt.s32.totalorder %v1152, 64
    %vm1185 = vcmp.lt.s32.totalorder %v1153, 64
    %vm1186 = vcmp.lt.s32.totalorder %v1154, 64
    %vm1187 = vcmp.lt.s32.totalorder %v1155, 64
    %vm1188 = vmand %vm1156, %vm1172
    %vm1189 = vmand %vm1157, %vm1173
    %vm1190 = vmand %vm1158, %vm1174
    %vm1191 = vmand %vm1159, %vm1175
    %vm1192 = vmand %vm1160, %vm1176
    %vm1193 = vmand %vm1161, %vm1177
    %vm1194 = vmand %vm1162, %vm1178
    %vm1195 = vmand %vm1163, %vm1179
    %vm1196 = vmand %vm1164, %vm1180
    %vm1197 = vmand %vm1165, %vm1181
    %vm1198 = vmand %vm1166, %vm1182
    %vm1199 = vmand %vm1167, %vm1183
    %vm1200 = vmand %vm1168, %vm1184
    %vm1201 = vmand %vm1169, %vm1185
    %vm1202 = vmand %vm1170, %vm1186
    %vm1203 = vmand %vm1171, %vm1187
    %v1204 = vsel %vm1188, 1, 0
    %v1205 = vsel %vm1189, 1, 0
    %v1206 = vsel %vm1190, 1, 0
    %v1207 = vsel %vm1191, 1, 0
    %v1208 = vsel %vm1192, 1, 0
    %v1209 = vsel %vm1193, 1, 0
    %v1210 = vsel %vm1194, 1, 0
    %v1211 = vsel %vm1195, 1, 0
    %v1212 = vsel %vm1196, 1, 0
    %v1213 = vsel %vm1197, 1, 0
    %v1214 = vsel %vm1198, 1, 0
    %v1215 = vsel %vm1199, 1, 0
    %v1216 = vsel %vm1200, 1, 0
    %v1217 = vsel %vm1201, 1, 0
    %v1218 = vsel %vm1202, 1, 0
    %v1219 = vsel %vm1203, 1, 0
    %vm1220 = vcmp.eq.s32.totalorder %v1204, 1
    %vm1221 = vcmp.eq.s32.totalorder %v1205, 1
    %vm1222 = vcmp.eq.s32.totalorder %v1206, 1
    %vm1223 = vcmp.eq.s32.totalorder %v1207, 1
    %vm1224 = vcmp.eq.s32.totalorder %v1208, 1
    %vm1225 = vcmp.eq.s32.totalorder %v1209, 1
    %vm1226 = vcmp.eq.s32.totalorder %v1210, 1
    %vm1227 = vcmp.eq.s32.totalorder %v1211, 1
    %vm1228 = vcmp.eq.s32.totalorder %v1212, 1
    %vm1229 = vcmp.eq.s32.totalorder %v1213, 1
    %vm1230 = vcmp.eq.s32.totalorder %v1214, 1
    %vm1231 = vcmp.eq.s32.totalorder %v1215, 1
    %vm1232 = vcmp.eq.s32.totalorder %v1216, 1
    %vm1233 = vcmp.eq.s32.totalorder %v1217, 1
    %vm1234 = vcmp.eq.s32.totalorder %v1218, 1
    %vm1235 = vcmp.eq.s32.totalorder %v1219, 1
    %v1236 = vsel %vm1220, %v1124, 0.0
    %v1237 = vsel %vm1221, %v1125, 0.0
    %v1238 = vsel %vm1222, %v1126, 0.0
    %v1239 = vsel %vm1223, %v1127, 0.0
    %v1240 = vsel %vm1224, %v1128, 0.0
    %v1241 = vsel %vm1225, %v1129, 0.0
    %v1242 = vsel %vm1226, %v1130, 0.0
    %v1243 = vsel %vm1227, %v1131, 0.0
    %v1244 = vsel %vm1228, %v1132, 0.0
    %v1245 = vsel %vm1229, %v1133, 0.0
    %v1246 = vsel %vm1230, %v1134, 0.0
    %v1247 = vsel %vm1231, %v1135, 0.0
    %v1248 = vsel %vm1232, %v1136, 0.0
    %v1249 = vsel %vm1233, %v1137, 0.0
    %v1250 = vsel %vm1234, %v1138, 0.0
    %v1251 = vsel %vm1235, %v1139, 0.0
    %v1252 = vpack.c.bf16 %v1237, %v1236
    %v1253 = vpack.c.bf16 %v1239, %v1238
    %v1254 = vpack.c.bf16 %v1241, %v1240
    %v1255 = vpack.c.bf16 %v1243, %v1242
    %v1256 = vpack.c.bf16 %v1245, %v1244
    %v1257 = vpack.c.bf16 %v1247, %v1246
    %v1258 = vpack.c.bf16 %v1249, %v1248
    %v1259 = vpack.c.bf16 %v1251, %v1250
    %s1260 = scalar_lea.vmem %s1, 32
    %v1261 = vld [vmem:[%s1260] sm:$0xf]
    %v1262 = vld [vmem:[%s1260 + $0x4] sm:$0x3]
    %v1265 = vunpack.c.l.b16 %v1261
    %v1266 = vunpack.c.l.b16 %v1262
    %v1267 = vpack.c.b16 %v1266, %v1265
    %v1269 = vsel %vm64, %v1252, 0
    %v1272 = vsel %vm64, %v1253, 0
    %v1275 = vsel %vm64, %v1254, 0
    %v1278 = vsel %vm64, %v1255, 0
    %v1281 = vsel %vm64, %v1256, 0
    %v1284 = vsel %vm64, %v1257, 0
    %v1287 = vsel %vm64, %v1258, 0
    %v1290 = vsel %vm64, %v1259, 0
    %v1293 = vsel %vm438, %v1267, 0
    %1295 = vmatprep.subr.bf16.mxu0 0
    %1296 = vmatpush1.bf16.msra.mxu0 %v1293
    %1297 = vmatprep.subr.bf16.mxu0 0
    %1298 = vmatpush1.bf16.msra.mxu0 0
    %1299 = vmatprep.subr.bf16.mxu0 0
    %1300 = vmatpush1.bf16.msra.mxu0 0
    %1301 = vmatprep.subr.bf16.mxu0 0
    %1302 = vmatpush1.bf16.msra.mxu0 0
    %1303 = vmatprep.subr.bf16.mxu0 0
    %1304 = vmatpush1.bf16.msra.mxu0 0
    %1305 = vmatprep.subr.bf16.mxu0 0
    %1306 = vmatpush1.bf16.msra.mxu0 0
    %1307 = vmatprep.subr.bf16.mxu0 0
    %1308 = vmatpush1.bf16.msra.mxu0 0
    %1309 = vmatprep.subr.bf16.mxu0 0
    %1310 = vmatpush1.bf16.msra.mxu0 0
    %1311 = vmatprep.subr.bf16.mxu0 0
    %1312 = vmatpush1.bf16.msra.mxu0 0
    %1313 = vmatprep.subr.bf16.mxu0 0
    %1314 = vmatpush1.bf16.msra.mxu0 0
    %1315 = vmatprep.subr.bf16.mxu0 0
    %1316 = vmatpush1.bf16.msra.mxu0 0
    %1317 = vmatprep.subr.bf16.mxu0 0
    %1318 = vmatpush1.bf16.msra.mxu0 0
    %1319 = vmatprep.subr.bf16.mxu0 0
    %1320 = vmatpush1.bf16.msra.mxu0 0
    %1321 = vmatprep.subr.bf16.mxu0 0
    %1322 = vmatpush1.bf16.msra.mxu0 0
    %1323 = vmatprep.subr.bf16.mxu0 0
    %1324 = vmatpush1.bf16.msra.mxu0 0
    %1325 = vmatprep.subr.bf16.mxu0 0
    %1326 = vmatpush1.bf16.msra.mxu0 0
    %1327 = vmatprep.mubr.bf16.mxu0 0
    %1328 = vmatmul.mubr.bf16.gmra.mrb[0].mxu0 %v1269
    %v1329 = vpop.f32.mrb[0].mxu0
    %v1330 = vadd.f32 0.0, %v1329
    %v1331 = vpop.f32.mrb[0].mxu0
    %v1332 = vpop.f32.mrb[0].mxu0
    %v1333 = vadd.f32 0.0, %v1332
    %v1334 = vpop.f32.mrb[0].mxu0
    %1335 = vmatprep.mubr.bf16.mxu0 0
    %1336 = vmatmul.mubr.bf16.gmra.mrb[0].mxu0 %v1272
    %v1337 = vpop.f32.mrb[0].mxu0
    %v1338 = vadd.f32 0.0, %v1337
    %v1339 = vpop.f32.mrb[0].mxu0
    %v1340 = vpop.f32.mrb[0].mxu0
    %v1341 = vadd.f32 0.0, %v1340
    %v1342 = vpop.f32.mrb[0].mxu0
    %1343 = vmatprep.mubr.bf16.mxu0 0
    %1344 = vmatmul.mubr.bf16.gmra.mrb[0].mxu0 %v1275
    %v1345 = vpop.f32.mrb[0].mxu0
    %v1346 = vadd.f32 0.0, %v1345
    %v1347 = vpop.f32.mrb[0].mxu0
    %v1348 = vpop.f32.mrb[0].mxu0
    %v1349 = vadd.f32 0.0, %v1348
    %v1350 = vpop.f32.mrb[0].mxu0
    %1351 = vmatprep.mubr.bf16.mxu0 0
    %1352 = vmatmul.mubr.bf16.gmra.mrb[0].mxu0 %v1278
    %v1353 = vpop.f32.mrb[0].mxu0
    %v1354 = vadd.f32 0.0, %v1353
    %v1355 = vpop.f32.mrb[0].mxu0
    %v1356 = vpop.f32.mrb[0].mxu0
    %v1357 = vadd.f32 0.0, %v1356
    %v1358 = vpop.f32.mrb[0].mxu0
    %1359 = vmatprep.mubr.bf16.mxu0 0
    %1360 = vmatmul.mubr.bf16.gmra.mrb[0].mxu0 %v1281
    %v1361 = vpop.f32.mrb[0].mxu0
    %v1362 = vadd.f32 0.0, %v1361
    %v1363 = vpop.f32.mrb[0].mxu0
    %v1364 = vpop.f32.mrb[0].mxu0
    %v1365 = vadd.f32 0.0, %v1364
    %v1366 = vpop.f32.mrb[0].mxu0
    %1367 = vmatprep.mubr.bf16.mxu0 0
    %1368 = vmatmul.mubr.bf16.gmra.mrb[0].mxu0 %v1284
    %v1369 = vpop.f32.mrb[0].mxu0
    %v1370 = vadd.f32 0.0, %v1369
    %v1371 = vpop.f32.mrb[0].mxu0
    %v1372 = vpop.f32.mrb[0].mxu0
    %v1373 = vadd.f32 0.0, %v1372
    %v1374 = vpop.f32.mrb[0].mxu0
    %1375 = vmatprep.mubr.bf16.mxu0 0
    %1376 = vmatmul.mubr.bf16.gmra.mrb[0].mxu0 %v1287
    %v1377 = vpop.f32.mrb[0].mxu0
    %v1378 = vadd.f32 0.0, %v1377
    %v1379 = vpop.f32.mrb[0].mxu0
    %v1380 = vpop.f32.mrb[0].mxu0
    %v1381 = vadd.f32 0.0, %v1380
    %v1382 = vpop.f32.mrb[0].mxu0
    %1383 = vmatprep.mubr.bf16.mxu0 0
    %1384 = vmatmul.mubr.bf16.gmra.mrb[0].mxu0 %v1290
    %v1385 = vpop.f32.mrb[0].mxu0
    %v1386 = vadd.f32 0.0, %v1385
    %v1387 = vpop.f32.mrb[0].mxu0
    %v1388 = vpop.f32.mrb[0].mxu0
    %v1389 = vadd.f32 0.0, %v1388
    %v1390 = vpop.f32.mrb[0].mxu0
    %1391 = vdwg.mxu0
    %v1392 = vadd.f32 %v1108, %v1330
    %v1393 = vadd.f32 %v1109, %v1333
    %v1394 = vadd.f32 %v1110, %v1338
    %v1395 = vadd.f32 %v1111, %v1341
    %v1396 = vadd.f32 %v1112, %v1346
    %v1397 = vadd.f32 %v1113, %v1349
    %v1398 = vadd.f32 %v1114, %v1354
    %v1399 = vadd.f32 %v1115, %v1357
    %v1400 = vadd.f32 %v1116, %v1362
    %v1401 = vadd.f32 %v1117, %v1365
    %v1402 = vadd.f32 %v1118, %v1370
    %v1403 = vadd.f32 %v1119, %v1373
    %v1404 = vadd.f32 %v1120, %v1378
    %v1405 = vadd.f32 %v1121, %v1381
    %v1406 = vadd.f32 %v1122, %v1386
    %v1407 = vadd.f32 %v1123, %v1389
    %v1408 = vld [vmem:[%s2] sm:$0x1]
    %v1410 = vlaneseq
    %v1411 = vshrl.u32 %v1410, 7
    %v1412 = vsub.s32 0, %v1411
    %v1413 = vrot.slane %v1408, %v1412
    %v1415 = vmul.f32 %v1392, %v1413
    %v1416 = vmul.f32 %v1393, %v1413
    %v1417 = vmul.f32 %v1394, %v1413
    %v1418 = vmul.f32 %v1395, %v1413
    %v1419 = vmul.f32 %v1396, %v1413
    %v1420 = vmul.f32 %v1397, %v1413
    %v1421 = vmul.f32 %v1398, %v1413
    %v1422 = vmul.f32 %v1399, %v1413
    %v1423 = vmul.f32 %v1400, %v1413
    %v1424 = vmul.f32 %v1401, %v1413
    %v1425 = vmul.f32 %v1402, %v1413
    %v1426 = vmul.f32 %v1403, %v1413
    %v1427 = vmul.f32 %v1404, %v1413
    %v1428 = vmul.f32 %v1405, %v1413
    %v1429 = vmul.f32 %v1406, %v1413
    %v1430 = vmul.f32 %v1407, %v1413
    %v1431 = vld [vmem:[%s3] sm:$0x1]
    %v1433 = vlaneseq
    %v1434 = vshrl.u32 %v1433, 7
    %v1435 = vsub.s32 0, %v1434
    %v1436 = vrot.slane %v1431, %v1435
    %v1438 = vadd.f32 %v1415, %v1436
    %v1439 = vadd.f32 %v1416, %v1436
    %v1440 = vadd.f32 %v1417, %v1436
    %v1441 = vadd.f32 %v1418, %v1436
    %v1442 = vadd.f32 %v1419, %v1436
    %v1443 = vadd.f32 %v1420, %v1436
    %v1444 = vadd.f32 %v1421, %v1436
    %v1445 = vadd.f32 %v1422, %v1436
    %v1446 = vadd.f32 %v1423, %v1436
    %v1447 = vadd.f32 %v1424, %v1436
    %v1448 = vadd.f32 %v1425, %v1436
    %v1449 = vadd.f32 %v1426, %v1436
    %v1450 = vadd.f32 %v1427, %v1436
    %v1451 = vadd.f32 %v1428, %v1436
    %v1452 = vadd.f32 %v1429, %v1436
    %v1453 = vadd.f32 %v1430, %v1436
    %v1454 = vmax.f32 %v1438, 0.0
    %v1455 = vmax.f32 %v1439, 0.0
    %v1456 = vmax.f32 %v1440, 0.0
    %v1457 = vmax.f32 %v1441, 0.0
    %v1458 = vmax.f32 %v1442, 0.0
    %v1459 = vmax.f32 %v1443, 0.0
    %v1460 = vmax.f32 %v1444, 0.0
    %v1461 = vmax.f32 %v1445, 0.0
    %v1462 = vmax.f32 %v1446, 0.0
    %v1463 = vmax.f32 %v1447, 0.0
    %v1464 = vmax.f32 %v1448, 0.0
    %v1465 = vmax.f32 %v1449, 0.0
    %v1466 = vmax.f32 %v1450, 0.0
    %v1467 = vmax.f32 %v1451, 0.0
    %v1468 = vmax.f32 %v1452, 0.0
    %v1469 = vmax.f32 %v1453, 0.0
    %v1486 = vcombine.high %v1454, %v1454
    %v1488 = vunpack.c.l.s4 1983009808
    %v1489 = vunpack.c.0.s8 %v1488
    %v1490 = vlaneseq
    %v1491 = vshrl.u32 %v1490, 7
    %v1492 = vsub.s32 %v1489, %v1491
    %v1493 = vrot.slane %v1454, %v1492
    %v1495 = vunpack.c.l.s4 1983009808
    %v1496 = vunpack.c.0.s8 %v1495
    %v1497 = vlaneseq
    %v1498 = vshrl.u32 %v1497, 7
    %v1499 = vsub.s32 %v1496, %v1498
    %v1500 = vrot.slane %v1486, %v1499
    %v1501 = vcombine.high %v1493, %v1493
    %v1502 = vcombine.high %v1500, %v1500
    %v1503 = vcombine.high %v1455, %v1455
    %v1505 = vunpack.c.l.s4 1983009808
    %v1506 = vunpack.c.0.s8 %v1505
    %v1507 = vlaneseq
    %v1508 = vshrl.u32 %v1507, 7
    %v1509 = vsub.s32 %v1506, %v1508
    %v1510 = vrot.slane %v1455, %v1509
    %v1512 = vunpack.c.l.s4 1983009808
    %v1513 = vunpack.c.0.s8 %v1512
    %v1514 = vlaneseq
    %v1515 = vshrl.u32 %v1514, 7
    %v1516 = vsub.s32 %v1513, %v1515
    %v1517 = vrot.slane %v1503, %v1516
    %v1518 = vcombine.high %v1510, %v1510
    %v1519 = vcombine.high %v1517, %v1517
    %v1520 = vcombine.high %v1456, %v1456
    %v1522 = vunpack.c.l.s4 1983009808
    %v1523 = vunpack.c.0.s8 %v1522
    %v1524 = vlaneseq
    %v1525 = vshrl.u32 %v1524, 7
    %v1526 = vsub.s32 %v1523, %v1525
    %v1527 = vrot.slane %v1456, %v1526
    %v1529 = vunpack.c.l.s4 1983009808
    %v1530 = vunpack.c.0.s8 %v1529
    %v1531 = vlaneseq
    %v1532 = vshrl.u32 %v1531, 7
    %v1533 = vsub.s32 %v1530, %v1532
    %v1534 = vrot.slane %v1520, %v1533
    %v1535 = vcombine.high %v1527, %v1527
    %v1536 = vcombine.high %v1534, %v1534
    %v1537 = vcombine.high %v1457, %v1457
    %v1539 = vunpack.c.l.s4 1983009808
    %v1540 = vunpack.c.0.s8 %v1539
    %v1541 = vlaneseq
    %v1542 = vshrl.u32 %v1541, 7
    %v1543 = vsub.s32 %v1540, %v1542
    %v1544 = vrot.slane %v1457, %v1543
    %v1546 = vunpack.c.l.s4 1983009808
    %v1547 = vunpack.c.0.s8 %v1546
    %v1548 = vlaneseq
    %v1549 = vshrl.u32 %v1548, 7
    %v1550 = vsub.s32 %v1547, %v1549
    %v1551 = vrot.slane %v1537, %v1550
    %v1552 = vcombine.high %v1544, %v1544
    %v1553 = vcombine.high %v1551, %v1551
    %v1554 = vcombine.high %v1458, %v1458
    %v1556 = vunpack.c.l.s4 1983009808
    %v1557 = vunpack.c.0.s8 %v1556
    %v1558 = vlaneseq
    %v1559 = vshrl.u32 %v1558, 7
    %v1560 = vsub.s32 %v1557, %v1559
    %v1561 = vrot.slane %v1458, %v1560
    %v1563 = vunpack.c.l.s4 1983009808
    %v1564 = vunpack.c.0.s8 %v1563
    %v1565 = vlaneseq
    %v1566 = vshrl.u32 %v1565, 7
    %v1567 = vsub.s32 %v1564, %v1566
    %v1568 = vrot.slane %v1554, %v1567
    %v1569 = vcombine.high %v1561, %v1561
    %v1570 = vcombine.high %v1568, %v1568
    %v1571 = vcombine.high %v1459, %v1459
    %v1573 = vunpack.c.l.s4 1983009808
    %v1574 = vunpack.c.0.s8 %v1573
    %v1575 = vlaneseq
    %v1576 = vshrl.u32 %v1575, 7
    %v1577 = vsub.s32 %v1574, %v1576
    %v1578 = vrot.slane %v1459, %v1577
    %v1580 = vunpack.c.l.s4 1983009808
    %v1581 = vunpack.c.0.s8 %v1580
    %v1582 = vlaneseq
    %v1583 = vshrl.u32 %v1582, 7
    %v1584 = vsub.s32 %v1581, %v1583
    %v1585 = vrot.slane %v1571, %v1584
    %v1586 = vcombine.high %v1578, %v1578
    %v1587 = vcombine.high %v1585, %v1585
    %v1588 = vcombine.high %v1460, %v1460
    %v1590 = vunpack.c.l.s4 1983009808
    %v1591 = vunpack.c.0.s8 %v1590
    %v1592 = vlaneseq
    %v1593 = vshrl.u32 %v1592, 7
    %v1594 = vsub.s32 %v1591, %v1593
    %v1595 = vrot.slane %v1460, %v1594
    %v1597 = vunpack.c.l.s4 1983009808
    %v1598 = vunpack.c.0.s8 %v1597
    %v1599 = vlaneseq
    %v1600 = vshrl.u32 %v1599, 7
    %v1601 = vsub.s32 %v1598, %v1600
    %v1602 = vrot.slane %v1588, %v1601
    %v1603 = vcombine.high %v1595, %v1595
    %v1604 = vcombine.high %v1602, %v1602
    %v1605 = vcombine.high %v1461, %v1461
    %v1607 = vunpack.c.l.s4 1983009808
    %v1608 = vunpack.c.0.s8 %v1607
    %v1609 = vlaneseq
    %v1610 = vshrl.u32 %v1609, 7
    %v1611 = vsub.s32 %v1608, %v1610
    %v1612 = vrot.slane %v1461, %v1611
    %v1614 = vunpack.c.l.s4 1983009808
    %v1615 = vunpack.c.0.s8 %v1614
    %v1616 = vlaneseq
    %v1617 = vshrl.u32 %v1616, 7
    %v1618 = vsub.s32 %v1615, %v1617
    %v1619 = vrot.slane %v1605, %v1618
    %v1620 = vcombine.high %v1612, %v1612
    %v1621 = vcombine.high %v1619, %v1619
    %v1622 = vcombine.high %v1462, %v1462
    %v1624 = vunpack.c.l.s4 1983009808
    %v1625 = vunpack.c.0.s8 %v1624
    %v1626 = vlaneseq
    %v1627 = vshrl.u32 %v1626, 7
    %v1628 = vsub.s32 %v1625, %v1627
    %v1629 = vrot.slane %v1462, %v1628
    %v1631 = vunpack.c.l.s4 1983009808
    %v1632 = vunpack.c.0.s8 %v1631
    %v1633 = vlaneseq
    %v1634 = vshrl.u32 %v1633, 7
    %v1635 = vsub.s32 %v1632, %v1634
    %v1636 = vrot.slane %v1622, %v1635
    %v1637 = vcombine.high %v1629, %v1629
    %v1638 = vcombine.high %v1636, %v1636
    %v1639 = vcombine.high %v1463, %v1463
    %v1641 = vunpack.c.l.s4 1983009808
    %v1642 = vunpack.c.0.s8 %v1641
    %v1643 = vlaneseq
    %v1644 = vshrl.u32 %v1643, 7
    %v1645 = vsub.s32 %v1642, %v1644
    %v1646 = vrot.slane %v1463, %v1645
    %v1648 = vunpack.c.l.s4 1983009808
    %v1649 = vunpack.c.0.s8 %v1648
    %v1650 = vlaneseq
    %v1651 = vshrl.u32 %v1650, 7
    %v1652 = vsub.s32 %v1649, %v1651
    %v1653 = vrot.slane %v1639, %v1652
    %v1654 = vcombine.high %v1646, %v1646
    %v1655 = vcombine.high %v1653, %v1653
    %v1656 = vcombine.high %v1464, %v1464
    %v1658 = vunpack.c.l.s4 1983009808
    %v1659 = vunpack.c.0.s8 %v1658
    %v1660 = vlaneseq
    %v1661 = vshrl.u32 %v1660, 7
    %v1662 = vsub.s32 %v1659, %v1661
    %v1663 = vrot.slane %v1464, %v1662
    %v1665 = vunpack.c.l.s4 1983009808
    %v1666 = vunpack.c.0.s8 %v1665
    %v1667 = vlaneseq
    %v1668 = vshrl.u32 %v1667, 7
    %v1669 = vsub.s32 %v1666, %v1668
    %v1670 = vrot.slane %v1656, %v1669
    %v1671 = vcombine.high %v1663, %v1663
    %v1672 = vcombine.high %v1670, %v1670
    %v1673 = vcombine.high %v1465, %v1465
    %v1675 = vunpack.c.l.s4 1983009808
    %v1676 = vunpack.c.0.s8 %v1675
    %v1677 = vlaneseq
    %v1678 = vshrl.u32 %v1677, 7
    %v1679 = vsub.s32 %v1676, %v1678
    %v1680 = vrot.slane %v1465, %v1679
    %v1682 = vunpack.c.l.s4 1983009808
    %v1683 = vunpack.c.0.s8 %v1682
    %v1684 = vlaneseq
    %v1685 = vshrl.u32 %v1684, 7
    %v1686 = vsub.s32 %v1683, %v1685
    %v1687 = vrot.slane %v1673, %v1686
    %v1688 = vcombine.high %v1680, %v1680
    %v1689 = vcombine.high %v1687, %v1687
    %v1690 = vcombine.high %v1466, %v1466
    %v1692 = vunpack.c.l.s4 1983009808
    %v1693 = vunpack.c.0.s8 %v1692
    %v1694 = vlaneseq
    %v1695 = vshrl.u32 %v1694, 7
    %v1696 = vsub.s32 %v1693, %v1695
    %v1697 = vrot.slane %v1466, %v1696
    %v1699 = vunpack.c.l.s4 1983009808
    %v1700 = vunpack.c.0.s8 %v1699
    %v1701 = vlaneseq
    %v1702 = vshrl.u32 %v1701, 7
    %v1703 = vsub.s32 %v1700, %v1702
    %v1704 = vrot.slane %v1690, %v1703
    %v1705 = vcombine.high %v1697, %v1697
    %v1706 = vcombine.high %v1704, %v1704
    %v1707 = vcombine.high %v1467, %v1467
    %v1709 = vunpack.c.l.s4 1983009808
    %v1710 = vunpack.c.0.s8 %v1709
    %v1711 = vlaneseq
    %v1712 = vshrl.u32 %v1711, 7
    %v1713 = vsub.s32 %v1710, %v1712
    %v1714 = vrot.slane %v1467, %v1713
    %v1716 = vunpack.c.l.s4 1983009808
    %v1717 = vunpack.c.0.s8 %v1716
    %v1718 = vlaneseq
    %v1719 = vshrl.u32 %v1718, 7
    %v1720 = vsub.s32 %v1717, %v1719
    %v1721 = vrot.slane %v1707, %v1720
    %v1722 = vcombine.high %v1714, %v1714
    %v1723 = vcombine.high %v1721, %v1721
    %v1724 = vcombine.high %v1468, %v1468
    %v1726 = vunpack.c.l.s4 1983009808
    %v1727 = vunpack.c.0.s8 %v1726
    %v1728 = vlaneseq
    %v1729 = vshrl.u32 %v1728, 7
    %v1730 = vsub.s32 %v1727, %v1729
    %v1731 = vrot.slane %v1468, %v1730
    %v1733 = vunpack.c.l.s4 1983009808
    %v1734 = vunpack.c.0.s8 %v1733
    %v1735 = vlaneseq
    %v1736 = vshrl.u32 %v1735, 7
    %v1737 = vsub.s32 %v1734, %v1736
    %v1738 = vrot.slane %v1724, %v1737
    %v1739 = vcombine.high %v1731, %v1731
    %v1740 = vcombine.high %v1738, %v1738
    %v1741 = vcombine.high %v1469, %v1469
    %v1743 = vunpack.c.l.s4 1983009808
    %v1744 = vunpack.c.0.s8 %v1743
    %v1745 = vlaneseq
    %v1746 = vshrl.u32 %v1745, 7
    %v1747 = vsub.s32 %v1744, %v1746
    %v1748 = vrot.slane %v1469, %v1747
    %v1750 = vunpack.c.l.s4 1983009808
    %v1751 = vunpack.c.0.s8 %v1750
    %v1752 = vlaneseq
    %v1753 = vshrl.u32 %v1752, 7
    %v1754 = vsub.s32 %v1751, %v1753
    %v1755 = vrot.slane %v1741, %v1754
    %v1756 = vcombine.high %v1748, %v1748
    %v1757 = vcombine.high %v1755, %v1755
    %vm1822 = vcmask 254976
    %v1823 = vsel %vm1822, %v1493, -inf
    %v1824 = vrot.slane %v1823, 4
    %v1825 = vmax.f32 %v1823, %v1824
    %v1826 = vrot.slane %v1825, 2
    %v1827 = vmax.f32 %v1825, %v1826
    %v1828 = vrot.slane %v1827, 1
    %v1829 = vmax.f32 %v1827, %v1828
    %v1830 = vsel %vm1822, %v1501, -inf
    %v1831 = vrot.slane %v1830, 4
    %v1832 = vmax.f32 %v1830, %v1831
    %v1833 = vrot.slane %v1832, 2
    %v1834 = vmax.f32 %v1832, %v1833
    %v1835 = vrot.slane %v1834, 1
    %v1836 = vmax.f32 %v1834, %v1835
    %v1837 = vsel %vm1822, %v1500, -inf
    %v1838 = vrot.slane %v1837, 4
    %v1839 = vmax.f32 %v1837, %v1838
    %v1840 = vrot.slane %v1839, 2
    %v1841 = vmax.f32 %v1839, %v1840
    %v1842 = vrot.slane %v1841, 1
    %v1843 = vmax.f32 %v1841, %v1842
    %v1844 = vsel %vm1822, %v1502, -inf
    %v1845 = vrot.slane %v1844, 4
    %v1846 = vmax.f32 %v1844, %v1845
    %v1847 = vrot.slane %v1846, 2
    %v1848 = vmax.f32 %v1846, %v1847
    %v1849 = vrot.slane %v1848, 1
    %v1850 = vmax.f32 %v1848, %v1849
    %v1851 = vsel %vm1822, %v1510, -inf
    %v1852 = vrot.slane %v1851, 4
    %v1853 = vmax.f32 %v1851, %v1852
    %v1854 = vrot.slane %v1853, 2
    %v1855 = vmax.f32 %v1853, %v1854
    %v1856 = vrot.slane %v1855, 1
    %v1857 = vmax.f32 %v1855, %v1856
    %v1858 = vsel %vm1822, %v1518, -inf
    %v1859 = vrot.slane %v1858, 4
    %v1860 = vmax.f32 %v1858, %v1859
    %v1861 = vrot.slane %v1860, 2
    %v1862 = vmax.f32 %v1860, %v1861
    %v1863 = vrot.slane %v1862, 1
    %v1864 = vmax.f32 %v1862, %v1863
    %v1865 = vsel %vm1822, %v1517, -inf
    %v1866 = vrot.slane %v1865, 4
    %v1867 = vmax.f32 %v1865, %v1866
    %v1868 = vrot.slane %v1867, 2
    %v1869 = vmax.f32 %v1867, %v1868
    %v1870 = vrot.slane %v1869, 1
    %v1871 = vmax.f32 %v1869, %v1870
    %v1872 = vsel %vm1822, %v1519, -inf
    %v1873 = vrot.slane %v1872, 4
    %v1874 = vmax.f32 %v1872, %v1873
    %v1875 = vrot.slane %v1874, 2
    %v1876 = vmax.f32 %v1874, %v1875
    %v1877 = vrot.slane %v1876, 1
    %v1878 = vmax.f32 %v1876, %v1877
    %v1879 = vsel %vm1822, %v1527, -inf
    %v1880 = vrot.slane %v1879, 4
    %v1881 = vmax.f32 %v1879, %v1880
    %v1882 = vrot.slane %v1881, 2
    %v1883 = vmax.f32 %v1881, %v1882
    %v1884 = vrot.slane %v1883, 1
    %v1885 = vmax.f32 %v1883, %v1884
    %v1886 = vsel %vm1822, %v1535, -inf
    %v1887 = vrot.slane %v1886, 4
    %v1888 = vmax.f32 %v1886, %v1887
    %v1889 = vrot.slane %v1888, 2
    %v1890 = vmax.f32 %v1888, %v1889
    %v1891 = vrot.slane %v1890, 1
    %v1892 = vmax.f32 %v1890, %v1891
    %v1893 = vsel %vm1822, %v1534, -inf
    %v1894 = vrot.slane %v1893, 4
    %v1895 = vmax.f32 %v1893, %v1894
    %v1896 = vrot.slane %v1895, 2
    %v1897 = vmax.f32 %v1895, %v1896
    %v1898 = vrot.slane %v1897, 1
    %v1899 = vmax.f32 %v1897, %v1898
    %v1900 = vsel %vm1822, %v1536, -inf
    %v1901 = vrot.slane %v1900, 4
    %v1902 = vmax.f32 %v1900, %v1901
    %v1903 = vrot.slane %v1902, 2
    %v1904 = vmax.f32 %v1902, %v1903
    %v1905 = vrot.slane %v1904, 1
    %v1906 = vmax.f32 %v1904, %v1905
    %v1907 = vsel %vm1822, %v1544, -inf
    %v1908 = vrot.slane %v1907, 4
    %v1909 = vmax.f32 %v1907, %v1908
    %v1910 = vrot.slane %v1909, 2
    %v1911 = vmax.f32 %v1909, %v1910
    %v1912 = vrot.slane %v1911, 1
    %v1913 = vmax.f32 %v1911, %v1912
    %v1914 = vsel %vm1822, %v1552, -inf
    %v1915 = vrot.slane %v1914, 4
    %v1916 = vmax.f32 %v1914, %v1915
    %v1917 = vrot.slane %v1916, 2
    %v1918 = vmax.f32 %v1916, %v1917
    %v1919 = vrot.slane %v1918, 1
    %v1920 = vmax.f32 %v1918, %v1919
    %v1921 = vsel %vm1822, %v1551, -inf
    %v1922 = vrot.slane %v1921, 4
    %v1923 = vmax.f32 %v1921, %v1922
    %v1924 = vrot.slane %v1923, 2
    %v1925 = vmax.f32 %v1923, %v1924
    %v1926 = vrot.slane %v1925, 1
    %v1927 = vmax.f32 %v1925, %v1926
    %v1928 = vsel %vm1822, %v1553, -inf
    %v1929 = vrot.slane %v1928, 4
    %v1930 = vmax.f32 %v1928, %v1929
    %v1931 = vrot.slane %v1930, 2
    %v1932 = vmax.f32 %v1930, %v1931
    %v1933 = vrot.slane %v1932, 1
    %v1934 = vmax.f32 %v1932, %v1933
    %v1935 = vsel %vm1822, %v1561, -inf
    %v1936 = vrot.slane %v1935, 4
    %v1937 = vmax.f32 %v1935, %v1936
    %v1938 = vrot.slane %v1937, 2
    %v1939 = vmax.f32 %v1937, %v1938
    %v1940 = vrot.slane %v1939, 1
    %v1941 = vmax.f32 %v1939, %v1940
    %v1942 = vsel %vm1822, %v1569, -inf
    %v1943 = vrot.slane %v1942, 4
    %v1944 = vmax.f32 %v1942, %v1943
    %v1945 = vrot.slane %v1944, 2
    %v1946 = vmax.f32 %v1944, %v1945
    %v1947 = vrot.slane %v1946, 1
    %v1948 = vmax.f32 %v1946, %v1947
    %v1949 = vsel %vm1822, %v1568, -inf
    %v1950 = vrot.slane %v1949, 4
    %v1951 = vmax.f32 %v1949, %v1950
    %v1952 = vrot.slane %v1951, 2
    %v1953 = vmax.f32 %v1951, %v1952
    %v1954 = vrot.slane %v1953, 1
    %v1955 = vmax.f32 %v1953, %v1954
    %v1956 = vsel %vm1822, %v1570, -inf
    %v1957 = vrot.slane %v1956, 4
    %v1958 = vmax.f32 %v1956, %v1957
    %v1959 = vrot.slane %v1958, 2
    %v1960 = vmax.f32 %v1958, %v1959
    %v1961 = vrot.slane %v1960, 1
    %v1962 = vmax.f32 %v1960, %v1961
    %v1963 = vsel %vm1822, %v1578, -inf
    %v1964 = vrot.slane %v1963, 4
    %v1965 = vmax.f32 %v1963, %v1964
    %v1966 = vrot.slane %v1965, 2
    %v1967 = vmax.f32 %v1965, %v1966
    %v1968 = vrot.slane %v1967, 1
    %v1969 = vmax.f32 %v1967, %v1968
    %v1970 = vsel %vm1822, %v1586, -inf
    %v1971 = vrot.slane %v1970, 4
    %v1972 = vmax.f32 %v1970, %v1971
    %v1973 = vrot.slane %v1972, 2
    %v1974 = vmax.f32 %v1972, %v1973
    %v1975 = vrot.slane %v1974, 1
    %v1976 = vmax.f32 %v1974, %v1975
    %v1977 = vsel %vm1822, %v1585, -inf
    %v1978 = vrot.slane %v1977, 4
    %v1979 = vmax.f32 %v1977, %v1978
    %v1980 = vrot.slane %v1979, 2
    %v1981 = vmax.f32 %v1979, %v1980
    %v1982 = vrot.slane %v1981, 1
    %v1983 = vmax.f32 %v1981, %v1982
    %v1984 = vsel %vm1822, %v1587, -inf
    %v1985 = vrot.slane %v1984, 4
    %v1986 = vmax.f32 %v1984, %v1985
    %v1987 = vrot.slane %v1986, 2
    %v1988 = vmax.f32 %v1986, %v1987
    %v1989 = vrot.slane %v1988, 1
    %v1990 = vmax.f32 %v1988, %v1989
    %v1991 = vsel %vm1822, %v1595, -inf
    %v1992 = vrot.slane %v1991, 4
    %v1993 = vmax.f32 %v1991, %v1992
    %v1994 = vrot.slane %v1993, 2
    %v1995 = vmax.f32 %v1993, %v1994
    %v1996 = vrot.slane %v1995, 1
    %v1997 = vmax.f32 %v1995, %v1996
    %v1998 = vsel %vm1822, %v1603, -inf
    %v1999 = vrot.slane %v1998, 4
    %v2000 = vmax.f32 %v1998, %v1999
    %v2001 = vrot.slane %v2000, 2
    %v2002 = vmax.f32 %v2000, %v2001
    %v2003 = vrot.slane %v2002, 1
    %v2004 = vmax.f32 %v2002, %v2003
    %v2005 = vsel %vm1822, %v1602, -inf
    %v2006 = vrot.slane %v2005, 4
    %v2007 = vmax.f32 %v2005, %v2006
    %v2008 = vrot.slane %v2007, 2
    %v2009 = vmax.f32 %v2007, %v2008
    %v2010 = vrot.slane %v2009, 1
    %v2011 = vmax.f32 %v2009, %v2010
    %v2012 = vsel %vm1822, %v1604, -inf
    %v2013 = vrot.slane %v2012, 4
    %v2014 = vmax.f32 %v2012, %v2013
    %v2015 = vrot.slane %v2014, 2
    %v2016 = vmax.f32 %v2014, %v2015
    %v2017 = vrot.slane %v2016, 1
    %v2018 = vmax.f32 %v2016, %v2017
    %v2019 = vsel %vm1822, %v1612, -inf
    %v2020 = vrot.slane %v2019, 4
    %v2021 = vmax.f32 %v2019, %v2020
    %v2022 = vrot.slane %v2021, 2
    %v2023 = vmax.f32 %v2021, %v2022
    %v2024 = vrot.slane %v2023, 1
    %v2025 = vmax.f32 %v2023, %v2024
    %v2026 = vsel %vm1822, %v1620, -inf
    %v2027 = vrot.slane %v2026, 4
    %v2028 = vmax.f32 %v2026, %v2027
    %v2029 = vrot.slane %v2028, 2
    %v2030 = vmax.f32 %v2028, %v2029
    %v2031 = vrot.slane %v2030, 1
    %v2032 = vmax.f32 %v2030, %v2031
    %v2033 = vsel %vm1822, %v1619, -inf
    %v2034 = vrot.slane %v2033, 4
    %v2035 = vmax.f32 %v2033, %v2034
    %v2036 = vrot.slane %v2035, 2
    %v2037 = vmax.f32 %v2035, %v2036
    %v2038 = vrot.slane %v2037, 1
    %v2039 = vmax.f32 %v2037, %v2038
    %v2040 = vsel %vm1822, %v1621, -inf
    %v2041 = vrot.slane %v2040, 4
    %v2042 = vmax.f32 %v2040, %v2041
    %v2043 = vrot.slane %v2042, 2
    %v2044 = vmax.f32 %v2042, %v2043
    %v2045 = vrot.slane %v2044, 1
    %v2046 = vmax.f32 %v2044, %v2045
    %v2047 = vsel %vm1822, %v1629, -inf
    %v2048 = vrot.slane %v2047, 4
    %v2049 = vmax.f32 %v2047, %v2048
    %v2050 = vrot.slane %v2049, 2
    %v2051 = vmax.f32 %v2049, %v2050
    %v2052 = vrot.slane %v2051, 1
    %v2053 = vmax.f32 %v2051, %v2052
    %v2054 = vsel %vm1822, %v1637, -inf
    %v2055 = vrot.slane %v2054, 4
    %v2056 = vmax.f32 %v2054, %v2055
    %v2057 = vrot.slane %v2056, 2
    %v2058 = vmax.f32 %v2056, %v2057
    %v2059 = vrot.slane %v2058, 1
    %v2060 = vmax.f32 %v2058, %v2059
    %v2061 = vsel %vm1822, %v1636, -inf
    %v2062 = vrot.slane %v2061, 4
    %v2063 = vmax.f32 %v2061, %v2062
    %v2064 = vrot.slane %v2063, 2
    %v2065 = vmax.f32 %v2063, %v2064
    %v2066 = vrot.slane %v2065, 1
    %v2067 = vmax.f32 %v2065, %v2066
    %v2068 = vsel %vm1822, %v1638, -inf
    %v2069 = vrot.slane %v2068, 4
    %v2070 = vmax.f32 %v2068, %v2069
    %v2071 = vrot.slane %v2070, 2
    %v2072 = vmax.f32 %v2070, %v2071
    %v2073 = vrot.slane %v2072, 1
    %v2074 = vmax.f32 %v2072, %v2073
    %v2075 = vsel %vm1822, %v1646, -inf
    %v2076 = vrot.slane %v2075, 4
    %v2077 = vmax.f32 %v2075, %v2076
    %v2078 = vrot.slane %v2077, 2
    %v2079 = vmax.f32 %v2077, %v2078
    %v2080 = vrot.slane %v2079, 1
    %v2081 = vmax.f32 %v2079, %v2080
    %v2082 = vsel %vm1822, %v1654, -inf
    %v2083 = vrot.slane %v2082, 4
    %v2084 = vmax.f32 %v2082, %v2083
    %v2085 = vrot.slane %v2084, 2
    %v2086 = vmax.f32 %v2084, %v2085
    %v2087 = vrot.slane %v2086, 1
    %v2088 = vmax.f32 %v2086, %v2087
    %v2089 = vsel %vm1822, %v1653, -inf
    %v2090 = vrot.slane %v2089, 4
    %v2091 = vmax.f32 %v2089, %v2090
    %v2092 = vrot.slane %v2091, 2
    %v2093 = vmax.f32 %v2091, %v2092
    %v2094 = vrot.slane %v2093, 1
    %v2095 = vmax.f32 %v2093, %v2094
    %v2096 = vsel %vm1822, %v1655, -inf
    %v2097 = vrot.slane %v2096, 4
    %v2098 = vmax.f32 %v2096, %v2097
    %v2099 = vrot.slane %v2098, 2
    %v2100 = vmax.f32 %v2098, %v2099
    %v2101 = vrot.slane %v2100, 1
    %v2102 = vmax.f32 %v2100, %v2101
    %v2103 = vsel %vm1822, %v1663, -inf
    %v2104 = vrot.slane %v2103, 4
    %v2105 = vmax.f32 %v2103, %v2104
    %v2106 = vrot.slane %v2105, 2
    %v2107 = vmax.f32 %v2105, %v2106
    %v2108 = vrot.slane %v2107, 1
    %v2109 = vmax.f32 %v2107, %v2108
    %v2110 = vsel %vm1822, %v1671, -inf
    %v2111 = vrot.slane %v2110, 4
    %v2112 = vmax.f32 %v2110, %v2111
    %v2113 = vrot.slane %v2112, 2
    %v2114 = vmax.f32 %v2112, %v2113
    %v2115 = vrot.slane %v2114, 1
    %v2116 = vmax.f32 %v2114, %v2115
    %v2117 = vsel %vm1822, %v1670, -inf
    %v2118 = vrot.slane %v2117, 4
    %v2119 = vmax.f32 %v2117, %v2118
    %v2120 = vrot.slane %v2119, 2
    %v2121 = vmax.f32 %v2119, %v2120
    %v2122 = vrot.slane %v2121, 1
    %v2123 = vmax.f32 %v2121, %v2122
    %v2124 = vsel %vm1822, %v1672, -inf
    %v2125 = vrot.slane %v2124, 4
    %v2126 = vmax.f32 %v2124, %v2125
    %v2127 = vrot.slane %v2126, 2
    %v2128 = vmax.f32 %v2126, %v2127
    %v2129 = vrot.slane %v2128, 1
    %v2130 = vmax.f32 %v2128, %v2129
    %v2131 = vsel %vm1822, %v1680, -inf
    %v2132 = vrot.slane %v2131, 4
    %v2133 = vmax.f32 %v2131, %v2132
    %v2134 = vrot.slane %v2133, 2
    %v2135 = vmax.f32 %v2133, %v2134
    %v2136 = vrot.slane %v2135, 1
    %v2137 = vmax.f32 %v2135, %v2136
    %v2138 = vsel %vm1822, %v1688, -inf
    %v2139 = vrot.slane %v2138, 4
    %v2140 = vmax.f32 %v2138, %v2139
    %v2141 = vrot.slane %v2140, 2
    %v2142 = vmax.f32 %v2140, %v2141
    %v2143 = vrot.slane %v2142, 1
    %v2144 = vmax.f32 %v2142, %v2143
    %v2145 = vsel %vm1822, %v1687, -inf
    %v2146 = vrot.slane %v2145, 4
    %v2147 = vmax.f32 %v2145, %v2146
    %v2148 = vrot.slane %v2147, 2
    %v2149 = vmax.f32 %v2147, %v2148
    %v2150 = vrot.slane %v2149, 1
    %v2151 = vmax.f32 %v2149, %v2150
    %v2152 = vsel %vm1822, %v1689, -inf
    %v2153 = vrot.slane %v2152, 4
    %v2154 = vmax.f32 %v2152, %v2153
    %v2155 = vrot.slane %v2154, 2
    %v2156 = vmax.f32 %v2154, %v2155
    %v2157 = vrot.slane %v2156, 1
    %v2158 = vmax.f32 %v2156, %v2157
    %v2159 = vsel %vm1822, %v1697, -inf
    %v2160 = vrot.slane %v2159, 4
    %v2161 = vmax.f32 %v2159, %v2160
    %v2162 = vrot.slane %v2161, 2
    %v2163 = vmax.f32 %v2161, %v2162
    %v2164 = vrot.slane %v2163, 1
    %v2165 = vmax.f32 %v2163, %v2164
    %v2166 = vsel %vm1822, %v1705, -inf
    %v2167 = vrot.slane %v2166, 4
    %v2168 = vmax.f32 %v2166, %v2167
    %v2169 = vrot.slane %v2168, 2
    %v2170 = vmax.f32 %v2168, %v2169
    %v2171 = vrot.slane %v2170, 1
    %v2172 = vmax.f32 %v2170, %v2171
    %v2173 = vsel %vm1822, %v1704, -inf
    %v2174 = vrot.slane %v2173, 4
    %v2175 = vmax.f32 %v2173, %v2174
    %v2176 = vrot.slane %v2175, 2
    %v2177 = vmax.f32 %v2175, %v2176
    %v2178 = vrot.slane %v2177, 1
    %v2179 = vmax.f32 %v2177, %v2178
    %v2180 = vsel %vm1822, %v1706, -inf
    %v2181 = vrot.slane %v2180, 4
    %v2182 = vmax.f32 %v2180, %v2181
    %v2183 = vrot.slane %v2182, 2
    %v2184 = vmax.f32 %v2182, %v2183
    %v2185 = vrot.slane %v2184, 1
    %v2186 = vmax.f32 %v2184, %v2185
    %v2187 = vsel %vm1822, %v1714, -inf
    %v2188 = vrot.slane %v2187, 4
    %v2189 = vmax.f32 %v2187, %v2188
    %v2190 = vrot.slane %v2189, 2
    %v2191 = vmax.f32 %v2189, %v2190
    %v2192 = vrot.slane %v2191, 1
    %v2193 = vmax.f32 %v2191, %v2192
    %v2194 = vsel %vm1822, %v1722, -inf
    %v2195 = vrot.slane %v2194, 4
    %v2196 = vmax.f32 %v2194, %v2195
    %v2197 = vrot.slane %v2196, 2
    %v2198 = vmax.f32 %v2196, %v2197
    %v2199 = vrot.slane %v2198, 1
    %v2200 = vmax.f32 %v2198, %v2199
    %v2201 = vsel %vm1822, %v1721, -inf
    %v2202 = vrot.slane %v2201, 4
    %v2203 = vmax.f32 %v2201, %v2202
    %v2204 = vrot.slane %v2203, 2
    %v2205 = vmax.f32 %v2203, %v2204
    %v2206 = vrot.slane %v2205, 1
    %v2207 = vmax.f32 %v2205, %v2206
    %v2208 = vsel %vm1822, %v1723, -inf
    %v2209 = vrot.slane %v2208, 4
    %v2210 = vmax.f32 %v2208, %v2209
    %v2211 = vrot.slane %v2210, 2
    %v2212 = vmax.f32 %v2210, %v2211
    %v2213 = vrot.slane %v2212, 1
    %v2214 = vmax.f32 %v2212, %v2213
    %v2215 = vsel %vm1822, %v1731, -inf
    %v2216 = vrot.slane %v2215, 4
    %v2217 = vmax.f32 %v2215, %v2216
    %v2218 = vrot.slane %v2217, 2
    %v2219 = vmax.f32 %v2217, %v2218
    %v2220 = vrot.slane %v2219, 1
    %v2221 = vmax.f32 %v2219, %v2220
    %v2222 = vsel %vm1822, %v1739, -inf
    %v2223 = vrot.slane %v2222, 4
    %v2224 = vmax.f32 %v2222, %v2223
    %v2225 = vrot.slane %v2224, 2
    %v2226 = vmax.f32 %v2224, %v2225
    %v2227 = vrot.slane %v2226, 1
    %v2228 = vmax.f32 %v2226, %v2227
    %v2229 = vsel %vm1822, %v1738, -inf
    %v2230 = vrot.slane %v2229, 4
    %v2231 = vmax.f32 %v2229, %v2230
    %v2232 = vrot.slane %v2231, 2
    %v2233 = vmax.f32 %v2231, %v2232
    %v2234 = vrot.slane %v2233, 1
    %v2235 = vmax.f32 %v2233, %v2234
    %v2236 = vsel %vm1822, %v1740, -inf
    %v2237 = vrot.slane %v2236, 4
    %v2238 = vmax.f32 %v2236, %v2237
    %v2239 = vrot.slane %v2238, 2
    %v2240 = vmax.f32 %v2238, %v2239
    %v2241 = vrot.slane %v2240, 1
    %v2242 = vmax.f32 %v2240, %v2241
    %v2243 = vsel %vm1822, %v1748, -inf
    %v2244 = vrot.slane %v2243, 4
    %v2245 = vmax.f32 %v2243, %v2244
    %v2246 = vrot.slane %v2245, 2
    %v2247 = vmax.f32 %v2245, %v2246
    %v2248 = vrot.slane %v2247, 1
    %v2249 = vmax.f32 %v2247, %v2248
    %v2250 = vsel %vm1822, %v1756, -inf
    %v2251 = vrot.slane %v2250, 4
    %v2252 = vmax.f32 %v2250, %v2251
    %v2253 = vrot.slane %v2252, 2
    %v2254 = vmax.f32 %v2252, %v2253
    %v2255 = vrot.slane %v2254, 1
    %v2256 = vmax.f32 %v2254, %v2255
    %v2257 = vsel %vm1822, %v1755, -inf
    %v2258 = vrot.slane %v2257, 4
    %v2259 = vmax.f32 %v2257, %v2258
    %v2260 = vrot.slane %v2259, 2
    %v2261 = vmax.f32 %v2259, %v2260
    %v2262 = vrot.slane %v2261, 1
    %v2263 = vmax.f32 %v2261, %v2262
    %v2264 = vsel %vm1822, %v1757, -inf
    %v2265 = vrot.slane %v2264, 4
    %v2266 = vmax.f32 %v2264, %v2265
    %v2267 = vrot.slane %v2266, 2
    %v2268 = vmax.f32 %v2266, %v2267
    %v2269 = vrot.slane %v2268, 1
    %v2270 = vmax.f32 %v2268, %v2269
    %vm2271 = vcmask 261120
    %2272 = vst.msk [vmem:[#allocation3] sm:$0xff] %vm2271, 0.0
    %2273 = vst.msk [vmem:[#allocation3 + $0x48] sm:$0xff] %vm2271, 0.0
    %vm2338 = vcmask 1041409
    %v2339 = vsel %vm2338, %v1836, %v1829
    %vm2340 = vcmask 1042434
    %v2341 = vsel %vm2340, %v1843, %v2339
    %vm2342 = vcmask 1043459
    %v2343 = vsel %vm2342, %v1850, %v2341
    %vm2344 = vcmask 1044484
    %v2345 = vsel %vm2344, %v1857, %v2343
    %vm2346 = vcmask 1045509
    %v2347 = vsel %vm2346, %v1864, %v2345
    %vm2348 = vcmask 1046534
    %v2349 = vsel %vm2348, %v1871, %v2347
    %vm2350 = vcmask 1047559
    %v2351 = vsel %vm2350, %v1878, %v2349
    %v2352 = vsel %vm2338, %v1892, %v1885
    %v2353 = vsel %vm2340, %v1899, %v2352
    %v2354 = vsel %vm2342, %v1906, %v2353
    %v2355 = vsel %vm2344, %v1913, %v2354
    %v2356 = vsel %vm2346, %v1920, %v2355
    %v2357 = vsel %vm2348, %v1927, %v2356
    %v2358 = vsel %vm2350, %v1934, %v2357
    %v2359 = vsel %vm2338, %v1948, %v1941
    %v2360 = vsel %vm2340, %v1955, %v2359
    %v2361 = vsel %vm2342, %v1962, %v2360
    %v2362 = vsel %vm2344, %v1969, %v2361
    %v2363 = vsel %vm2346, %v1976, %v2362
    %v2364 = vsel %vm2348, %v1983, %v2363
    %v2365 = vsel %vm2350, %v1990, %v2364
    %v2366 = vsel %vm2338, %v2004, %v1997
    %v2367 = vsel %vm2340, %v2011, %v2366
    %v2368 = vsel %vm2342, %v2018, %v2367
    %v2369 = vsel %vm2344, %v2025, %v2368
    %v2370 = vsel %vm2346, %v2032, %v2369
    %v2371 = vsel %vm2348, %v2039, %v2370
    %v2372 = vsel %vm2350, %v2046, %v2371
    %v2373 = vsel %vm2338, %v2060, %v2053
    %v2374 = vsel %vm2340, %v2067, %v2373
    %v2375 = vsel %vm2342, %v2074, %v2374
    %v2376 = vsel %vm2344, %v2081, %v2375
    %v2377 = vsel %vm2346, %v2088, %v2376
    %v2378 = vsel %vm2348, %v2095, %v2377
    %v2379 = vsel %vm2350, %v2102, %v2378
    %v2380 = vsel %vm2338, %v2116, %v2109
    %v2381 = vsel %vm2340, %v2123, %v2380
    %v2382 = vsel %vm2342, %v2130, %v2381
    %v2383 = vsel %vm2344, %v2137, %v2382
    %v2384 = vsel %vm2346, %v2144, %v2383
    %v2385 = vsel %vm2348, %v2151, %v2384
    %v2386 = vsel %vm2350, %v2158, %v2385
    %v2387 = vsel %vm2338, %v2172, %v2165
    %v2388 = vsel %vm2340, %v2179, %v2387
    %v2389 = vsel %vm2342, %v2186, %v2388
    %v2390 = vsel %vm2344, %v2193, %v2389
    %v2391 = vsel %vm2346, %v2200, %v2390
    %v2392 = vsel %vm2348, %v2207, %v2391
    %v2393 = vsel %vm2350, %v2214, %v2392
    %v2394 = vsel %vm2338, %v2228, %v2221
    %v2395 = vsel %vm2340, %v2235, %v2394
    %v2396 = vsel %vm2342, %v2242, %v2395
    %v2397 = vsel %vm2344, %v2249, %v2396
    %v2398 = vsel %vm2346, %v2256, %v2397
    %v2399 = vsel %vm2348, %v2263, %v2398
    %v2400 = vsel %vm2350, %v2270, %v2399
    %2409 = vst.msk [vmem:[#allocation3 + $0x8] sm:$0xff] %vm2271, %v2351
    %2410 = vst.msk [vmem:[#allocation3 + $0x10] sm:$0xff] %vm2271, %v2358
    %2411 = vst.msk [vmem:[#allocation3 + $0x18] sm:$0xff] %vm2271, %v2365
    %2412 = vst.msk [vmem:[#allocation3 + $0x20] sm:$0xff] %vm2271, %v2372
    %2413 = vst.msk [vmem:[#allocation3 + $0x28] sm:$0xff] %vm2271, %v2379
    %2414 = vst.msk [vmem:[#allocation3 + $0x30] sm:$0xff] %vm2271, %v2386
    %2415 = vst.msk [vmem:[#allocation3 + $0x38] sm:$0xff] %vm2271, %v2393
    %2416 = vst.msk [vmem:[#allocation3 + $0x40] sm:$0xff] %vm2271, %v2400
    %v2417 = vand.u32 %v100, 31
    %v2418 = vand.u32 %v101, 31
    %v2419 = vand.u32 %v102, 31
    %v2420 = vand.u32 %v103, 31
    %v2421 = vand.u32 %v104, 31
    %v2422 = vand.u32 %v105, 31
    %v2423 = vand.u32 %v106, 31
    %v2424 = vand.u32 %v107, 31
    %v2425 = vld [vmem:[#allocation3 + $0x7] sm:$0xff]
    %v2426 = vld [vmem:[#allocation3 + $0xf] sm:$0xff]
    %v2427 = vld [vmem:[#allocation3 + $0x17] sm:$0xff]
    %v2428 = vld [vmem:[#allocation3 + $0x1f] sm:$0xff]
    %v2429 = vld [vmem:[#allocation3 + $0x27] sm:$0xff]
    %v2430 = vld [vmem:[#allocation3 + $0x2f] sm:$0xff]
    %v2431 = vld [vmem:[#allocation3 + $0x37] sm:$0xff]
    %v2432 = vld [vmem:[#allocation3 + $0x3f] sm:$0xff]
    %v2433 = vadd.s32 %v2417, 4294967295
    %v2434 = vadd.s32 %v2418, 4294967295
    %v2435 = vadd.s32 %v2419, 4294967295
    %v2436 = vadd.s32 %v2420, 4294967295
    %v2437 = vadd.s32 %v2421, 4294967295
    %v2438 = vadd.s32 %v2422, 4294967295
    %v2439 = vadd.s32 %v2423, 4294967295
    %v2440 = vadd.s32 %v2424, 4294967295
    %vm2441 = vcmp.ge.s32.totalorder %v2433, 0
    %vm2442 = vcmp.ge.s32.totalorder %v2434, 0
    %vm2443 = vcmp.ge.s32.totalorder %v2435, 0
    %vm2444 = vcmp.ge.s32.totalorder %v2436, 0
    %vm2445 = vcmp.ge.s32.totalorder %v2437, 0
    %vm2446 = vcmp.ge.s32.totalorder %v2438, 0
    %vm2447 = vcmp.ge.s32.totalorder %v2439, 0
    %vm2448 = vcmp.ge.s32.totalorder %v2440, 0
    %vm2449 = vcmp.lt.s32.totalorder %v2433, 32
    %vm2450 = vcmp.lt.s32.totalorder %v2434, 32
    %vm2451 = vcmp.lt.s32.totalorder %v2435, 32
    %vm2452 = vcmp.lt.s32.totalorder %v2436, 32
    %vm2453 = vcmp.lt.s32.totalorder %v2437, 32
    %vm2454 = vcmp.lt.s32.totalorder %v2438, 32
    %vm2455 = vcmp.lt.s32.totalorder %v2439, 32
    %vm2456 = vcmp.lt.s32.totalorder %v2440, 32
    %vm2457 = vmand %vm2441, %vm2449
    %vm2458 = vmand %vm2442, %vm2450
    %vm2459 = vmand %vm2443, %vm2451
    %vm2460 = vmand %vm2444, %vm2452
    %vm2461 = vmand %vm2445, %vm2453
    %vm2462 = vmand %vm2446, %vm2454
    %vm2463 = vmand %vm2447, %vm2455
    %vm2464 = vmand %vm2448, %vm2456
    %v2465 = vsel %vm2457, 1, 0
    %v2466 = vsel %vm2458, 1, 0
    %v2467 = vsel %vm2459, 1, 0
    %v2468 = vsel %vm2460, 1, 0
    %v2469 = vsel %vm2461, 1, 0
    %v2470 = vsel %vm2462, 1, 0
    %v2471 = vsel %vm2463, 1, 0
    %v2472 = vsel %vm2464, 1, 0
    %vm2473 = vcmp.eq.s32.totalorder %v2465, 1
    %vm2474 = vcmp.eq.s32.totalorder %v2466, 1
    %vm2475 = vcmp.eq.s32.totalorder %v2467, 1
    %vm2476 = vcmp.eq.s32.totalorder %v2468, 1
    %vm2477 = vcmp.eq.s32.totalorder %v2469, 1
    %vm2478 = vcmp.eq.s32.totalorder %v2470, 1
    %vm2479 = vcmp.eq.s32.totalorder %v2471, 1
    %vm2480 = vcmp.eq.s32.totalorder %v2472, 1
    %v2481 = vsel %vm2473, %v2425, 0.0
    %v2482 = vsel %vm2474, %v2426, 0.0
    %v2483 = vsel %vm2475, %v2427, 0.0
    %v2484 = vsel %vm2476, %v2428, 0.0
    %v2485 = vsel %vm2477, %v2429, 0.0
    %v2486 = vsel %vm2478, %v2430, 0.0
    %v2487 = vsel %vm2479, %v2431, 0.0
    %v2488 = vsel %vm2480, %v2432, 0.0
    %v2489 = vpack.c.bf16 %v2482, %v2481
    %v2490 = vpack.c.bf16 %v2484, %v2483
    %v2491 = vpack.c.bf16 %v2486, %v2485
    %v2492 = vpack.c.bf16 %v2488, %v2487
    %v2493 = vld [vmem:[%s4] sm:$0xf]
    %v2494 = vld [vmem:[%s4 + $0x4] sm:$0xf]
    %v2495 = vld [vmem:[%s4 + $0x8] sm:$0xf]
    %v2496 = vld [vmem:[%s4 + $0xc] sm:$0xf]
    %v2497 = vld [vmem:[#allocation3 + $0x8] sm:$0xff]
    %v2498 = vld [vmem:[#allocation3 + $0x10] sm:$0xff]
    %v2499 = vld [vmem:[#allocation3 + $0x18] sm:$0xff]
    %v2500 = vld [vmem:[#allocation3 + $0x20] sm:$0xff]
    %v2501 = vld [vmem:[#allocation3 + $0x28] sm:$0xff]
    %v2502 = vld [vmem:[#allocation3 + $0x30] sm:$0xff]
    %v2503 = vld [vmem:[#allocation3 + $0x38] sm:$0xff]
    %v2504 = vld [vmem:[#allocation3 + $0x40] sm:$0xff]
    %v2505 = vpack.c.bf16 %v2498, %v2497
    %v2506 = vpack.c.bf16 %v2500, %v2499
    %v2507 = vpack.c.bf16 %v2502, %v2501
    %v2508 = vpack.c.bf16 %v2504, %v2503
    %s2509 = scalar_lea.vmem %s4, 16
    %v2510 = vld [vmem:[%s2509] sm:$0xf]
    %v2511 = vld [vmem:[%s2509 + $0x4] sm:$0xf]
    %v2512 = vld [vmem:[%s2509 + $0x8] sm:$0xf]
    %v2513 = vld [vmem:[%s2509 + $0xc] sm:$0xf]
    %v2518 = vunpack.c.l.b16 %v2510
    %v2519 = vunpack.c.l.b16 %v2511
    %v2520 = vunpack.c.l.b16 %v2512
    %v2521 = vunpack.c.l.b16 %v2513
    %v2522 = vpack.c.b16 %v2519, %v2518
    %v2523 = vpack.c.b16 %v2521, %v2520
    %v2527 = vsel %vm2271, %v2505, 0
    %v2530 = vsel %vm2271, %v2506, 0
    %v2533 = vsel %vm2271, %v2507, 0
    %v2536 = vsel %vm2271, %v2508, 0
    %2538 = vmatprep.subr.bf16.mxu0 0
    %2539 = vmatpush1.bf16.msra.mxu0 %v2522
    %2540 = vmatprep.subr.bf16.mxu0 0
    %2541 = vmatpush1.bf16.msra.mxu0 %v2523
    %2542 = vmatprep.subr.bf16.mxu0 0
    %2543 = vmatpush1.bf16.msra.mxu0 0
    %2544 = vmatprep.subr.bf16.mxu0 0
    %2545 = vmatpush1.bf16.msra.mxu0 0
    %2546 = vmatprep.subr.bf16.mxu0 0
    %2547 = vmatpush1.bf16.msra.mxu0 0
    %2548 = vmatprep.subr.bf16.mxu0 0
    %2549 = vmatpush1.bf16.msra.mxu0 0
    %2550 = vmatprep.subr.bf16.mxu0 0
    %2551 = vmatpush1.bf16.msra.mxu0 0
    %2552 = vmatprep.subr.bf16.mxu0 0
    %2553 = vmatpush1.bf16.msra.mxu0 0
    %2554 = vmatprep.subr.bf16.mxu0 0
    %2555 = vmatpush1.bf16.msra.mxu0 0
    %2556 = vmatprep.subr.bf16.mxu0 0
    %2557 = vmatpush1.bf16.msra.mxu0 0
    %2558 = vmatprep.subr.bf16.mxu0 0
    %2559 = vmatpush1.bf16.msra.mxu0 0
    %2560 = vmatprep.subr.bf16.mxu0 0
    %2561 = vmatpush1.bf16.msra.mxu0 0
    %2562 = vmatprep.subr.bf16.mxu0 0
    %2563 = vmatpush1.bf16.msra.mxu0 0
    %2564 = vmatprep.subr.bf16.mxu0 0
    %2565 = vmatpush1.bf16.msra.mxu0 0
    %2566 = vmatprep.subr.bf16.mxu0 0
    %2567 = vmatpush1.bf16.msra.mxu0 0
    %2568 = vmatprep.subr.bf16.mxu0 0
    %2569 = vmatpush1.bf16.msra.mxu0 0
    %2570 = vmatprep.mubr.bf16.mxu0 0
    %2571 = vmatmul.mubr.bf16.gmra.mrb[0].mxu0 %v2527
    %v2572 = vpop.f32.mrb[0].mxu0
    %v2573 = vadd.f32 0.0, %v2572
    %v2574 = vpop.f32.mrb[0].mxu0
    %v2575 = vpop.f32.mrb[0].mxu0
    %v2576 = vadd.f32 0.0, %v2575
    %v2577 = vpop.f32.mrb[0].mxu0
    %2578 = vmatprep.mubr.bf16.mxu0 0
    %2579 = vmatmul.mubr.bf16.gmra.mrb[0].mxu0 %v2530
    %v2580 = vpop.f32.mrb[0].mxu0
    %v2581 = vadd.f32 0.0, %v2580
    %v2582 = vpop.f32.mrb[0].mxu0
    %v2583 = vpop.f32.mrb[0].mxu0
    %v2584 = vadd.f32 0.0, %v2583
    %v2585 = vpop.f32.mrb[0].mxu0
    %2586 = vmatprep.mubr.bf16.mxu0 0
    %2587 = vmatmul.mubr.bf16.gmra.mrb[0].mxu0 %v2533
    %v2588 = vpop.f32.mrb[0].mxu0
    %v2589 = vadd.f32 0.0, %v2588
    %v2590 = vpop.f32.mrb[0].mxu0
    %v2591 = vpop.f32.mrb[0].mxu0
    %v2592 = vadd.f32 0.0, %v2591
    %v2593 = vpop.f32.mrb[0].mxu0
    %2594 = vmatprep.mubr.bf16.mxu0 0
    %2595 = vmatmul.mubr.bf16.gmra.mrb[0].mxu0 %v2536
    %v2596 = vpop.f32.mrb[0].mxu0
    %v2597 = vadd.f32 0.0, %v2596
    %v2598 = vpop.f32.mrb[0].mxu0
    %v2599 = vpop.f32.mrb[0].mxu0
    %v2600 = vadd.f32 0.0, %v2599
    %v2601 = vpop.f32.mrb[0].mxu0
    %2602 = vdwg.mxu0
    %v2607 = vunpack.c.l.b16 %v2493
    %v2608 = vunpack.c.l.b16 %v2494
    %v2609 = vunpack.c.l.b16 %v2495
    %v2610 = vunpack.c.l.b16 %v2496
    %v2611 = vpack.c.b16 %v2608, %v2607
    %v2612 = vpack.c.b16 %v2610, %v2609
    %v2616 = vsel %vm2271, %v2489, 0
    %v2619 = vsel %vm2271, %v2490, 0
    %v2622 = vsel %vm2271, %v2491, 0
    %v2625 = vsel %vm2271, %v2492, 0
    %2627 = vmatprep.subr.bf16.mxu0 0
    %2628 = vmatpush1.bf16.msra.mxu0 %v2611
    %2629 = vmatprep.subr.bf16.mxu0 0
    %2630 = vmatpush1.bf16.msra.mxu0 %v2612
    %2631 = vmatprep.subr.bf16.mxu0 0
    %2632 = vmatpush1.bf16.msra.mxu0 0
    %2633 = vmatprep.subr.bf16.mxu0 0
    %2634 = vmatpush1.bf16.msra.mxu0 0
    %2635 = vmatprep.subr.bf16.mxu0 0
    %2636 = vmatpush1.bf16.msra.mxu0 0
    %2637 = vmatprep.subr.bf16.mxu0 0
    %2638 = vmatpush1.bf16.msra.mxu0 0
    %2639 = vmatprep.subr.bf16.mxu0 0
    %2640 = vmatpush1.bf16.msra.mxu0 0
    %2641 = vmatprep.subr.bf16.mxu0 0
    %2642 = vmatpush1.bf16.msra.mxu0 0
    %2643 = vmatprep.subr.bf16.mxu0 0
    %2644 = vmatpush1.bf16.msra.mxu0 0
    %2645 = vmatprep.subr.bf16.mxu0 0
    %2646 = vmatpush1.bf16.msra.mxu0 0
    %2647 = vmatprep.subr.bf16.mxu0 0
    %2648 = vmatpush1.bf16.msra.mxu0 0
    %2649 = vmatprep.subr.bf16.mxu0 0
    %2650 = vmatpush1.bf16.msra.mxu0 0
    %2651 = vmatprep.subr.bf16.mxu0 0
    %2652 = vmatpush1.bf16.msra.mxu0 0
    %2653 = vmatprep.subr.bf16.mxu0 0
    %2654 = vmatpush1.bf16.msra.mxu0 0
    %2655 = vmatprep.subr.bf16.mxu0 0
    %2656 = vmatpush1.bf16.msra.mxu0 0
    %2657 = vmatprep.subr.bf16.mxu0 0
    %2658 = vmatpush1.bf16.msra.mxu0 0
    %2659 = vmatprep.mubr.bf16.mxu0 0
    %2660 = vmatmul.mubr.bf16.gmra.mrb[0].mxu0 %v2616
    %v2661 = vpop.f32.mrb[0].mxu0
    %v2662 = vadd.f32 %v2573, %v2661
    %v2663 = vpop.f32.mrb[0].mxu0
    %v2664 = vpop.f32.mrb[0].mxu0
    %v2665 = vadd.f32 %v2576, %v2664
    %v2666 = vpop.f32.mrb[0].mxu0
    %2667 = vmatprep.mubr.bf16.mxu0 0
    %2668 = vmatmul.mubr.bf16.gmra.mrb[0].mxu0 %v2619
    %v2669 = vpop.f32.mrb[0].mxu0
    %v2670 = vadd.f32 %v2581, %v2669
    %v2671 = vpop.f32.mrb[0].mxu0
    %v2672 = vpop.f32.mrb[0].mxu0
    %v2673 = vadd.f32 %v2584, %v2672
    %v2674 = vpop.f32.mrb[0].mxu0
    %2675 = vmatprep.mubr.bf16.mxu0 0
    %2676 = vmatmul.mubr.bf16.gmra.mrb[0].mxu0 %v2622
    %v2677 = vpop.f32.mrb[0].mxu0
    %v2678 = vadd.f32 %v2589, %v2677
    %v2679 = vpop.f32.mrb[0].mxu0
    %v2680 = vpop.f32.mrb[0].mxu0
    %v2681 = vadd.f32 %v2592, %v2680
    %v2682 = vpop.f32.mrb[0].mxu0
    %2683 = vmatprep.mubr.bf16.mxu0 0
    %2684 = vmatmul.mubr.bf16.gmra.mrb[0].mxu0 %v2625
    %v2685 = vpop.f32.mrb[0].mxu0
    %v2686 = vadd.f32 %v2597, %v2685
    %v2687 = vpop.f32.mrb[0].mxu0
    %v2688 = vpop.f32.mrb[0].mxu0
    %v2689 = vadd.f32 %v2600, %v2688
    %v2690 = vpop.f32.mrb[0].mxu0
    %2691 = vdwg.mxu0
    %v2692 = vld [vmem:[#allocation3 + $0x9] sm:$0xff]
    %v2693 = vld [vmem:[#allocation3 + $0x11] sm:$0xff]
    %v2694 = vld [vmem:[#allocation3 + $0x19] sm:$0xff]
    %v2695 = vld [vmem:[#allocation3 + $0x21] sm:$0xff]
    %v2696 = vld [vmem:[#allocation3 + $0x29] sm:$0xff]
    %v2697 = vld [vmem:[#allocation3 + $0x31] sm:$0xff]
    %v2698 = vld [vmem:[#allocation3 + $0x39] sm:$0xff]
    %v2699 = vld [vmem:[#allocation3 + $0x41] sm:$0xff]
    %v2700 = vadd.s32 %v2417, 1
    %v2701 = vadd.s32 %v2418, 1
    %v2702 = vadd.s32 %v2419, 1
    %v2703 = vadd.s32 %v2420, 1
    %v2704 = vadd.s32 %v2421, 1
    %v2705 = vadd.s32 %v2422, 1
    %v2706 = vadd.s32 %v2423, 1
    %v2707 = vadd.s32 %v2424, 1
    %vm2708 = vcmp.ge.s32.totalorder %v2700, 0
    %vm2709 = vcmp.ge.s32.totalorder %v2701, 0
    %vm2710 = vcmp.ge.s32.totalorder %v2702, 0
    %vm2711 = vcmp.ge.s32.totalorder %v2703, 0
    %vm2712 = vcmp.ge.s32.totalorder %v2704, 0
    %vm2713 = vcmp.ge.s32.totalorder %v2705, 0
    %vm2714 = vcmp.ge.s32.totalorder %v2706, 0
    %vm2715 = vcmp.ge.s32.totalorder %v2707, 0
    %vm2716 = vcmp.lt.s32.totalorder %v2700, 32
    %vm2717 = vcmp.lt.s32.totalorder %v2701, 32
    %vm2718 = vcmp.lt.s32.totalorder %v2702, 32
    %vm2719 = vcmp.lt.s32.totalorder %v2703, 32
    %vm2720 = vcmp.lt.s32.totalorder %v2704, 32
    %vm2721 = vcmp.lt.s32.totalorder %v2705, 32
    %vm2722 = vcmp.lt.s32.totalorder %v2706, 32
    %vm2723 = vcmp.lt.s32.totalorder %v2707, 32
    %vm2724 = vmand %vm2708, %vm2716
    %vm2725 = vmand %vm2709, %vm2717
    %vm2726 = vmand %vm2710, %vm2718
    %vm2727 = vmand %vm2711, %vm2719
    %vm2728 = vmand %vm2712, %vm2720
    %vm2729 = vmand %vm2713, %vm2721
    %vm2730 = vmand %vm2714, %vm2722
    %vm2731 = vmand %vm2715, %vm2723
    %v2732 = vsel %vm2724, 1, 0
    %v2733 = vsel %vm2725, 1, 0
    %v2734 = vsel %vm2726, 1, 0
    %v2735 = vsel %vm2727, 1, 0
    %v2736 = vsel %vm2728, 1, 0
    %v2737 = vsel %vm2729, 1, 0
    %v2738 = vsel %vm2730, 1, 0
    %v2739 = vsel %vm2731, 1, 0
    %vm2740 = vcmp.eq.s32.totalorder %v2732, 1
    %vm2741 = vcmp.eq.s32.totalorder %v2733, 1
    %vm2742 = vcmp.eq.s32.totalorder %v2734, 1
    %vm2743 = vcmp.eq.s32.totalorder %v2735, 1
    %vm2744 = vcmp.eq.s32.totalorder %v2736, 1
    %vm2745 = vcmp.eq.s32.totalorder %v2737, 1
    %vm2746 = vcmp.eq.s32.totalorder %v2738, 1
    %vm2747 = vcmp.eq.s32.totalorder %v2739, 1
    %v2748 = vsel %vm2740, %v2692, 0.0
    %v2749 = vsel %vm2741, %v2693, 0.0
    %v2750 = vsel %vm2742, %v2694, 0.0
    %v2751 = vsel %vm2743, %v2695, 0.0
    %v2752 = vsel %vm2744, %v2696, 0.0
    %v2753 = vsel %vm2745, %v2697, 0.0
    %v2754 = vsel %vm2746, %v2698, 0.0
    %v2755 = vsel %vm2747, %v2699, 0.0
    %v2756 = vpack.c.bf16 %v2749, %v2748
    %v2757 = vpack.c.bf16 %v2751, %v2750
    %v2758 = vpack.c.bf16 %v2753, %v2752
    %v2759 = vpack.c.bf16 %v2755, %v2754
    %s2760 = scalar_lea.vmem %s4, 32
    %v2761 = vld [vmem:[%s2760] sm:$0xf]
    %v2762 = vld [vmem:[%s2760 + $0x4] sm:$0xf]
    %v2763 = vld [vmem:[%s2760 + $0x8] sm:$0xf]
    %v2764 = vld [vmem:[%s2760 + $0xc] sm:$0xf]
    %v2769 = vunpack.c.l.b16 %v2761
    %v2770 = vunpack.c.l.b16 %v2762
    %v2771 = vunpack.c.l.b16 %v2763
    %v2772 = vunpack.c.l.b16 %v2764
    %v2773 = vpack.c.b16 %v2770, %v2769
    %v2774 = vpack.c.b16 %v2772, %v2771
    %v2778 = vsel %vm2271, %v2756, 0
    %v2781 = vsel %vm2271, %v2757, 0
    %v2784 = vsel %vm2271, %v2758, 0
    %v2787 = vsel %vm2271, %v2759, 0
    %2789 = vmatprep.subr.bf16.mxu0 0
    %2790 = vmatpush1.bf16.msra.mxu0 %v2773
    %2791 = vmatprep.subr.bf16.mxu0 0
    %2792 = vmatpush1.bf16.msra.mxu0 %v2774
    %2793 = vmatprep.subr.bf16.mxu0 0
    %2794 = vmatpush1.bf16.msra.mxu0 0
    %2795 = vmatprep.subr.bf16.mxu0 0
    %2796 = vmatpush1.bf16.msra.mxu0 0
    %2797 = vmatprep.subr.bf16.mxu0 0
    %2798 = vmatpush1.bf16.msra.mxu0 0
    %2799 = vmatprep.subr.bf16.mxu0 0
    %2800 = vmatpush1.bf16.msra.mxu0 0
    %2801 = vmatprep.subr.bf16.mxu0 0
    %2802 = vmatpush1.bf16.msra.mxu0 0
    %2803 = vmatprep.subr.bf16.mxu0 0
    %2804 = vmatpush1.bf16.msra.mxu0 0
    %2805 = vmatprep.subr.bf16.mxu0 0
    %2806 = vmatpush1.bf16.msra.mxu0 0
    %2807 = vmatprep.subr.bf16.mxu0 0
    %2808 = vmatpush1.bf16.msra.mxu0 0
    %2809 = vmatprep.subr.bf16.mxu0 0
    %2810 = vmatpush1.bf16.msra.mxu0 0
    %2811 = vmatprep.subr.bf16.mxu0 0
    %2812 = vmatpush1.bf16.msra.mxu0 0
    %2813 = vmatprep.subr.bf16.mxu0 0
    %2814 = vmatpush1.bf16.msra.mxu0 0
    %2815 = vmatprep.subr.bf16.mxu0 0
    %2816 = vmatpush1.bf16.msra.mxu0 0
    %2817 = vmatprep.subr.bf16.mxu0 0
    %2818 = vmatpush1.bf16.msra.mxu0 0
    %2819 = vmatprep.subr.bf16.mxu0 0
    %2820 = vmatpush1.bf16.msra.mxu0 0
    %2821 = vmatprep.mubr.bf16.mxu0 0
    %2822 = vmatmul.mubr.bf16.gmra.mrb[0].mxu0 %v2778
    %v2823 = vpop.f32.mrb[0].mxu0
    %v2824 = vadd.f32 0.0, %v2823
    %v2825 = vpop.f32.mrb[0].mxu0
    %v2826 = vpop.f32.mrb[0].mxu0
    %v2827 = vadd.f32 0.0, %v2826
    %v2828 = vpop.f32.mrb[0].mxu0
    %2829 = vmatprep.mubr.bf16.mxu0 0
    %2830 = vmatmul.mubr.bf16.gmra.mrb[0].mxu0 %v2781
    %v2831 = vpop.f32.mrb[0].mxu0
    %v2832 = vadd.f32 0.0, %v2831
    %v2833 = vpop.f32.mrb[0].mxu0
    %v2834 = vpop.f32.mrb[0].mxu0
    %v2835 = vadd.f32 0.0, %v2834
    %v2836 = vpop.f32.mrb[0].mxu0
    %2837 = vmatprep.mubr.bf16.mxu0 0
    %2838 = vmatmul.mubr.bf16.gmra.mrb[0].mxu0 %v2784
    %v2839 = vpop.f32.mrb[0].mxu0
    %v2840 = vadd.f32 0.0, %v2839
    %v2841 = vpop.f32.mrb[0].mxu0
    %v2842 = vpop.f32.mrb[0].mxu0
    %v2843 = vadd.f32 0.0, %v2842
    %v2844 = vpop.f32.mrb[0].mxu0
    %2845 = vmatprep.mubr.bf16.mxu0 0
    %2846 = vmatmul.mubr.bf16.gmra.mrb[0].mxu0 %v2787
    %v2847 = vpop.f32.mrb[0].mxu0
    %v2848 = vadd.f32 0.0, %v2847
    %v2849 = vpop.f32.mrb[0].mxu0
    %v2850 = vpop.f32.mrb[0].mxu0
    %v2851 = vadd.f32 0.0, %v2850
    %v2852 = vpop.f32.mrb[0].mxu0
    %2853 = vdwg.mxu0
    %v2854 = vadd.f32 %v2662, %v2824
    %v2855 = vadd.f32 %v2665, %v2827
    %v2856 = vadd.f32 %v2670, %v2832
    %v2857 = vadd.f32 %v2673, %v2835
    %v2858 = vadd.f32 %v2678, %v2840
    %v2859 = vadd.f32 %v2681, %v2843
    %v2860 = vadd.f32 %v2686, %v2848
    %v2861 = vadd.f32 %v2689, %v2851
    %v2862 = vld [vmem:[%s5] sm:$0x1]
    %v2864 = vlaneseq
    %v2865 = vshrl.u32 %v2864, 7
    %v2866 = vsub.s32 0, %v2865
    %v2867 = vrot.slane %v2862, %v2866
    %v2869 = vmul.f32 %v2854, %v2867
    %v2870 = vmul.f32 %v2855, %v2867
    %v2871 = vmul.f32 %v2856, %v2867
    %v2872 = vmul.f32 %v2857, %v2867
    %v2873 = vmul.f32 %v2858, %v2867
    %v2874 = vmul.f32 %v2859, %v2867
    %v2875 = vmul.f32 %v2860, %v2867
    %v2876 = vmul.f32 %v2861, %v2867
    %v2877 = vld [vmem:[%s6] sm:$0x1]
    %v2879 = vlaneseq
    %v2880 = vshrl.u32 %v2879, 7
    %v2881 = vsub.s32 0, %v2880
    %v2882 = vrot.slane %v2877, %v2881
    %v2884 = vadd.f32 %v2869, %v2882
    %v2885 = vadd.f32 %v2870, %v2882
    %v2886 = vadd.f32 %v2871, %v2882
    %v2887 = vadd.f32 %v2872, %v2882
    %v2888 = vadd.f32 %v2873, %v2882
    %v2889 = vadd.f32 %v2874, %v2882
    %v2890 = vadd.f32 %v2875, %v2882
    %v2891 = vadd.f32 %v2876, %v2882
    %v2892 = vmax.f32 %v2884, 0.0
    %v2893 = vmax.f32 %v2885, 0.0
    %v2894 = vmax.f32 %v2886, 0.0
    %v2895 = vmax.f32 %v2887, 0.0
    %v2896 = vmax.f32 %v2888, 0.0
    %v2897 = vmax.f32 %v2889, 0.0
    %v2898 = vmax.f32 %v2890, 0.0
    %v2899 = vmax.f32 %v2891, 0.0
    %v2908 = vcombine.high %v2892, %v2892
    %v2910 = vunpack.c.l.s4 1983009808
    %v2911 = vunpack.c.0.s8 %v2910
    %v2912 = vlaneseq
    %v2913 = vshrl.u32 %v2912, 7
    %v2914 = vsub.s32 %v2911, %v2913
    %v2915 = vrot.slane %v2892, %v2914
    %v2917 = vunpack.c.l.s4 1983009808
    %v2918 = vunpack.c.0.s8 %v2917
    %v2919 = vlaneseq
    %v2920 = vshrl.u32 %v2919, 7
    %v2921 = vsub.s32 %v2918, %v2920
    %v2922 = vrot.slane %v2908, %v2921
    %v2923 = vcombine.high %v2915, %v2915
    %v2924 = vcombine.high %v2922, %v2922
    %v2925 = vcombine.high %v2893, %v2893
    %v2927 = vunpack.c.l.s4 1983009808
    %v2928 = vunpack.c.0.s8 %v2927
    %v2929 = vlaneseq
    %v2930 = vshrl.u32 %v2929, 7
    %v2931 = vsub.s32 %v2928, %v2930
    %v2932 = vrot.slane %v2893, %v2931
    %v2934 = vunpack.c.l.s4 1983009808
    %v2935 = vunpack.c.0.s8 %v2934
    %v2936 = vlaneseq
    %v2937 = vshrl.u32 %v2936, 7
    %v2938 = vsub.s32 %v2935, %v2937
    %v2939 = vrot.slane %v2925, %v2938
    %v2940 = vcombine.high %v2932, %v2932
    %v2941 = vcombine.high %v2939, %v2939
    %v2942 = vcombine.high %v2894, %v2894
    %v2944 = vunpack.c.l.s4 1983009808
    %v2945 = vunpack.c.0.s8 %v2944
    %v2946 = vlaneseq
    %v2947 = vshrl.u32 %v2946, 7
    %v2948 = vsub.s32 %v2945, %v2947
    %v2949 = vrot.slane %v2894, %v2948
    %v2951 = vunpack.c.l.s4 1983009808
    %v2952 = vunpack.c.0.s8 %v2951
    %v2953 = vlaneseq
    %v2954 = vshrl.u32 %v2953, 7
    %v2955 = vsub.s32 %v2952, %v2954
    %v2956 = vrot.slane %v2942, %v2955
    %v2957 = vcombine.high %v2949, %v2949
    %v2958 = vcombine.high %v2956, %v2956
    %v2959 = vcombine.high %v2895, %v2895
    %v2961 = vunpack.c.l.s4 1983009808
    %v2962 = vunpack.c.0.s8 %v2961
    %v2963 = vlaneseq
    %v2964 = vshrl.u32 %v2963, 7
    %v2965 = vsub.s32 %v2962, %v2964
    %v2966 = vrot.slane %v2895, %v2965
    %v2968 = vunpack.c.l.s4 1983009808
    %v2969 = vunpack.c.0.s8 %v2968
    %v2970 = vlaneseq
    %v2971 = vshrl.u32 %v2970, 7
    %v2972 = vsub.s32 %v2969, %v2971
    %v2973 = vrot.slane %v2959, %v2972
    %v2974 = vcombine.high %v2966, %v2966
    %v2975 = vcombine.high %v2973, %v2973
    %v2976 = vcombine.high %v2896, %v2896
    %v2978 = vunpack.c.l.s4 1983009808
    %v2979 = vunpack.c.0.s8 %v2978
    %v2980 = vlaneseq
    %v2981 = vshrl.u32 %v2980, 7
    %v2982 = vsub.s32 %v2979, %v2981
    %v2983 = vrot.slane %v2896, %v2982
    %v2985 = vunpack.c.l.s4 1983009808
    %v2986 = vunpack.c.0.s8 %v2985
    %v2987 = vlaneseq
    %v2988 = vshrl.u32 %v2987, 7
    %v2989 = vsub.s32 %v2986, %v2988
    %v2990 = vrot.slane %v2976, %v2989
    %v2991 = vcombine.high %v2983, %v2983
    %v2992 = vcombine.high %v2990, %v2990
    %v2993 = vcombine.high %v2897, %v2897
    %v2995 = vunpack.c.l.s4 1983009808
    %v2996 = vunpack.c.0.s8 %v2995
    %v2997 = vlaneseq
    %v2998 = vshrl.u32 %v2997, 7
    %v2999 = vsub.s32 %v2996, %v2998
    %v3000 = vrot.slane %v2897, %v2999
    %v3002 = vunpack.c.l.s4 1983009808
    %v3003 = vunpack.c.0.s8 %v3002
    %v3004 = vlaneseq
    %v3005 = vshrl.u32 %v3004, 7
    %v3006 = vsub.s32 %v3003, %v3005
    %v3007 = vrot.slane %v2993, %v3006
    %v3008 = vcombine.high %v3000, %v3000
    %v3009 = vcombine.high %v3007, %v3007
    %v3010 = vcombine.high %v2898, %v2898
    %v3012 = vunpack.c.l.s4 1983009808
    %v3013 = vunpack.c.0.s8 %v3012
    %v3014 = vlaneseq
    %v3015 = vshrl.u32 %v3014, 7
    %v3016 = vsub.s32 %v3013, %v3015
    %v3017 = vrot.slane %v2898, %v3016
    %v3019 = vunpack.c.l.s4 1983009808
    %v3020 = vunpack.c.0.s8 %v3019
    %v3021 = vlaneseq
    %v3022 = vshrl.u32 %v3021, 7
    %v3023 = vsub.s32 %v3020, %v3022
    %v3024 = vrot.slane %v3010, %v3023
    %v3025 = vcombine.high %v3017, %v3017
    %v3026 = vcombine.high %v3024, %v3024
    %v3027 = vcombine.high %v2899, %v2899
    %v3029 = vunpack.c.l.s4 1983009808
    %v3030 = vunpack.c.0.s8 %v3029
    %v3031 = vlaneseq
    %v3032 = vshrl.u32 %v3031, 7
    %v3033 = vsub.s32 %v3030, %v3032
    %v3034 = vrot.slane %v2899, %v3033
    %v3036 = vunpack.c.l.s4 1983009808
    %v3037 = vunpack.c.0.s8 %v3036
    %v3038 = vlaneseq
    %v3039 = vshrl.u32 %v3038, 7
    %v3040 = vsub.s32 %v3037, %v3039
    %v3041 = vrot.slane %v3027, %v3040
    %v3042 = vcombine.high %v3034, %v3034
    %v3043 = vcombine.high %v3041, %v3041
    %vm3076 = vcmask 517120
    %v3077 = vsel %vm3076, %v2915, -inf
    %v3078 = vrot.slane %v3077, 4
    %v3079 = vmax.f32 %v3077, %v3078
    %v3080 = vrot.slane %v3079, 2
    %v3081 = vmax.f32 %v3079, %v3080
    %v3082 = vrot.slane %v3081, 1
    %v3083 = vmax.f32 %v3081, %v3082
    %v3084 = vsel %vm3076, %v2923, -inf
    %v3085 = vrot.slane %v3084, 4
    %v3086 = vmax.f32 %v3084, %v3085
    %v3087 = vrot.slane %v3086, 2
    %v3088 = vmax.f32 %v3086, %v3087
    %v3089 = vrot.slane %v3088, 1
    %v3090 = vmax.f32 %v3088, %v3089
    %v3091 = vsel %vm3076, %v2922, -inf
    %v3092 = vrot.slane %v3091, 4
    %v3093 = vmax.f32 %v3091, %v3092
    %v3094 = vrot.slane %v3093, 2
    %v3095 = vmax.f32 %v3093, %v3094
    %v3096 = vrot.slane %v3095, 1
    %v3097 = vmax.f32 %v3095, %v3096
    %v3098 = vsel %vm3076, %v2924, -inf
    %v3099 = vrot.slane %v3098, 4
    %v3100 = vmax.f32 %v3098, %v3099
    %v3101 = vrot.slane %v3100, 2
    %v3102 = vmax.f32 %v3100, %v3101
    %v3103 = vrot.slane %v3102, 1
    %v3104 = vmax.f32 %v3102, %v3103
    %v3105 = vsel %vm3076, %v2932, -inf
    %v3106 = vrot.slane %v3105, 4
    %v3107 = vmax.f32 %v3105, %v3106
    %v3108 = vrot.slane %v3107, 2
    %v3109 = vmax.f32 %v3107, %v3108
    %v3110 = vrot.slane %v3109, 1
    %v3111 = vmax.f32 %v3109, %v3110
    %v3112 = vsel %vm3076, %v2940, -inf
    %v3113 = vrot.slane %v3112, 4
    %v3114 = vmax.f32 %v3112, %v3113
    %v3115 = vrot.slane %v3114, 2
    %v3116 = vmax.f32 %v3114, %v3115
    %v3117 = vrot.slane %v3116, 1
    %v3118 = vmax.f32 %v3116, %v3117
    %v3119 = vsel %vm3076, %v2939, -inf
    %v3120 = vrot.slane %v3119, 4
    %v3121 = vmax.f32 %v3119, %v3120
    %v3122 = vrot.slane %v3121, 2
    %v3123 = vmax.f32 %v3121, %v3122
    %v3124 = vrot.slane %v3123, 1
    %v3125 = vmax.f32 %v3123, %v3124
    %v3126 = vsel %vm3076, %v2941, -inf
    %v3127 = vrot.slane %v3126, 4
    %v3128 = vmax.f32 %v3126, %v3127
    %v3129 = vrot.slane %v3128, 2
    %v3130 = vmax.f32 %v3128, %v3129
    %v3131 = vrot.slane %v3130, 1
    %v3132 = vmax.f32 %v3130, %v3131
    %v3133 = vsel %vm3076, %v2949, -inf
    %v3134 = vrot.slane %v3133, 4
    %v3135 = vmax.f32 %v3133, %v3134
    %v3136 = vrot.slane %v3135, 2
    %v3137 = vmax.f32 %v3135, %v3136
    %v3138 = vrot.slane %v3137, 1
    %v3139 = vmax.f32 %v3137, %v3138
    %v3140 = vsel %vm3076, %v2957, -inf
    %v3141 = vrot.slane %v3140, 4
    %v3142 = vmax.f32 %v3140, %v3141
    %v3143 = vrot.slane %v3142, 2
    %v3144 = vmax.f32 %v3142, %v3143
    %v3145 = vrot.slane %v3144, 1
    %v3146 = vmax.f32 %v3144, %v3145
    %v3147 = vsel %vm3076, %v2956, -inf
    %v3148 = vrot.slane %v3147, 4
    %v3149 = vmax.f32 %v3147, %v3148
    %v3150 = vrot.slane %v3149, 2
    %v3151 = vmax.f32 %v3149, %v3150
    %v3152 = vrot.slane %v3151, 1
    %v3153 = vmax.f32 %v3151, %v3152
    %v3154 = vsel %vm3076, %v2958, -inf
    %v3155 = vrot.slane %v3154, 4
    %v3156 = vmax.f32 %v3154, %v3155
    %v3157 = vrot.slane %v3156, 2
    %v3158 = vmax.f32 %v3156, %v3157
    %v3159 = vrot.slane %v3158, 1
    %v3160 = vmax.f32 %v3158, %v3159
    %v3161 = vsel %vm3076, %v2966, -inf
    %v3162 = vrot.slane %v3161, 4
    %v3163 = vmax.f32 %v3161, %v3162
    %v3164 = vrot.slane %v3163, 2
    %v3165 = vmax.f32 %v3163, %v3164
    %v3166 = vrot.slane %v3165, 1
    %v3167 = vmax.f32 %v3165, %v3166
    %v3168 = vsel %vm3076, %v2974, -inf
    %v3169 = vrot.slane %v3168, 4
    %v3170 = vmax.f32 %v3168, %v3169
    %v3171 = vrot.slane %v3170, 2
    %v3172 = vmax.f32 %v3170, %v3171
    %v3173 = vrot.slane %v3172, 1
    %v3174 = vmax.f32 %v3172, %v3173
    %v3175 = vsel %vm3076, %v2973, -inf
    %v3176 = vrot.slane %v3175, 4
    %v3177 = vmax.f32 %v3175, %v3176
    %v3178 = vrot.slane %v3177, 2
    %v3179 = vmax.f32 %v3177, %v3178
    %v3180 = vrot.slane %v3179, 1
    %v3181 = vmax.f32 %v3179, %v3180
    %v3182 = vsel %vm3076, %v2975, -inf
    %v3183 = vrot.slane %v3182, 4
    %v3184 = vmax.f32 %v3182, %v3183
    %v3185 = vrot.slane %v3184, 2
    %v3186 = vmax.f32 %v3184, %v3185
    %v3187 = vrot.slane %v3186, 1
    %v3188 = vmax.f32 %v3186, %v3187
    %v3189 = vsel %vm3076, %v2983, -inf
    %v3190 = vrot.slane %v3189, 4
    %v3191 = vmax.f32 %v3189, %v3190
    %v3192 = vrot.slane %v3191, 2
    %v3193 = vmax.f32 %v3191, %v3192
    %v3194 = vrot.slane %v3193, 1
    %v3195 = vmax.f32 %v3193, %v3194
    %v3196 = vsel %vm3076, %v2991, -inf
    %v3197 = vrot.slane %v3196, 4
    %v3198 = vmax.f32 %v3196, %v3197
    %v3199 = vrot.slane %v3198, 2
    %v3200 = vmax.f32 %v3198, %v3199
    %v3201 = vrot.slane %v3200, 1
    %v3202 = vmax.f32 %v3200, %v3201
    %v3203 = vsel %vm3076, %v2990, -inf
    %v3204 = vrot.slane %v3203, 4
    %v3205 = vmax.f32 %v3203, %v3204
    %v3206 = vrot.slane %v3205, 2
    %v3207 = vmax.f32 %v3205, %v3206
    %v3208 = vrot.slane %v3207, 1
    %v3209 = vmax.f32 %v3207, %v3208
    %v3210 = vsel %vm3076, %v2992, -inf
    %v3211 = vrot.slane %v3210, 4
    %v3212 = vmax.f32 %v3210, %v3211
    %v3213 = vrot.slane %v3212, 2
    %v3214 = vmax.f32 %v3212, %v3213
    %v3215 = vrot.slane %v3214, 1
    %v3216 = vmax.f32 %v3214, %v3215
    %v3217 = vsel %vm3076, %v3000, -inf
    %v3218 = vrot.slane %v3217, 4
    %v3219 = vmax.f32 %v3217, %v3218
    %v3220 = vrot.slane %v3219, 2
    %v3221 = vmax.f32 %v3219, %v3220
    %v3222 = vrot.slane %v3221, 1
    %v3223 = vmax.f32 %v3221, %v3222
    %v3224 = vsel %vm3076, %v3008, -inf
    %v3225 = vrot.slane %v3224, 4
    %v3226 = vmax.f32 %v3224, %v3225
    %v3227 = vrot.slane %v3226, 2
    %v3228 = vmax.f32 %v3226, %v3227
    %v3229 = vrot.slane %v3228, 1
    %v3230 = vmax.f32 %v3228, %v3229
    %v3231 = vsel %vm3076, %v3007, -inf
    %v3232 = vrot.slane %v3231, 4
    %v3233 = vmax.f32 %v3231, %v3232
    %v3234 = vrot.slane %v3233, 2
    %v3235 = vmax.f32 %v3233, %v3234
    %v3236 = vrot.slane %v3235, 1
    %v3237 = vmax.f32 %v3235, %v3236
    %v3238 = vsel %vm3076, %v3009, -inf
    %v3239 = vrot.slane %v3238, 4
    %v3240 = vmax.f32 %v3238, %v3239
    %v3241 = vrot.slane %v3240, 2
    %v3242 = vmax.f32 %v3240, %v3241
    %v3243 = vrot.slane %v3242, 1
    %v3244 = vmax.f32 %v3242, %v3243
    %v3245 = vsel %vm3076, %v3017, -inf
    %v3246 = vrot.slane %v3245, 4
    %v3247 = vmax.f32 %v3245, %v3246
    %v3248 = vrot.slane %v3247, 2
    %v3249 = vmax.f32 %v3247, %v3248
    %v3250 = vrot.slane %v3249, 1
    %v3251 = vmax.f32 %v3249, %v3250
    %v3252 = vsel %vm3076, %v3025, -inf
    %v3253 = vrot.slane %v3252, 4
    %v3254 = vmax.f32 %v3252, %v3253
    %v3255 = vrot.slane %v3254, 2
    %v3256 = vmax.f32 %v3254, %v3255
    %v3257 = vrot.slane %v3256, 1
    %v3258 = vmax.f32 %v3256, %v3257
    %v3259 = vsel %vm3076, %v3024, -inf
    %v3260 = vrot.slane %v3259, 4
    %v3261 = vmax.f32 %v3259, %v3260
    %v3262 = vrot.slane %v3261, 2
    %v3263 = vmax.f32 %v3261, %v3262
    %v3264 = vrot.slane %v3263, 1
    %v3265 = vmax.f32 %v3263, %v3264
    %v3266 = vsel %vm3076, %v3026, -inf
    %v3267 = vrot.slane %v3266, 4
    %v3268 = vmax.f32 %v3266, %v3267
    %v3269 = vrot.slane %v3268, 2
    %v3270 = vmax.f32 %v3268, %v3269
    %v3271 = vrot.slane %v3270, 1
    %v3272 = vmax.f32 %v3270, %v3271
    %v3273 = vsel %vm3076, %v3034, -inf
    %v3274 = vrot.slane %v3273, 4
    %v3275 = vmax.f32 %v3273, %v3274
    %v3276 = vrot.slane %v3275, 2
    %v3277 = vmax.f32 %v3275, %v3276
    %v3278 = vrot.slane %v3277, 1
    %v3279 = vmax.f32 %v3277, %v3278
    %v3280 = vsel %vm3076, %v3042, -inf
    %v3281 = vrot.slane %v3280, 4
    %v3282 = vmax.f32 %v3280, %v3281
    %v3283 = vrot.slane %v3282, 2
    %v3284 = vmax.f32 %v3282, %v3283
    %v3285 = vrot.slane %v3284, 1
    %v3286 = vmax.f32 %v3284, %v3285
    %v3287 = vsel %vm3076, %v3041, -inf
    %v3288 = vrot.slane %v3287, 4
    %v3289 = vmax.f32 %v3287, %v3288
    %v3290 = vrot.slane %v3289, 2
    %v3291 = vmax.f32 %v3289, %v3290
    %v3292 = vrot.slane %v3291, 1
    %v3293 = vmax.f32 %v3291, %v3292
    %v3294 = vsel %vm3076, %v3043, -inf
    %v3295 = vrot.slane %v3294, 4
    %v3296 = vmax.f32 %v3294, %v3295
    %v3297 = vrot.slane %v3296, 2
    %v3298 = vmax.f32 %v3296, %v3297
    %v3299 = vrot.slane %v3298, 1
    %v3300 = vmax.f32 %v3298, %v3299
    %vm3301 = vcmask 523264
    %3302 = vst.msk [vmem:[#allocation4] sm:$0xff] %vm3301, 0.0
    %3303 = vst.msk [vmem:[#allocation4 + $0x28] sm:$0xff] %vm3301, 0.0
    %v3336 = vsel %vm2338, %v3090, %v3083
    %v3337 = vsel %vm2340, %v3097, %v3336
    %v3338 = vsel %vm2342, %v3104, %v3337
    %v3339 = vsel %vm2344, %v3111, %v3338
    %v3340 = vsel %vm2346, %v3118, %v3339
    %v3341 = vsel %vm2348, %v3125, %v3340
    %v3342 = vsel %vm2350, %v3132, %v3341
    %v3343 = vsel %vm2338, %v3146, %v3139
    %v3344 = vsel %vm2340, %v3153, %v3343
    %v3345 = vsel %vm2342, %v3160, %v3344
    %v3346 = vsel %vm2344, %v3167, %v3345
    %v3347 = vsel %vm2346, %v3174, %v3346
    %v3348 = vsel %vm2348, %v3181, %v3347
    %v3349 = vsel %vm2350, %v3188, %v3348
    %v3350 = vsel %vm2338, %v3202, %v3195
    %v3351 = vsel %vm2340, %v3209, %v3350
    %v3352 = vsel %vm2342, %v3216, %v3351
    %v3353 = vsel %vm2344, %v3223, %v3352
    %v3354 = vsel %vm2346, %v3230, %v3353
    %v3355 = vsel %vm2348, %v3237, %v3354
    %v3356 = vsel %vm2350, %v3244, %v3355
    %v3357 = vsel %vm2338, %v3258, %v3251
    %v3358 = vsel %vm2340, %v3265, %v3357
    %v3359 = vsel %vm2342, %v3272, %v3358
    %v3360 = vsel %vm2344, %v3279, %v3359
    %v3361 = vsel %vm2346, %v3286, %v3360
    %v3362 = vsel %vm2348, %v3293, %v3361
    %v3363 = vsel %vm2350, %v3300, %v3362
    %3368 = vst.msk [vmem:[#allocation4 + $0x8] sm:$0xff] %vm3301, %v3342
    %3369 = vst.msk [vmem:[#allocation4 + $0x10] sm:$0xff] %vm3301, %v3349
    %3370 = vst.msk [vmem:[#allocation4 + $0x18] sm:$0xff] %vm3301, %v3356
    %3371 = vst.msk [vmem:[#allocation4 + $0x20] sm:$0xff] %vm3301, %v3363
    %v3372 = vand.u32 %v100, 15
    %v3373 = vand.u32 %v101, 15
    %v3374 = vand.u32 %v102, 15
    %v3375 = vand.u32 %v103, 15
    %v3376 = vld [vmem:[#allocation4 + $0x7] sm:$0xff]
    %v3377 = vld [vmem:[#allocation4 + $0xf] sm:$0xff]
    %v3378 = vld [vmem:[#allocation4 + $0x17] sm:$0xff]
    %v3379 = vld [vmem:[#allocation4 + $0x1f] sm:$0xff]
    %v3380 = vadd.s32 %v3372, 4294967295
    %v3381 = vadd.s32 %v3373, 4294967295
    %v3382 = vadd.s32 %v3374, 4294967295
    %v3383 = vadd.s32 %v3375, 4294967295
    %vm3384 = vcmp.ge.s32.totalorder %v3380, 0
    %vm3385 = vcmp.ge.s32.totalorder %v3381, 0
    %vm3386 = vcmp.ge.s32.totalorder %v3382, 0
    %vm3387 = vcmp.ge.s32.totalorder %v3383, 0
    %vm3388 = vcmp.lt.s32.totalorder %v3380, 16
    %vm3389 = vcmp.lt.s32.totalorder %v3381, 16
    %vm3390 = vcmp.lt.s32.totalorder %v3382, 16
    %vm3391 = vcmp.lt.s32.totalorder %v3383, 16
    %vm3392 = vmand %vm3384, %vm3388
    %vm3393 = vmand %vm3385, %vm3389
    %vm3394 = vmand %vm3386, %vm3390
    %vm3395 = vmand %vm3387, %vm3391
    %v3396 = vsel %vm3392, 1, 0
    %v3397 = vsel %vm3393, 1, 0
    %v3398 = vsel %vm3394, 1, 0
    %v3399 = vsel %vm3395, 1, 0
    %vm3400 = vcmp.eq.s32.totalorder %v3396, 1
    %vm3401 = vcmp.eq.s32.totalorder %v3397, 1
    %vm3402 = vcmp.eq.s32.totalorder %v3398, 1
    %vm3403 = vcmp.eq.s32.totalorder %v3399, 1
    %v3404 = vsel %vm3400, %v3376, 0.0
    %v3405 = vsel %vm3401, %v3377, 0.0
    %v3406 = vsel %vm3402, %v3378, 0.0
    %v3407 = vsel %vm3403, %v3379, 0.0
    %v3408 = vpack.c.bf16 %v3405, %v3404
    %v3409 = vpack.c.bf16 %v3407, %v3406
    %v3410 = vld [vmem:[%s7] sm:$0xf]
    %v3411 = vld [vmem:[%s7 + $0x4] sm:$0xf]
    %v3412 = vld [vmem:[%s7 + $0x8] sm:$0xf]
    %v3413 = vld [vmem:[%s7 + $0xc] sm:$0xf]
    %v3414 = vld [vmem:[%s7 + $0x10] sm:$0xf]
    %v3415 = vld [vmem:[%s7 + $0x14] sm:$0xf]
    %v3416 = vld [vmem:[%s7 + $0x18] sm:$0xf]
    %v3417 = vld [vmem:[%s7 + $0x1c] sm:$0xf]
    %v3418 = vld [vmem:[#allocation4 + $0x8] sm:$0xff]
    %v3419 = vld [vmem:[#allocation4 + $0x10] sm:$0xff]
    %v3420 = vld [vmem:[#allocation4 + $0x18] sm:$0xff]
    %v3421 = vld [vmem:[#allocation4 + $0x20] sm:$0xff]
    %v3422 = vpack.c.bf16 %v3419, %v3418
    %v3423 = vpack.c.bf16 %v3421, %v3420
    %s3424 = scalar_lea.vmem %s7, 32
    %v3425 = vld [vmem:[%s3424] sm:$0xf]
    %v3426 = vld [vmem:[%s3424 + $0x4] sm:$0xf]
    %v3427 = vld [vmem:[%s3424 + $0x8] sm:$0xf]
    %v3428 = vld [vmem:[%s3424 + $0xc] sm:$0xf]
    %v3429 = vld [vmem:[%s3424 + $0x10] sm:$0xf]
    %v3430 = vld [vmem:[%s3424 + $0x14] sm:$0xf]
    %v3431 = vld [vmem:[%s3424 + $0x18] sm:$0xf]
    %v3432 = vld [vmem:[%s3424 + $0x1c] sm:$0xf]
    %v3441 = vunpack.c.l.b16 %v3425
    %v3442 = vunpack.c.l.b16 %v3426
    %v3443 = vunpack.c.l.b16 %v3427
    %v3444 = vunpack.c.l.b16 %v3428
    %v3445 = vunpack.c.l.b16 %v3429
    %v3446 = vunpack.c.l.b16 %v3430
    %v3447 = vunpack.c.l.b16 %v3431
    %v3448 = vunpack.c.l.b16 %v3432
    %v3449 = vpack.c.b16 %v3442, %v3441
    %v3450 = vpack.c.b16 %v3444, %v3443
    %v3451 = vpack.c.b16 %v3446, %v3445
    %v3452 = vpack.c.b16 %v3448, %v3447
    %v3458 = vsel %vm3301, %v3422, 0
    %v3461 = vsel %vm3301, %v3423, 0
    %3463 = vmatprep.subr.bf16.mxu0 0
    %3464 = vmatpush1.bf16.msra.mxu0 %v3449
    %3465 = vmatprep.subr.bf16.mxu0 0
    %3466 = vmatpush1.bf16.msra.mxu0 %v3450
    %3467 = vmatprep.subr.bf16.mxu0 0
    %3468 = vmatpush1.bf16.msra.mxu0 %v3451
    %3469 = vmatprep.subr.bf16.mxu0 0
    %3470 = vmatpush1.bf16.msra.mxu0 %v3452
    %3471 = vmatprep.subr.bf16.mxu0 0
    %3472 = vmatpush1.bf16.msra.mxu0 0
    %3473 = vmatprep.subr.bf16.mxu0 0
    %3474 = vmatpush1.bf16.msra.mxu0 0
    %3475 = vmatprep.subr.bf16.mxu0 0
    %3476 = vmatpush1.bf16.msra.mxu0 0
    %3477 = vmatprep.subr.bf16.mxu0 0
    %3478 = vmatpush1.bf16.msra.mxu0 0
    %3479 = vmatprep.subr.bf16.mxu0 0
    %3480 = vmatpush1.bf16.msra.mxu0 0
    %3481 = vmatprep.subr.bf16.mxu0 0
    %3482 = vmatpush1.bf16.msra.mxu0 0
    %3483 = vmatprep.subr.bf16.mxu0 0
    %3484 = vmatpush1.bf16.msra.mxu0 0
    %3485 = vmatprep.subr.bf16.mxu0 0
    %3486 = vmatpush1.bf16.msra.mxu0 0
    %3487 = vmatprep.subr.bf16.mxu0 0
    %3488 = vmatpush1.bf16.msra.mxu0 0
    %3489 = vmatprep.subr.bf16.mxu0 0
    %3490 = vmatpush1.bf16.msra.mxu0 0
    %3491 = vmatprep.subr.bf16.mxu0 0
    %3492 = vmatpush1.bf16.msra.mxu0 0
    %3493 = vmatprep.subr.bf16.mxu0 0
    %3494 = vmatpush1.bf16.msra.mxu0 0
    %3495 = vmatprep.mubr.bf16.mxu0 0
    %3496 = vmatmul.mubr.bf16.gmra.mrb[0].mxu0 %v3458
    %v3497 = vpop.f32.mrb[0].mxu0
    %v3498 = vadd.f32 0.0, %v3497
    %v3499 = vpop.f32.mrb[0].mxu0
    %v3500 = vpop.f32.mrb[0].mxu0
    %v3501 = vadd.f32 0.0, %v3500
    %v3502 = vpop.f32.mrb[0].mxu0
    %3503 = vmatprep.mubr.bf16.mxu0 0
    %3504 = vmatmul.mubr.bf16.gmra.mrb[0].mxu0 %v3461
    %v3505 = vpop.f32.mrb[0].mxu0
    %v3506 = vadd.f32 0.0, %v3505
    %v3507 = vpop.f32.mrb[0].mxu0
    %v3508 = vpop.f32.mrb[0].mxu0
    %v3509 = vadd.f32 0.0, %v3508
    %v3510 = vpop.f32.mrb[0].mxu0
    %3511 = vdwg.mxu0
    %v3520 = vunpack.c.l.b16 %v3410
    %v3521 = vunpack.c.l.b16 %v3411
    %v3522 = vunpack.c.l.b16 %v3412
    %v3523 = vunpack.c.l.b16 %v3413
    %v3524 = vunpack.c.l.b16 %v3414
    %v3525 = vunpack.c.l.b16 %v3415
    %v3526 = vunpack.c.l.b16 %v3416
    %v3527 = vunpack.c.l.b16 %v3417
    %v3528 = vpack.c.b16 %v3521, %v3520
    %v3529 = vpack.c.b16 %v3523, %v3522
    %v3530 = vpack.c.b16 %v3525, %v3524
    %v3531 = vpack.c.b16 %v3527, %v3526
    %v3537 = vsel %vm3301, %v3408, 0
    %v3540 = vsel %vm3301, %v3409, 0
    %3542 = vmatprep.subr.bf16.mxu0 0
    %3543 = vmatpush1.bf16.msra.mxu0 %v3528
    %3544 = vmatprep.subr.bf16.mxu0 0
    %3545 = vmatpush1.bf16.msra.mxu0 %v3529
    %3546 = vmatprep.subr.bf16.mxu0 0
    %3547 = vmatpush1.bf16.msra.mxu0 %v3530
    %3548 = vmatprep.subr.bf16.mxu0 0
    %3549 = vmatpush1.bf16.msra.mxu0 %v3531
    %3550 = vmatprep.subr.bf16.mxu0 0
    %3551 = vmatpush1.bf16.msra.mxu0 0
    %3552 = vmatprep.subr.bf16.mxu0 0
    %3553 = vmatpush1.bf16.msra.mxu0 0
    %3554 = vmatprep.subr.bf16.mxu0 0
    %3555 = vmatpush1.bf16.msra.mxu0 0
    %3556 = vmatprep.subr.bf16.mxu0 0
    %3557 = vmatpush1.bf16.msra.mxu0 0
    %3558 = vmatprep.subr.bf16.mxu0 0
    %3559 = vmatpush1.bf16.msra.mxu0 0
    %3560 = vmatprep.subr.bf16.mxu0 0
    %3561 = vmatpush1.bf16.msra.mxu0 0
    %3562 = vmatprep.subr.bf16.mxu0 0
    %3563 = vmatpush1.bf16.msra.mxu0 0
    %3564 = vmatprep.subr.bf16.mxu0 0
    %3565 = vmatpush1.bf16.msra.mxu0 0
    %3566 = vmatprep.subr.bf16.mxu0 0
    %3567 = vmatpush1.bf16.msra.mxu0 0
    %3568 = vmatprep.subr.bf16.mxu0 0
    %3569 = vmatpush1.bf16.msra.mxu0 0
    %3570 = vmatprep.subr.bf16.mxu0 0
    %3571 = vmatpush1.bf16.msra.mxu0 0
    %3572 = vmatprep.subr.bf16.mxu0 0
    %3573 = vmatpush1.bf16.msra.mxu0 0
    %3574 = vmatprep.mubr.bf16.mxu0 0
    %3575 = vmatmul.mubr.bf16.gmra.mrb[0].mxu0 %v3537
    %v3576 = vpop.f32.mrb[0].mxu0
    %v3577 = vadd.f32 %v3498, %v3576
    %v3578 = vpop.f32.mrb[0].mxu0
    %v3579 = vpop.f32.mrb[0].mxu0
    %v3580 = vadd.f32 %v3501, %v3579
    %v3581 = vpop.f32.mrb[0].mxu0
    %3582 = vmatprep.mubr.bf16.mxu0 0
    %3583 = vmatmul.mubr.bf16.gmra.mrb[0].mxu0 %v3540
    %v3584 = vpop.f32.mrb[0].mxu0
    %v3585 = vadd.f32 %v3506, %v3584
    %v3586 = vpop.f32.mrb[0].mxu0
    %v3587 = vpop.f32.mrb[0].mxu0
    %v3588 = vadd.f32 %v3509, %v3587
    %v3589 = vpop.f32.mrb[0].mxu0
    %3590 = vdwg.mxu0
    %v3591 = vld [vmem:[#allocation4 + $0x9] sm:$0xff]
    %v3592 = vld [vmem:[#allocation4 + $0x11] sm:$0xff]
    %v3593 = vld [vmem:[#allocation4 + $0x19] sm:$0xff]
    %v3594 = vld [vmem:[#allocation4 + $0x21] sm:$0xff]
    %v3595 = vadd.s32 %v3372, 1
    %v3596 = vadd.s32 %v3373, 1
    %v3597 = vadd.s32 %v3374, 1
    %v3598 = vadd.s32 %v3375, 1
    %vm3599 = vcmp.ge.s32.totalorder %v3595, 0
    %vm3600 = vcmp.ge.s32.totalorder %v3596, 0
    %vm3601 = vcmp.ge.s32.totalorder %v3597, 0
    %vm3602 = vcmp.ge.s32.totalorder %v3598, 0
    %vm3603 = vcmp.lt.s32.totalorder %v3595, 16
    %vm3604 = vcmp.lt.s32.totalorder %v3596, 16
    %vm3605 = vcmp.lt.s32.totalorder %v3597, 16
    %vm3606 = vcmp.lt.s32.totalorder %v3598, 16
    %vm3607 = vmand %vm3599, %vm3603
    %vm3608 = vmand %vm3600, %vm3604
    %vm3609 = vmand %vm3601, %vm3605
    %vm3610 = vmand %vm3602, %vm3606
    %v3611 = vsel %vm3607, 1, 0
    %v3612 = vsel %vm3608, 1, 0
    %v3613 = vsel %vm3609, 1, 0
    %v3614 = vsel %vm3610, 1, 0
    %vm3615 = vcmp.eq.s32.totalorder %v3611, 1
    %vm3616 = vcmp.eq.s32.totalorder %v3612, 1
    %vm3617 = vcmp.eq.s32.totalorder %v3613, 1
    %vm3618 = vcmp.eq.s32.totalorder %v3614, 1
    %v3619 = vsel %vm3615, %v3591, 0.0
    %v3620 = vsel %vm3616, %v3592, 0.0
    %v3621 = vsel %vm3617, %v3593, 0.0
    %v3622 = vsel %vm3618, %v3594, 0.0
    %v3623 = vpack.c.bf16 %v3620, %v3619
    %v3624 = vpack.c.bf16 %v3622, %v3621
    %s3625 = scalar_lea.vmem %s7, 64
    %v3626 = vld [vmem:[%s3625] sm:$0xf]
    %v3627 = vld [vmem:[%s3625 + $0x4] sm:$0xf]
    %v3628 = vld [vmem:[%s3625 + $0x8] sm:$0xf]
    %v3629 = vld [vmem:[%s3625 + $0xc] sm:$0xf]
    %v3630 = vld [vmem:[%s3625 + $0x10] sm:$0xf]
    %v3631 = vld [vmem:[%s3625 + $0x14] sm:$0xf]
    %v3632 = vld [vmem:[%s3625 + $0x18] sm:$0xf]
    %v3633 = vld [vmem:[%s3625 + $0x1c] sm:$0xf]
    %v3642 = vunpack.c.l.b16 %v3626
    %v3643 = vunpack.c.l.b16 %v3627
    %v3644 = vunpack.c.l.b16 %v3628
    %v3645 = vunpack.c.l.b16 %v3629
    %v3646 = vunpack.c.l.b16 %v3630
    %v3647 = vunpack.c.l.b16 %v3631
    %v3648 = vunpack.c.l.b16 %v3632
    %v3649 = vunpack.c.l.b16 %v3633
    %v3650 = vpack.c.b16 %v3643, %v3642
    %v3651 = vpack.c.b16 %v3645, %v3644
    %v3652 = vpack.c.b16 %v3647, %v3646
    %v3653 = vpack.c.b16 %v3649, %v3648
    %v3659 = vsel %vm3301, %v3623, 0
    %v3662 = vsel %vm3301, %v3624, 0
    %3664 = vmatprep.subr.bf16.mxu0 0
    %3665 = vmatpush1.bf16.msra.mxu0 %v3650
    %3666 = vmatprep.subr.bf16.mxu0 0
    %3667 = vmatpush1.bf16.msra.mxu0 %v3651
    %3668 = vmatprep.subr.bf16.mxu0 0
    %3669 = vmatpush1.bf16.msra.mxu0 %v3652
    %3670 = vmatprep.subr.bf16.mxu0 0
    %3671 = vmatpush1.bf16.msra.mxu0 %v3653
    %3672 = vmatprep.subr.bf16.mxu0 0
    %3673 = vmatpush1.bf16.msra.mxu0 0
    %3674 = vmatprep.subr.bf16.mxu0 0
    %3675 = vmatpush1.bf16.msra.mxu0 0
    %3676 = vmatprep.subr.bf16.mxu0 0
    %3677 = vmatpush1.bf16.msra.mxu0 0
    %3678 = vmatprep.subr.bf16.mxu0 0
    %3679 = vmatpush1.bf16.msra.mxu0 0
    %3680 = vmatprep.subr.bf16.mxu0 0
    %3681 = vmatpush1.bf16.msra.mxu0 0
    %3682 = vmatprep.subr.bf16.mxu0 0
    %3683 = vmatpush1.bf16.msra.mxu0 0
    %3684 = vmatprep.subr.bf16.mxu0 0
    %3685 = vmatpush1.bf16.msra.mxu0 0
    %3686 = vmatprep.subr.bf16.mxu0 0
    %3687 = vmatpush1.bf16.msra.mxu0 0
    %3688 = vmatprep.subr.bf16.mxu0 0
    %3689 = vmatpush1.bf16.msra.mxu0 0
    %3690 = vmatprep.subr.bf16.mxu0 0
    %3691 = vmatpush1.bf16.msra.mxu0 0
    %3692 = vmatprep.subr.bf16.mxu0 0
    %3693 = vmatpush1.bf16.msra.mxu0 0
    %3694 = vmatprep.subr.bf16.mxu0 0
    %3695 = vmatpush1.bf16.msra.mxu0 0
    %3696 = vmatprep.mubr.bf16.mxu0 0
    %3697 = vmatmul.mubr.bf16.gmra.mrb[0].mxu0 %v3659
    %v3698 = vpop.f32.mrb[0].mxu0
    %v3699 = vadd.f32 0.0, %v3698
    %v3700 = vpop.f32.mrb[0].mxu0
    %v3701 = vpop.f32.mrb[0].mxu0
    %v3702 = vadd.f32 0.0, %v3701
    %v3703 = vpop.f32.mrb[0].mxu0
    %3704 = vmatprep.mubr.bf16.mxu0 0
    %3705 = vmatmul.mubr.bf16.gmra.mrb[0].mxu0 %v3662
    %v3706 = vpop.f32.mrb[0].mxu0
    %v3707 = vadd.f32 0.0, %v3706
    %v3708 = vpop.f32.mrb[0].mxu0
    %v3709 = vpop.f32.mrb[0].mxu0
    %v3710 = vadd.f32 0.0, %v3709
    %v3711 = vpop.f32.mrb[0].mxu0
    %3712 = vdwg.mxu0
    %v3713 = vadd.f32 %v3577, %v3699
    %v3714 = vadd.f32 %v3580, %v3702
    %v3715 = vadd.f32 %v3585, %v3707
    %v3716 = vadd.f32 %v3588, %v3710
    %v3717 = vld [vmem:[%s8] sm:$0x1]
    %v3719 = vlaneseq
    %v3720 = vshrl.u32 %v3719, 7
    %v3721 = vsub.s32 0, %v3720
    %v3722 = vrot.slane %v3717, %v3721
    %v3724 = vmul.f32 %v3713, %v3722
    %v3725 = vmul.f32 %v3714, %v3722
    %v3726 = vmul.f32 %v3715, %v3722
    %v3727 = vmul.f32 %v3716, %v3722
    %v3728 = vld [vmem:[%s9] sm:$0x1]
    %v3730 = vlaneseq
    %v3731 = vshrl.u32 %v3730, 7
    %v3732 = vsub.s32 0, %v3731
    %v3733 = vrot.slane %v3728, %v3732
    %v3735 = vadd.f32 %v3724, %v3733
    %v3736 = vadd.f32 %v3725, %v3733
    %v3737 = vadd.f32 %v3726, %v3733
    %v3738 = vadd.f32 %v3727, %v3733
    %v3739 = vmax.f32 %v3735, 0.0
    %v3740 = vmax.f32 %v3736, 0.0
    %v3741 = vmax.f32 %v3737, 0.0
    %v3742 = vmax.f32 %v3738, 0.0
    %v3747 = vcombine.high %v3739, %v3739
    %v3749 = vunpack.c.l.s4 1983009808
    %v3750 = vunpack.c.0.s8 %v3749
    %v3751 = vlaneseq
    %v3752 = vshrl.u32 %v3751, 7
    %v3753 = vsub.s32 %v3750, %v3752
    %v3754 = vrot.slane %v3739, %v3753
    %v3756 = vunpack.c.l.s4 1983009808
    %v3757 = vunpack.c.0.s8 %v3756
    %v3758 = vlaneseq
    %v3759 = vshrl.u32 %v3758, 7
    %v3760 = vsub.s32 %v3757, %v3759
    %v3761 = vrot.slane %v3747, %v3760
    %v3762 = vcombine.high %v3754, %v3754
    %v3763 = vcombine.high %v3761, %v3761
    %v3764 = vcombine.high %v3740, %v3740
    %v3766 = vunpack.c.l.s4 1983009808
    %v3767 = vunpack.c.0.s8 %v3766
    %v3768 = vlaneseq
    %v3769 = vshrl.u32 %v3768, 7
    %v3770 = vsub.s32 %v3767, %v3769
    %v3771 = vrot.slane %v3740, %v3770
    %v3773 = vunpack.c.l.s4 1983009808
    %v3774 = vunpack.c.0.s8 %v3773
    %v3775 = vlaneseq
    %v3776 = vshrl.u32 %v3775, 7
    %v3777 = vsub.s32 %v3774, %v3776
    %v3778 = vrot.slane %v3764, %v3777
    %v3779 = vcombine.high %v3771, %v3771
    %v3780 = vcombine.high %v3778, %v3778
    %v3781 = vcombine.high %v3741, %v3741
    %v3783 = vunpack.c.l.s4 1983009808
    %v3784 = vunpack.c.0.s8 %v3783
    %v3785 = vlaneseq
    %v3786 = vshrl.u32 %v3785, 7
    %v3787 = vsub.s32 %v3784, %v3786
    %v3788 = vrot.slane %v3741, %v3787
    %v3790 = vunpack.c.l.s4 1983009808
    %v3791 = vunpack.c.0.s8 %v3790
    %v3792 = vlaneseq
    %v3793 = vshrl.u32 %v3792, 7
    %v3794 = vsub.s32 %v3791, %v3793
    %v3795 = vrot.slane %v3781, %v3794
    %v3796 = vcombine.high %v3788, %v3788
    %v3797 = vcombine.high %v3795, %v3795
    %v3798 = vcombine.high %v3742, %v3742
    %v3800 = vunpack.c.l.s4 1983009808
    %v3801 = vunpack.c.0.s8 %v3800
    %v3802 = vlaneseq
    %v3803 = vshrl.u32 %v3802, 7
    %v3804 = vsub.s32 %v3801, %v3803
    %v3805 = vrot.slane %v3742, %v3804
    %v3807 = vunpack.c.l.s4 1983009808
    %v3808 = vunpack.c.0.s8 %v3807
    %v3809 = vlaneseq
    %v3810 = vshrl.u32 %v3809, 7
    %v3811 = vsub.s32 %v3808, %v3810
    %v3812 = vrot.slane %v3798, %v3811
    %v3813 = vcombine.high %v3805, %v3805
    %v3814 = vcombine.high %v3812, %v3812
    %vm3831 = vcmask 1041408
    %v3832 = vsel %vm3831, %v3754, -inf
    %v3833 = vrot.slane %v3832, 4
    %v3834 = vmax.f32 %v3832, %v3833
    %v3835 = vrot.slane %v3834, 2
    %v3836 = vmax.f32 %v3834, %v3835
    %v3837 = vrot.slane %v3836, 1
    %v3838 = vmax.f32 %v3836, %v3837
    %v3839 = vsel %vm3831, %v3762, -inf
    %v3840 = vrot.slane %v3839, 4
    %v3841 = vmax.f32 %v3839, %v3840
    %v3842 = vrot.slane %v3841, 2
    %v3843 = vmax.f32 %v3841, %v3842
    %v3844 = vrot.slane %v3843, 1
    %v3845 = vmax.f32 %v3843, %v3844
    %v3846 = vsel %vm3831, %v3761, -inf
    %v3847 = vrot.slane %v3846, 4
    %v3848 = vmax.f32 %v3846, %v3847
    %v3849 = vrot.slane %v3848, 2
    %v3850 = vmax.f32 %v3848, %v3849
    %v3851 = vrot.slane %v3850, 1
    %v3852 = vmax.f32 %v3850, %v3851
    %v3853 = vsel %vm3831, %v3763, -inf
    %v3854 = vrot.slane %v3853, 4
    %v3855 = vmax.f32 %v3853, %v3854
    %v3856 = vrot.slane %v3855, 2
    %v3857 = vmax.f32 %v3855, %v3856
    %v3858 = vrot.slane %v3857, 1
    %v3859 = vmax.f32 %v3857, %v3858
    %v3860 = vsel %vm3831, %v3771, -inf
    %v3861 = vrot.slane %v3860, 4
    %v3862 = vmax.f32 %v3860, %v3861
    %v3863 = vrot.slane %v3862, 2
    %v3864 = vmax.f32 %v3862, %v3863
    %v3865 = vrot.slane %v3864, 1
    %v3866 = vmax.f32 %v3864, %v3865
    %v3867 = vsel %vm3831, %v3779, -inf
    %v3868 = vrot.slane %v3867, 4
    %v3869 = vmax.f32 %v3867, %v3868
    %v3870 = vrot.slane %v3869, 2
    %v3871 = vmax.f32 %v3869, %v3870
    %v3872 = vrot.slane %v3871, 1
    %v3873 = vmax.f32 %v3871, %v3872
    %v3874 = vsel %vm3831, %v3778, -inf
    %v3875 = vrot.slane %v3874, 4
    %v3876 = vmax.f32 %v3874, %v3875
    %v3877 = vrot.slane %v3876, 2
    %v3878 = vmax.f32 %v3876, %v3877
    %v3879 = vrot.slane %v3878, 1
    %v3880 = vmax.f32 %v3878, %v3879
    %v3881 = vsel %vm3831, %v3780, -inf
    %v3882 = vrot.slane %v3881, 4
    %v3883 = vmax.f32 %v3881, %v3882
    %v3884 = vrot.slane %v3883, 2
    %v3885 = vmax.f32 %v3883, %v3884
    %v3886 = vrot.slane %v3885, 1
    %v3887 = vmax.f32 %v3885, %v3886
    %v3888 = vsel %vm3831, %v3788, -inf
    %v3889 = vrot.slane %v3888, 4
    %v3890 = vmax.f32 %v3888, %v3889
    %v3891 = vrot.slane %v3890, 2
    %v3892 = vmax.f32 %v3890, %v3891
    %v3893 = vrot.slane %v3892, 1
    %v3894 = vmax.f32 %v3892, %v3893
    %v3895 = vsel %vm3831, %v3796, -inf
    %v3896 = vrot.slane %v3895, 4
    %v3897 = vmax.f32 %v3895, %v3896
    %v3898 = vrot.slane %v3897, 2
    %v3899 = vmax.f32 %v3897, %v3898
    %v3900 = vrot.slane %v3899, 1
    %v3901 = vmax.f32 %v3899, %v3900
    %v3902 = vsel %vm3831, %v3795, -inf
    %v3903 = vrot.slane %v3902, 4
    %v3904 = vmax.f32 %v3902, %v3903
    %v3905 = vrot.slane %v3904, 2
    %v3906 = vmax.f32 %v3904, %v3905
    %v3907 = vrot.slane %v3906, 1
    %v3908 = vmax.f32 %v3906, %v3907
    %v3909 = vsel %vm3831, %v3797, -inf
    %v3910 = vrot.slane %v3909, 4
    %v3911 = vmax.f32 %v3909, %v3910
    %v3912 = vrot.slane %v3911, 2
    %v3913 = vmax.f32 %v3911, %v3912
    %v3914 = vrot.slane %v3913, 1
    %v3915 = vmax.f32 %v3913, %v3914
    %v3916 = vsel %vm3831, %v3805, -inf
    %v3917 = vrot.slane %v3916, 4
    %v3918 = vmax.f32 %v3916, %v3917
    %v3919 = vrot.slane %v3918, 2
    %v3920 = vmax.f32 %v3918, %v3919
    %v3921 = vrot.slane %v3920, 1
    %v3922 = vmax.f32 %v3920, %v3921
    %v3923 = vsel %vm3831, %v3813, -inf
    %v3924 = vrot.slane %v3923, 4
    %v3925 = vmax.f32 %v3923, %v3924
    %v3926 = vrot.slane %v3925, 2
    %v3927 = vmax.f32 %v3925, %v3926
    %v3928 = vrot.slane %v3927, 1
    %v3929 = vmax.f32 %v3927, %v3928
    %v3930 = vsel %vm3831, %v3812, -inf
    %v3931 = vrot.slane %v3930, 4
    %v3932 = vmax.f32 %v3930, %v3931
    %v3933 = vrot.slane %v3932, 2
    %v3934 = vmax.f32 %v3932, %v3933
    %v3935 = vrot.slane %v3934, 1
    %v3936 = vmax.f32 %v3934, %v3935
    %v3937 = vsel %vm3831, %v3814, -inf
    %v3938 = vrot.slane %v3937, 4
    %v3939 = vmax.f32 %v3937, %v3938
    %v3940 = vrot.slane %v3939, 2
    %v3941 = vmax.f32 %v3939, %v3940
    %v3942 = vrot.slane %v3941, 1
    %v3943 = vmax.f32 %v3941, %v3942
    %v3960 = vsel %vm2338, %v3845, %v3838
    %v3961 = vsel %vm2340, %v3852, %v3960
    %v3962 = vsel %vm2342, %v3859, %v3961
    %v3963 = vsel %vm2344, %v3866, %v3962
    %v3964 = vsel %vm2346, %v3873, %v3963
    %v3965 = vsel %vm2348, %v3880, %v3964
    %v3966 = vsel %vm2350, %v3887, %v3965
    %v3967 = vsel %vm2338, %v3901, %v3894
    %v3968 = vsel %vm2340, %v3908, %v3967
    %v3969 = vsel %vm2342, %v3915, %v3968
    %v3970 = vsel %vm2344, %v3922, %v3969
    %v3971 = vsel %vm2346, %v3929, %v3970
    %v3972 = vsel %vm2348, %v3936, %v3971
    %v3973 = vsel %vm2350, %v3943, %v3972
    %3976 = vst [vmem:[#allocation5] sm:$0xff] %v3966
    %3977 = vst [vmem:[#allocation5 + $0x8] sm:$0xff] %v3973
    %v3978 = vld [vmem:[#allocation5] sm:$0x1]
    %3979 = vst [vmem:[#allocation6] sm:$0x1] %v3978
    %v3980 = vld [vmem:[#allocation5 + $0x1] sm:$0x1]
    %3981 = vst [vmem:[#allocation6 + $0x2] sm:$0x1] %v3980
    %v3982 = vld [vmem:[#allocation5 + $0x2] sm:$0x1]
    %3983 = vst [vmem:[#allocation6 + $0x4] sm:$0x1] %v3982
    %v3984 = vld [vmem:[#allocation5 + $0x3] sm:$0x1]
    %3985 = vst [vmem:[#allocation6 + $0x6] sm:$0x1] %v3984
    %v3986 = vld [vmem:[#allocation5 + $0x4] sm:$0x1]
    %3987 = vst [vmem:[#allocation6 + $0x8] sm:$0x1] %v3986
    %v3988 = vld [vmem:[#allocation5 + $0x5] sm:$0x1]
    %3989 = vst [vmem:[#allocation6 + $0xa] sm:$0x1] %v3988
    %v3990 = vld [vmem:[#allocation5 + $0x6] sm:$0x1]
    %3991 = vst [vmem:[#allocation6 + $0xc] sm:$0x1] %v3990
    %v3992 = vld [vmem:[#allocation5 + $0x7] sm:$0x1]
    %3993 = vst [vmem:[#allocation6 + $0xe] sm:$0x1] %v3992
    %v3994 = vld [vmem:[#allocation5 + $0x8] sm:$0x1]
    %3995 = vst [vmem:[#allocation6 + $0x1] sm:$0x1] %v3994
    %v3996 = vld [vmem:[#allocation5 + $0x9] sm:$0x1]
    %3997 = vst [vmem:[#allocation6 + $0x3] sm:$0x1] %v3996
    %v3998 = vld [vmem:[#allocation5 + $0xa] sm:$0x1]
    %3999 = vst [vmem:[#allocation6 + $0x5] sm:$0x1] %v3998
    %v4000 = vld [vmem:[#allocation5 + $0xb] sm:$0x1]
    %4001 = vst [vmem:[#allocation6 + $0x7] sm:$0x1] %v4000
    %v4002 = vld [vmem:[#allocation5 + $0xc] sm:$0x1]
    %4003 = vst [vmem:[#allocation6 + $0x9] sm:$0x1] %v4002
    %v4004 = vld [vmem:[#allocation5 + $0xd] sm:$0x1]
    %4005 = vst [vmem:[#allocation6 + $0xb] sm:$0x1] %v4004
    %v4006 = vld [vmem:[#allocation5 + $0xe] sm:$0x1]
    %4007 = vst [vmem:[#allocation6 + $0xd] sm:$0x1] %v4006
    %v4008 = vld [vmem:[#allocation5 + $0xf] sm:$0x1]
    %4009 = vst [vmem:[#allocation6 + $0xf] sm:$0x1] %v4008
    %v4010 = vld [vmem:[#allocation6] sm:$0xff]
    %v4011 = vld [vmem:[#allocation6 + $0x8] sm:$0xff]
    %v4014 = vcombine.high %v4010, %v4010
    %v4016 = vunpack.c.l.s4 1983009808
    %v4017 = vunpack.c.0.s8 %v4016
    %v4018 = vlaneseq
    %v4019 = vshrl.u32 %v4018, 7
    %v4020 = vsub.s32 %v4017, %v4019
    %v4021 = vrot.slane %v4010, %v4020
    %v4023 = vunpack.c.l.s4 1983009808
    %v4024 = vunpack.c.0.s8 %v4023
    %v4025 = vlaneseq
    %v4026 = vshrl.u32 %v4025, 7
    %v4027 = vsub.s32 %v4024, %v4026
    %v4028 = vrot.slane %v4014, %v4027
    %v4029 = vcombine.high %v4021, %v4021
    %v4030 = vcombine.high %v4028, %v4028
    %v4031 = vcombine.high %v4011, %v4011
    %v4033 = vunpack.c.l.s4 1983009808
    %v4034 = vunpack.c.0.s8 %v4033
    %v4035 = vlaneseq
    %v4036 = vshrl.u32 %v4035, 7
    %v4037 = vsub.s32 %v4034, %v4036
    %v4038 = vrot.slane %v4011, %v4037
    %v4040 = vunpack.c.l.s4 1983009808
    %v4041 = vunpack.c.0.s8 %v4040
    %v4042 = vlaneseq
    %v4043 = vshrl.u32 %v4042, 7
    %v4044 = vsub.s32 %v4041, %v4043
    %v4045 = vrot.slane %v4031, %v4044
    %v4046 = vcombine.high %v4038, %v4038
    %v4047 = vcombine.high %v4045, %v4045
    %v4056 = vpack.c.bf16 %v4021, %v4021
    %v4057 = vpack.c.bf16 %v4029, %v4029
    %v4058 = vpack.c.bf16 %v4028, %v4028
    %v4059 = vpack.c.bf16 %v4030, %v4030
    %v4060 = vpack.c.bf16 %v4038, %v4038
    %v4061 = vpack.c.bf16 %v4046, %v4046
    %v4062 = vpack.c.bf16 %v4045, %v4045
    %v4063 = vpack.c.bf16 %v4047, %v4047
    %v4064 = vld [vmem:[#allocation8] sm:$0xf]
    %v4065 = vld [vmem:[#allocation8 + $0x4] sm:$0xf]
    %v4066 = vld [vmem:[#allocation8 + $0x8] sm:$0xf]
    %v4067 = vld [vmem:[#allocation8 + $0xc] sm:$0xf]
    %v4068 = vld [vmem:[#allocation8 + $0x10] sm:$0xf]
    %v4069 = vld [vmem:[#allocation8 + $0x14] sm:$0xf]
    %v4070 = vld [vmem:[#allocation8 + $0x18] sm:$0xf]
    %v4071 = vld [vmem:[#allocation8 + $0x1c] sm:$0xf]
    %v4072 = vld [vmem:[#allocation8 + $0x20] sm:$0xf]
    %v4073 = vld [vmem:[#allocation8 + $0x24] sm:$0xf]
    %v4074 = vld [vmem:[#allocation8 + $0x28] sm:$0xf]
    %v4075 = vld [vmem:[#allocation8 + $0x2c] sm:$0xf]
    %v4076 = vld [vmem:[#allocation8 + $0x30] sm:$0xf]
    %v4077 = vld [vmem:[#allocation8 + $0x34] sm:$0xf]
    %v4078 = vld [vmem:[#allocation8 + $0x38] sm:$0xf]
    %v4079 = vld [vmem:[#allocation8 + $0x3c] sm:$0xf]
    %v4080 = vld [vmem:[#allocation8 + $0x40] sm:$0xf]
    %v4081 = vld [vmem:[#allocation8 + $0x44] sm:$0xf]
    %v4082 = vld [vmem:[#allocation8 + $0x48] sm:$0xf]
    %v4083 = vld [vmem:[#allocation8 + $0x4c] sm:$0xf]
    %v4084 = vld [vmem:[#allocation8 + $0x50] sm:$0xf]
    %v4085 = vld [vmem:[#allocation8 + $0x54] sm:$0xf]
    %v4086 = vld [vmem:[#allocation8 + $0x58] sm:$0xf]
    %v4087 = vld [vmem:[#allocation8 + $0x5c] sm:$0xf]
    %v4088 = vld [vmem:[#allocation8 + $0x60] sm:$0xf]
    %v4089 = vld [vmem:[#allocation8 + $0x64] sm:$0xf]
    %v4090 = vld [vmem:[#allocation8 + $0x68] sm:$0xf]
    %v4091 = vld [vmem:[#allocation8 + $0x6c] sm:$0xf]
    %v4092 = vld [vmem:[#allocation8 + $0x70] sm:$0xf]
    %v4093 = vld [vmem:[#allocation8 + $0x74] sm:$0xf]
    %v4094 = vld [vmem:[#allocation8 + $0x78] sm:$0xf]
    %v4095 = vld [vmem:[#allocation8 + $0x7c] sm:$0xf]
    %v4096 = vld [vmem:[#allocation8 + $0x80] sm:$0xf]
    %v4097 = vld [vmem:[#allocation8 + $0x84] sm:$0xf]
    %v4098 = vld [vmem:[#allocation8 + $0x88] sm:$0xf]
    %v4099 = vld [vmem:[#allocation8 + $0x8c] sm:$0xf]
    %v4100 = vld [vmem:[#allocation8 + $0x90] sm:$0xf]
    %v4101 = vld [vmem:[#allocation8 + $0x94] sm:$0xf]
    %v4102 = vld [vmem:[#allocation8 + $0x98] sm:$0xf]
    %v4103 = vld [vmem:[#allocation8 + $0x9c] sm:$0xf]
    %v4104 = vld [vmem:[#allocation8 + $0xa0] sm:$0xf]
    %v4105 = vld [vmem:[#allocation8 + $0xa4] sm:$0xf]
    %v4106 = vld [vmem:[#allocation8 + $0xa8] sm:$0xf]
    %v4107 = vld [vmem:[#allocation8 + $0xac] sm:$0xf]
    %v4108 = vld [vmem:[#allocation8 + $0xb0] sm:$0xf]
    %v4109 = vld [vmem:[#allocation8 + $0xb4] sm:$0xf]
    %v4110 = vld [vmem:[#allocation8 + $0xb8] sm:$0xf]
    %v4111 = vld [vmem:[#allocation8 + $0xbc] sm:$0xf]
    %v4112 = vld [vmem:[#allocation8 + $0xc0] sm:$0xf]
    %v4113 = vld [vmem:[#allocation8 + $0xc4] sm:$0xf]
    %v4114 = vld [vmem:[#allocation8 + $0xc8] sm:$0xf]
    %v4115 = vld [vmem:[#allocation8 + $0xcc] sm:$0xf]
    %v4116 = vld [vmem:[#allocation8 + $0xd0] sm:$0xf]
    %v4117 = vld [vmem:[#allocation8 + $0xd4] sm:$0xf]
    %v4118 = vld [vmem:[#allocation8 + $0xd8] sm:$0xf]
    %v4119 = vld [vmem:[#allocation8 + $0xdc] sm:$0xf]
    %v4120 = vld [vmem:[#allocation8 + $0xe0] sm:$0xf]
    %v4121 = vld [vmem:[#allocation8 + $0xe4] sm:$0xf]
    %v4122 = vld [vmem:[#allocation8 + $0xe8] sm:$0xf]
    %v4123 = vld [vmem:[#allocation8 + $0xec] sm:$0xf]
    %v4124 = vld [vmem:[#allocation8 + $0xf0] sm:$0xf]
    %v4125 = vld [vmem:[#allocation8 + $0xf4] sm:$0xf]
    %v4126 = vld [vmem:[#allocation8 + $0xf8] sm:$0xf]
    %v4127 = vld [vmem:[#allocation8 + $0xfc] sm:$0xf]
    %v4128 = vld [vmem:[#allocation8 + $0x100] sm:$0xf]
    %v4129 = vld [vmem:[#allocation8 + $0x104] sm:$0xf]
    %v4130 = vld [vmem:[#allocation8 + $0x108] sm:$0xf]
    %v4131 = vld [vmem:[#allocation8 + $0x10c] sm:$0xf]
    %v4132 = vld [vmem:[#allocation8 + $0x110] sm:$0xf]
    %v4133 = vld [vmem:[#allocation8 + $0x114] sm:$0xf]
    %v4134 = vld [vmem:[#allocation8 + $0x118] sm:$0xf]
    %v4135 = vld [vmem:[#allocation8 + $0x11c] sm:$0xf]
    %v4136 = vld [vmem:[#allocation8 + $0x120] sm:$0xf]
    %v4137 = vld [vmem:[#allocation8 + $0x124] sm:$0xf]
    %v4138 = vld [vmem:[#allocation8 + $0x128] sm:$0xf]
    %v4139 = vld [vmem:[#allocation8 + $0x12c] sm:$0xf]
    %v4140 = vld [vmem:[#allocation8 + $0x130] sm:$0xf]
    %v4141 = vld [vmem:[#allocation8 + $0x134] sm:$0xf]
    %v4142 = vld [vmem:[#allocation8 + $0x138] sm:$0xf]
    %v4143 = vld [vmem:[#allocation8 + $0x13c] sm:$0xf]
    %v4144 = vld [vmem:[#allocation8 + $0x140] sm:$0xf]
    %v4145 = vld [vmem:[#allocation8 + $0x144] sm:$0xf]
    %v4146 = vld [vmem:[#allocation8 + $0x148] sm:$0xf]
    %v4147 = vld [vmem:[#allocation8 + $0x14c] sm:$0xf]
    %v4148 = vld [vmem:[#allocation8 + $0x150] sm:$0xf]
    %v4149 = vld [vmem:[#allocation8 + $0x154] sm:$0xf]
    %v4150 = vld [vmem:[#allocation8 + $0x158] sm:$0xf]
    %v4151 = vld [vmem:[#allocation8 + $0x15c] sm:$0xf]
    %v4152 = vld [vmem:[#allocation8 + $0x160] sm:$0xf]
    %v4153 = vld [vmem:[#allocation8 + $0x164] sm:$0xf]
    %v4154 = vld [vmem:[#allocation8 + $0x168] sm:$0xf]
    %v4155 = vld [vmem:[#allocation8 + $0x16c] sm:$0xf]
    %v4156 = vld [vmem:[#allocation8 + $0x170] sm:$0xf]
    %v4157 = vld [vmem:[#allocation8 + $0x174] sm:$0xf]
    %v4158 = vld [vmem:[#allocation8 + $0x178] sm:$0xf]
    %v4159 = vld [vmem:[#allocation8 + $0x17c] sm:$0xf]
    %v4160 = vld [vmem:[#allocation8 + $0x180] sm:$0xf]
    %v4161 = vld [vmem:[#allocation8 + $0x184] sm:$0xf]
    %v4162 = vld [vmem:[#allocation8 + $0x188] sm:$0xf]
    %v4163 = vld [vmem:[#allocation8 + $0x18c] sm:$0xf]
    %v4164 = vld [vmem:[#allocation8 + $0x190] sm:$0xf]
    %v4165 = vld [vmem:[#allocation8 + $0x194] sm:$0xf]
    %v4166 = vld [vmem:[#allocation8 + $0x198] sm:$0xf]
    %v4167 = vld [vmem:[#allocation8 + $0x19c] sm:$0xf]
    %v4168 = vld [vmem:[#allocation8 + $0x1a0] sm:$0xf]
    %v4169 = vld [vmem:[#allocation8 + $0x1a4] sm:$0xf]
    %v4170 = vld [vmem:[#allocation8 + $0x1a8] sm:$0xf]
    %v4171 = vld [vmem:[#allocation8 + $0x1ac] sm:$0xf]
    %v4172 = vld [vmem:[#allocation8 + $0x1b0] sm:$0xf]
    %v4173 = vld [vmem:[#allocation8 + $0x1b4] sm:$0xf]
    %v4174 = vld [vmem:[#allocation8 + $0x1b8] sm:$0xf]
    %v4175 = vld [vmem:[#allocation8 + $0x1bc] sm:$0xf]
    %v4176 = vld [vmem:[#allocation8 + $0x1c0] sm:$0xf]
    %v4177 = vld [vmem:[#allocation8 + $0x1c4] sm:$0xf]
    %v4178 = vld [vmem:[#allocation8 + $0x1c8] sm:$0xf]
    %v4179 = vld [vmem:[#allocation8 + $0x1cc] sm:$0xf]
    %v4180 = vld [vmem:[#allocation8 + $0x1d0] sm:$0xf]
    %v4181 = vld [vmem:[#allocation8 + $0x1d4] sm:$0xf]
    %v4182 = vld [vmem:[#allocation8 + $0x1d8] sm:$0xf]
    %v4183 = vld [vmem:[#allocation8 + $0x1dc] sm:$0xf]
    %v4184 = vld [vmem:[#allocation8 + $0x1e0] sm:$0xf]
    %v4185 = vld [vmem:[#allocation8 + $0x1e4] sm:$0xf]
    %v4186 = vld [vmem:[#allocation8 + $0x1e8] sm:$0xf]
    %v4187 = vld [vmem:[#allocation8 + $0x1ec] sm:$0xf]
    %v4188 = vld [vmem:[#allocation8 + $0x1f0] sm:$0xf]
    %v4189 = vld [vmem:[#allocation8 + $0x1f4] sm:$0xf]
    %v4190 = vld [vmem:[#allocation8 + $0x1f8] sm:$0xf]
    %v4191 = vld [vmem:[#allocation8 + $0x1fc] sm:$0xf]
    %v4192 = vld [vmem:[%s11] sm:$0x1]
    %v4194 = vlaneseq
    %v4195 = vshrl.u32 %v4194, 7
    %v4196 = vsub.s32 0, %v4195
    %v4197 = vrot.slane %v4192, %v4196
    %v4327 = vunpack.c.l.b16 %v4064
    %v4328 = vunpack.c.l.b16 %v4065
    %v4329 = vunpack.c.l.b16 %v4066
    %v4330 = vunpack.c.l.b16 %v4067
    %v4331 = vunpack.c.l.b16 %v4068
    %v4332 = vunpack.c.l.b16 %v4069
    %v4333 = vunpack.c.l.b16 %v4070
    %v4334 = vunpack.c.l.b16 %v4071
    %v4335 = vunpack.c.l.b16 %v4072
    %v4336 = vunpack.c.l.b16 %v4073
    %v4337 = vunpack.c.l.b16 %v4074
    %v4338 = vunpack.c.l.b16 %v4075
    %v4339 = vunpack.c.l.b16 %v4076
    %v4340 = vunpack.c.l.b16 %v4077
    %v4341 = vunpack.c.l.b16 %v4078
    %v4342 = vunpack.c.l.b16 %v4079
    %v4343 = vunpack.c.l.b16 %v4080
    %v4344 = vunpack.c.l.b16 %v4081
    %v4345 = vunpack.c.l.b16 %v4082
    %v4346 = vunpack.c.l.b16 %v4083
    %v4347 = vunpack.c.l.b16 %v4084
    %v4348 = vunpack.c.l.b16 %v4085
    %v4349 = vunpack.c.l.b16 %v4086
    %v4350 = vunpack.c.l.b16 %v4087
    %v4351 = vunpack.c.l.b16 %v4088
    %v4352 = vunpack.c.l.b16 %v4089
    %v4353 = vunpack.c.l.b16 %v4090
    %v4354 = vunpack.c.l.b16 %v4091
    %v4355 = vunpack.c.l.b16 %v4092
    %v4356 = vunpack.c.l.b16 %v4093
    %v4357 = vunpack.c.l.b16 %v4094
    %v4358 = vunpack.c.l.b16 %v4095
    %v4359 = vunpack.c.l.b16 %v4096
    %v4360 = vunpack.c.l.b16 %v4097
    %v4361 = vunpack.c.l.b16 %v4098
    %v4362 = vunpack.c.l.b16 %v4099
    %v4363 = vunpack.c.l.b16 %v4100
    %v4364 = vunpack.c.l.b16 %v4101
    %v4365 = vunpack.c.l.b16 %v4102
    %v4366 = vunpack.c.l.b16 %v4103
    %v4367 = vunpack.c.l.b16 %v4104
    %v4368 = vunpack.c.l.b16 %v4105
    %v4369 = vunpack.c.l.b16 %v4106
    %v4370 = vunpack.c.l.b16 %v4107
    %v4371 = vunpack.c.l.b16 %v4108
    %v4372 = vunpack.c.l.b16 %v4109
    %v4373 = vunpack.c.l.b16 %v4110
    %v4374 = vunpack.c.l.b16 %v4111
    %v4375 = vunpack.c.l.b16 %v4112
    %v4376 = vunpack.c.l.b16 %v4113
    %v4377 = vunpack.c.l.b16 %v4114
    %v4378 = vunpack.c.l.b16 %v4115
    %v4379 = vunpack.c.l.b16 %v4116
    %v4380 = vunpack.c.l.b16 %v4117
    %v4381 = vunpack.c.l.b16 %v4118
    %v4382 = vunpack.c.l.b16 %v4119
    %v4383 = vunpack.c.l.b16 %v4120
    %v4384 = vunpack.c.l.b16 %v4121
    %v4385 = vunpack.c.l.b16 %v4122
    %v4386 = vunpack.c.l.b16 %v4123
    %v4387 = vunpack.c.l.b16 %v4124
    %v4388 = vunpack.c.l.b16 %v4125
    %v4389 = vunpack.c.l.b16 %v4126
    %v4390 = vunpack.c.l.b16 %v4127
    %v4391 = vunpack.c.l.b16 %v4128
    %v4392 = vunpack.c.l.b16 %v4129
    %v4393 = vunpack.c.l.b16 %v4130
    %v4394 = vunpack.c.l.b16 %v4131
    %v4395 = vunpack.c.l.b16 %v4132
    %v4396 = vunpack.c.l.b16 %v4133
    %v4397 = vunpack.c.l.b16 %v4134
    %v4398 = vunpack.c.l.b16 %v4135
    %v4399 = vunpack.c.l.b16 %v4136
    %v4400 = vunpack.c.l.b16 %v4137
    %v4401 = vunpack.c.l.b16 %v4138
    %v4402 = vunpack.c.l.b16 %v4139
    %v4403 = vunpack.c.l.b16 %v4140
    %v4404 = vunpack.c.l.b16 %v4141
    %v4405 = vunpack.c.l.b16 %v4142
    %v4406 = vunpack.c.l.b16 %v4143
    %v4407 = vunpack.c.l.b16 %v4144
    %v4408 = vunpack.c.l.b16 %v4145
    %v4409 = vunpack.c.l.b16 %v4146
    %v4410 = vunpack.c.l.b16 %v4147
    %v4411 = vunpack.c.l.b16 %v4148
    %v4412 = vunpack.c.l.b16 %v4149
    %v4413 = vunpack.c.l.b16 %v4150
    %v4414 = vunpack.c.l.b16 %v4151
    %v4415 = vunpack.c.l.b16 %v4152
    %v4416 = vunpack.c.l.b16 %v4153
    %v4417 = vunpack.c.l.b16 %v4154
    %v4418 = vunpack.c.l.b16 %v4155
    %v4419 = vunpack.c.l.b16 %v4156
    %v4420 = vunpack.c.l.b16 %v4157
    %v4421 = vunpack.c.l.b16 %v4158
    %v4422 = vunpack.c.l.b16 %v4159
    %v4423 = vunpack.c.l.b16 %v4160
    %v4424 = vunpack.c.l.b16 %v4161
    %v4425 = vunpack.c.l.b16 %v4162
    %v4426 = vunpack.c.l.b16 %v4163
    %v4427 = vunpack.c.l.b16 %v4164
    %v4428 = vunpack.c.l.b16 %v4165
    %v4429 = vunpack.c.l.b16 %v4166
    %v4430 = vunpack.c.l.b16 %v4167
    %v4431 = vunpack.c.l.b16 %v4168
    %v4432 = vunpack.c.l.b16 %v4169
    %v4433 = vunpack.c.l.b16 %v4170
    %v4434 = vunpack.c.l.b16 %v4171
    %v4435 = vunpack.c.l.b16 %v4172
    %v4436 = vunpack.c.l.b16 %v4173
    %v4437 = vunpack.c.l.b16 %v4174
    %v4438 = vunpack.c.l.b16 %v4175
    %v4439 = vunpack.c.l.b16 %v4176
    %v4440 = vunpack.c.l.b16 %v4177
    %v4441 = vunpack.c.l.b16 %v4178
    %v4442 = vunpack.c.l.b16 %v4179
    %v4443 = vunpack.c.l.b16 %v4180
    %v4444 = vunpack.c.l.b16 %v4181
    %v4445 = vunpack.c.l.b16 %v4182
    %v4446 = vunpack.c.l.b16 %v4183
    %v4447 = vunpack.c.l.b16 %v4184
    %v4448 = vunpack.c.l.b16 %v4185
    %v4449 = vunpack.c.l.b16 %v4186
    %v4450 = vunpack.c.l.b16 %v4187
    %v4451 = vunpack.c.l.b16 %v4188
    %v4452 = vunpack.c.l.b16 %v4189
    %v4453 = vunpack.c.l.b16 %v4190
    %v4454 = vunpack.c.l.b16 %v4191
    %v4455 = vpack.c.b16 %v4328, %v4327
    %v4456 = vpack.c.b16 %v4330, %v4329
    %v4457 = vpack.c.b16 %v4332, %v4331
    %v4458 = vpack.c.b16 %v4334, %v4333
    %v4459 = vpack.c.b16 %v4336, %v4335
    %v4460 = vpack.c.b16 %v4338, %v4337
    %v4461 = vpack.c.b16 %v4340, %v4339
    %v4462 = vpack.c.b16 %v4342, %v4341
    %v4463 = vpack.c.b16 %v4344, %v4343
    %v4464 = vpack.c.b16 %v4346, %v4345
    %v4465 = vpack.c.b16 %v4348, %v4347
    %v4466 = vpack.c.b16 %v4350, %v4349
    %v4467 = vpack.c.b16 %v4352, %v4351
    %v4468 = vpack.c.b16 %v4354, %v4353
    %v4469 = vpack.c.b16 %v4356, %v4355
    %v4470 = vpack.c.b16 %v4358, %v4357
    %v4471 = vpack.c.b16 %v4360, %v4359
    %v4472 = vpack.c.b16 %v4362, %v4361
    %v4473 = vpack.c.b16 %v4364, %v4363
    %v4474 = vpack.c.b16 %v4366, %v4365
    %v4475 = vpack.c.b16 %v4368, %v4367
    %v4476 = vpack.c.b16 %v4370, %v4369
    %v4477 = vpack.c.b16 %v4372, %v4371
    %v4478 = vpack.c.b16 %v4374, %v4373
    %v4479 = vpack.c.b16 %v4376, %v4375
    %v4480 = vpack.c.b16 %v4378, %v4377
    %v4481 = vpack.c.b16 %v4380, %v4379
    %v4482 = vpack.c.b16 %v4382, %v4381
    %v4483 = vpack.c.b16 %v4384, %v4383
    %v4484 = vpack.c.b16 %v4386, %v4385
    %v4485 = vpack.c.b16 %v4388, %v4387
    %v4486 = vpack.c.b16 %v4390, %v4389
    %v4487 = vpack.c.b16 %v4392, %v4391
    %v4488 = vpack.c.b16 %v4394, %v4393
    %v4489 = vpack.c.b16 %v4396, %v4395
    %v4490 = vpack.c.b16 %v4398, %v4397
    %v4491 = vpack.c.b16 %v4400, %v4399
    %v4492 = vpack.c.b16 %v4402, %v4401
    %v4493 = vpack.c.b16 %v4404, %v4403
    %v4494 = vpack.c.b16 %v4406, %v4405
    %v4495 = vpack.c.b16 %v4408, %v4407
    %v4496 = vpack.c.b16 %v4410, %v4409
    %v4497 = vpack.c.b16 %v4412, %v4411
    %v4498 = vpack.c.b16 %v4414, %v4413
    %v4499 = vpack.c.b16 %v4416, %v4415
    %v4500 = vpack.c.b16 %v4418, %v4417
    %v4501 = vpack.c.b16 %v4420, %v4419
    %v4502 = vpack.c.b16 %v4422, %v4421
    %v4503 = vpack.c.b16 %v4424, %v4423
    %v4504 = vpack.c.b16 %v4426, %v4425
    %v4505 = vpack.c.b16 %v4428, %v4427
    %v4506 = vpack.c.b16 %v4430, %v4429
    %v4507 = vpack.c.b16 %v4432, %v4431
    %v4508 = vpack.c.b16 %v4434, %v4433
    %v4509 = vpack.c.b16 %v4436, %v4435
    %v4510 = vpack.c.b16 %v4438, %v4437
    %v4511 = vpack.c.b16 %v4440, %v4439
    %v4512 = vpack.c.b16 %v4442, %v4441
    %v4513 = vpack.c.b16 %v4444, %v4443
    %v4514 = vpack.c.b16 %v4446, %v4445
    %v4515 = vpack.c.b16 %v4448, %v4447
    %v4516 = vpack.c.b16 %v4450, %v4449
    %v4517 = vpack.c.b16 %v4452, %v4451
    %v4518 = vpack.c.b16 %v4454, %v4453
    %4583 = vmatprep.subr.bf16.mxu0 0
    %4584 = vmatpush1.bf16.msra.mxu0 %v4455
    %4585 = vmatprep.subr.bf16.mxu0 0
    %4586 = vmatpush1.bf16.msra.mxu0 %v4456
    %4587 = vmatprep.subr.bf16.mxu0 0
    %4588 = vmatpush1.bf16.msra.mxu0 %v4457
    %4589 = vmatprep.subr.bf16.mxu0 0
    %4590 = vmatpush1.bf16.msra.mxu0 %v4458
    %4591 = vmatprep.subr.bf16.mxu0 0
    %4592 = vmatpush1.bf16.msra.mxu0 %v4459
    %4593 = vmatprep.subr.bf16.mxu0 0
    %4594 = vmatpush1.bf16.msra.mxu0 %v4460
    %4595 = vmatprep.subr.bf16.mxu0 0
    %4596 = vmatpush1.bf16.msra.mxu0 %v4461
    %4597 = vmatprep.subr.bf16.mxu0 0
    %4598 = vmatpush1.bf16.msra.mxu0 %v4462
    %4599 = vmatprep.subr.bf16.mxu0 0
    %4600 = vmatpush1.bf16.msra.mxu0 %v4463
    %4601 = vmatprep.subr.bf16.mxu0 0
    %4602 = vmatpush1.bf16.msra.mxu0 %v4464
    %4603 = vmatprep.subr.bf16.mxu0 0
    %4604 = vmatpush1.bf16.msra.mxu0 %v4465
    %4605 = vmatprep.subr.bf16.mxu0 0
    %4606 = vmatpush1.bf16.msra.mxu0 %v4466
    %4607 = vmatprep.subr.bf16.mxu0 0
    %4608 = vmatpush1.bf16.msra.mxu0 %v4467
    %4609 = vmatprep.subr.bf16.mxu0 0
    %4610 = vmatpush1.bf16.msra.mxu0 %v4468
    %4611 = vmatprep.subr.bf16.mxu0 0
    %4612 = vmatpush1.bf16.msra.mxu0 %v4469
    %4613 = vmatprep.subr.bf16.mxu0 0
    %4614 = vmatpush1.bf16.msra.mxu0 %v4470
    %4615 = vmatprep.mubr.bf16.mxu0 %v4057
    %4616 = vmatmul.mubr.bf16.gmra.mrb[0].mxu0 %v4056
    %v4617 = vpop.f32.mrb[0].mxu0
    %v4618 = vadd.f32 %v4197, %v4617
    %v4619 = vpop.f32.mrb[0].mxu0
    %v4620 = vpop.f32.mrb[0].mxu0
    %v4621 = vpop.f32.mrb[0].mxu0
    %4622 = vdwg.mxu0
    %4623 = vmatprep.subr.bf16.mxu0 0
    %4624 = vmatpush1.bf16.msra.mxu0 %v4471
    %4625 = vmatprep.subr.bf16.mxu0 0
    %4626 = vmatpush1.bf16.msra.mxu0 %v4472
    %4627 = vmatprep.subr.bf16.mxu0 0
    %4628 = vmatpush1.bf16.msra.mxu0 %v4473
    %4629 = vmatprep.subr.bf16.mxu0 0
    %4630 = vmatpush1.bf16.msra.mxu0 %v4474
    %4631 = vmatprep.subr.bf16.mxu0 0
    %4632 = vmatpush1.bf16.msra.mxu0 %v4475
    %4633 = vmatprep.subr.bf16.mxu0 0
    %4634 = vmatpush1.bf16.msra.mxu0 %v4476
    %4635 = vmatprep.subr.bf16.mxu0 0
    %4636 = vmatpush1.bf16.msra.mxu0 %v4477
    %4637 = vmatprep.subr.bf16.mxu0 0
    %4638 = vmatpush1.bf16.msra.mxu0 %v4478
    %4639 = vmatprep.subr.bf16.mxu0 0
    %4640 = vmatpush1.bf16.msra.mxu0 %v4479
    %4641 = vmatprep.subr.bf16.mxu0 0
    %4642 = vmatpush1.bf16.msra.mxu0 %v4480
    %4643 = vmatprep.subr.bf16.mxu0 0
    %4644 = vmatpush1.bf16.msra.mxu0 %v4481
    %4645 = vmatprep.subr.bf16.mxu0 0
    %4646 = vmatpush1.bf16.msra.mxu0 %v4482
    %4647 = vmatprep.subr.bf16.mxu0 0
    %4648 = vmatpush1.bf16.msra.mxu0 %v4483
    %4649 = vmatprep.subr.bf16.mxu0 0
    %4650 = vmatpush1.bf16.msra.mxu0 %v4484
    %4651 = vmatprep.subr.bf16.mxu0 0
    %4652 = vmatpush1.bf16.msra.mxu0 %v4485
    %4653 = vmatprep.subr.bf16.mxu0 0
    %4654 = vmatpush1.bf16.msra.mxu0 %v4486
    %4655 = vmatprep.mubr.bf16.mxu0 %v4059
    %4656 = vmatmul.mubr.bf16.gmra.mrb[0].mxu0 %v4058
    %v4657 = vpop.f32.mrb[0].mxu0
    %v4658 = vadd.f32 %v4618, %v4657
    %v4659 = vpop.f32.mrb[0].mxu0
    %v4660 = vpop.f32.mrb[0].mxu0
    %v4661 = vpop.f32.mrb[0].mxu0
    %4662 = vdwg.mxu0
    %4663 = vmatprep.subr.bf16.mxu0 0
    %4664 = vmatpush1.bf16.msra.mxu0 %v4487
    %4665 = vmatprep.subr.bf16.mxu0 0
    %4666 = vmatpush1.bf16.msra.mxu0 %v4488
    %4667 = vmatprep.subr.bf16.mxu0 0
    %4668 = vmatpush1.bf16.msra.mxu0 %v4489
    %4669 = vmatprep.subr.bf16.mxu0 0
    %4670 = vmatpush1.bf16.msra.mxu0 %v4490
    %4671 = vmatprep.subr.bf16.mxu0 0
    %4672 = vmatpush1.bf16.msra.mxu0 %v4491
    %4673 = vmatprep.subr.bf16.mxu0 0
    %4674 = vmatpush1.bf16.msra.mxu0 %v4492
    %4675 = vmatprep.subr.bf16.mxu0 0
    %4676 = vmatpush1.bf16.msra.mxu0 %v4493
    %4677 = vmatprep.subr.bf16.mxu0 0
    %4678 = vmatpush1.bf16.msra.mxu0 %v4494
    %4679 = vmatprep.subr.bf16.mxu0 0
    %4680 = vmatpush1.bf16.msra.mxu0 %v4495
    %4681 = vmatprep.subr.bf16.mxu0 0
    %4682 = vmatpush1.bf16.msra.mxu0 %v4496
    %4683 = vmatprep.subr.bf16.mxu0 0
    %4684 = vmatpush1.bf16.msra.mxu0 %v4497
    %4685 = vmatprep.subr.bf16.mxu0 0
    %4686 = vmatpush1.bf16.msra.mxu0 %v4498
    %4687 = vmatprep.subr.bf16.mxu0 0
    %4688 = vmatpush1.bf16.msra.mxu0 %v4499
    %4689 = vmatprep.subr.bf16.mxu0 0
    %4690 = vmatpush1.bf16.msra.mxu0 %v4500
    %4691 = vmatprep.subr.bf16.mxu0 0
    %4692 = vmatpush1.bf16.msra.mxu0 %v4501
    %4693 = vmatprep.subr.bf16.mxu0 0
    %4694 = vmatpush1.bf16.msra.mxu0 %v4502
    %4695 = vmatprep.mubr.bf16.mxu0 %v4061
    %4696 = vmatmul.mubr.bf16.gmra.mrb[0].mxu0 %v4060
    %v4697 = vpop.f32.mrb[0].mxu0
    %v4698 = vadd.f32 %v4658, %v4697
    %v4699 = vpop.f32.mrb[0].mxu0
    %v4700 = vpop.f32.mrb[0].mxu0
    %v4701 = vpop.f32.mrb[0].mxu0
    %4702 = vdwg.mxu0
    %4703 = vmatprep.subr.bf16.mxu0 0
    %4704 = vmatpush1.bf16.msra.mxu0 %v4503
    %4705 = vmatprep.subr.bf16.mxu0 0
    %4706 = vmatpush1.bf16.msra.mxu0 %v4504
    %4707 = vmatprep.subr.bf16.mxu0 0
    %4708 = vmatpush1.bf16.msra.mxu0 %v4505
    %4709 = vmatprep.subr.bf16.mxu0 0
    %4710 = vmatpush1.bf16.msra.mxu0 %v4506
    %4711 = vmatprep.subr.bf16.mxu0 0
    %4712 = vmatpush1.bf16.msra.mxu0 %v4507
    %4713 = vmatprep.subr.bf16.mxu0 0
    %4714 = vmatpush1.bf16.msra.mxu0 %v4508
    %4715 = vmatprep.subr.bf16.mxu0 0
    %4716 = vmatpush1.bf16.msra.mxu0 %v4509
    %4717 = vmatprep.subr.bf16.mxu0 0
    %4718 = vmatpush1.bf16.msra.mxu0 %v4510
    %4719 = vmatprep.subr.bf16.mxu0 0
    %4720 = vmatpush1.bf16.msra.mxu0 %v4511
    %4721 = vmatprep.subr.bf16.mxu0 0
    %4722 = vmatpush1.bf16.msra.mxu0 %v4512
    %4723 = vmatprep.subr.bf16.mxu0 0
    %4724 = vmatpush1.bf16.msra.mxu0 %v4513
    %4725 = vmatprep.subr.bf16.mxu0 0
    %4726 = vmatpush1.bf16.msra.mxu0 %v4514
    %4727 = vmatprep.subr.bf16.mxu0 0
    %4728 = vmatpush1.bf16.msra.mxu0 %v4515
    %4729 = vmatprep.subr.bf16.mxu0 0
    %4730 = vmatpush1.bf16.msra.mxu0 %v4516
    %4731 = vmatprep.subr.bf16.mxu0 0
    %4732 = vmatpush1.bf16.msra.mxu0 %v4517
    %4733 = vmatprep.subr.bf16.mxu0 0
    %4734 = vmatpush1.bf16.msra.mxu0 %v4518
    %4735 = vmatprep.mubr.bf16.mxu0 %v4063
    %4736 = vmatmul.mubr.bf16.gmra.mrb[0].mxu0 %v4062
    %v4737 = vpop.f32.mrb[0].mxu0
    %v4738 = vadd.f32 %v4698, %v4737
    %v4739 = vpop.f32.mrb[0].mxu0
    %v4740 = vpop.f32.mrb[0].mxu0
    %v4741 = vpop.f32.mrb[0].mxu0
    %4742 = vdwg.mxu0
    %v4743 = vmax.f32 %v4738, 0.0
    %v4744 = vpack.c.bf16 %v4743, %v4743
    %v4745 = vld [vmem:[%s12] sm:$0xf]
    %v4746 = vld [vmem:[%s12 + $0x4] sm:$0xf]
    %v4747 = vld [vmem:[%s12 + $0x8] sm:$0xf]
    %v4748 = vld [vmem:[%s12 + $0xc] sm:$0xf]
    %v4749 = vld [vmem:[%s12 + $0x10] sm:$0xf]
    %v4750 = vld [vmem:[%s12 + $0x14] sm:$0xf]
    %v4751 = vld [vmem:[%s12 + $0x18] sm:$0xf]
    %v4752 = vld [vmem:[%s12 + $0x1c] sm:$0xf]
    %v4753 = vld [vmem:[%s12 + $0x20] sm:$0xf]
    %v4754 = vld [vmem:[%s12 + $0x24] sm:$0xf]
    %v4755 = vld [vmem:[%s12 + $0x28] sm:$0xf]
    %v4756 = vld [vmem:[%s12 + $0x2c] sm:$0xf]
    %v4757 = vld [vmem:[%s12 + $0x30] sm:$0xf]
    %v4758 = vld [vmem:[%s12 + $0x34] sm:$0xf]
    %v4759 = vld [vmem:[%s12 + $0x38] sm:$0xf]
    %v4760 = vld [vmem:[%s12 + $0x3c] sm:$0xf]
    %v4761 = vld [vmem:[#allocation7] sm:$0x1]
    %v4763 = vlaneseq
    %v4764 = vshrl.u32 %v4763, 7
    %v4765 = vsub.s32 0, %v4764
    %v4766 = vrot.slane %v4761, %v4765
    %v4784 = vunpack.c.l.b16 %v4745
    %v4785 = vunpack.c.l.b16 %v4746
    %v4786 = vunpack.c.l.b16 %v4747
    %v4787 = vunpack.c.l.b16 %v4748
    %v4788 = vunpack.c.l.b16 %v4749
    %v4789 = vunpack.c.l.b16 %v4750
    %v4790 = vunpack.c.l.b16 %v4751
    %v4791 = vunpack.c.l.b16 %v4752
    %v4792 = vunpack.c.l.b16 %v4753
    %v4793 = vunpack.c.l.b16 %v4754
    %v4794 = vunpack.c.l.b16 %v4755
    %v4795 = vunpack.c.l.b16 %v4756
    %v4796 = vunpack.c.l.b16 %v4757
    %v4797 = vunpack.c.l.b16 %v4758
    %v4798 = vunpack.c.l.b16 %v4759
    %v4799 = vunpack.c.l.b16 %v4760
    %v4800 = vpack.c.b16 %v4785, %v4784
    %v4801 = vpack.c.b16 %v4787, %v4786
    %v4802 = vpack.c.b16 %v4789, %v4788
    %v4803 = vpack.c.b16 %v4791, %v4790
    %v4804 = vpack.c.b16 %v4793, %v4792
    %v4805 = vpack.c.b16 %v4795, %v4794
    %v4806 = vpack.c.b16 %v4797, %v4796
    %v4807 = vpack.c.b16 %v4799, %v4798
    %4816 = vmatprep.subr.bf16.mxu0 0
    %4817 = vmatpush1.bf16.msra.mxu0 %v4800
    %4818 = vmatprep.subr.bf16.mxu0 0
    %4819 = vmatpush1.bf16.msra.mxu0 %v4801
    %4820 = vmatprep.subr.bf16.mxu0 0
    %4821 = vmatpush1.bf16.msra.mxu0 %v4802
    %4822 = vmatprep.subr.bf16.mxu0 0
    %4823 = vmatpush1.bf16.msra.mxu0 %v4803
    %4824 = vmatprep.subr.bf16.mxu0 0
    %4825 = vmatpush1.bf16.msra.mxu0 %v4804
    %4826 = vmatprep.subr.bf16.mxu0 0
    %4827 = vmatpush1.bf16.msra.mxu0 %v4805
    %4828 = vmatprep.subr.bf16.mxu0 0
    %4829 = vmatpush1.bf16.msra.mxu0 %v4806
    %4830 = vmatprep.subr.bf16.mxu0 0
    %4831 = vmatpush1.bf16.msra.mxu0 %v4807
    %4832 = vmatprep.subr.bf16.mxu0 0
    %4833 = vmatpush1.bf16.msra.mxu0 0
    %4834 = vmatprep.subr.bf16.mxu0 0
    %4835 = vmatpush1.bf16.msra.mxu0 0
    %4836 = vmatprep.subr.bf16.mxu0 0
    %4837 = vmatpush1.bf16.msra.mxu0 0
    %4838 = vmatprep.subr.bf16.mxu0 0
    %4839 = vmatpush1.bf16.msra.mxu0 0
    %4840 = vmatprep.subr.bf16.mxu0 0
    %4841 = vmatpush1.bf16.msra.mxu0 0
    %4842 = vmatprep.subr.bf16.mxu0 0
    %4843 = vmatpush1.bf16.msra.mxu0 0
    %4844 = vmatprep.subr.bf16.mxu0 0
    %4845 = vmatpush1.bf16.msra.mxu0 0
    %4846 = vmatprep.subr.bf16.mxu0 0
    %4847 = vmatpush1.bf16.msra.mxu0 0
    %4848 = vmatprep.mubr.bf16.mxu0 0
    %4849 = vmatmul.mubr.bf16.gmra.mrb[0].mxu0 %v4744
    %v4850 = vpop.f32.mrb[0].mxu0
    %v4851 = vadd.f32 %v4766, %v4850
    %v4852 = vpop.f32.mrb[0].mxu0
    %v4853 = vpop.f32.mrb[0].mxu0
    %v4854 = vpop.f32.mrb[0].mxu0
    %4855 = vdwg.mxu0
    %vm4856 = vcmask 1024
    %4857 = vst.msk [vmem:[%s14] sm:$0x3] %vm4856, %v4851
    // Predicated region
    $region62: #{tpu_custom_call.1} parent=1 // pred_check
      _
    $region63: #{tpu_custom_call.1} parent=1 // pred_check_branch
      %4859 = sbr.rel (0) target = $region65
    $region64: #{tpu_custom_call.1} parent=1 // pred_region
      _
    $region65: #{tpu_custom_call.1} parent=1 // pred_fallthru
      _
    // Predicated region
    $region66: #{tpu_custom_call.1} parent=1 // pred_check
      _
    $region67: #{tpu_custom_call.1} parent=1 // pred_check_branch
      %4861 = sbr.rel (0) target = $region69
    $region68: #{tpu_custom_call.1} parent=1 // pred_region
      _
    $region69: #{tpu_custom_call.1} parent=1 // pred_fallthru
      _
    %4862 = vsyncpa [#allocation9], 1

</llo_original>
